<compile_context>
chip_gen: v7x
topology: tpu7x:2x2x1
jax: 0.10.0
libtpu: 0.0.40
codegen_flags: <defaults>
</compile_context>

<pallas_src>
import jax
import jax.numpy as jnp
from jax import lax
from jax.experimental import pallas as pl
from jax.experimental.pallas import tpu as pltpu

NUM_FEATURES = 5          # input_size
NUM_SYMBOLS  = 10
HIDDEN       = 64         # hidden_size
NUM_LAYERS   = 3
ENC_MID      = 50
B_PAD        = 8          # pad batch to one full sublane tile


def _sigmoid(x):
    # Exact identity sigmoid(x) = 0.5 * (tanh(x/2) + 1): single EUP op, no divide.
    return 0.5 * (jnp.tanh(0.5 * x) + 1.0)


# ----------------------- fused encoder + LSTM + head kernel -----------------------
def fused_forward(x_flat, t_len, p):
    """x_flat: (T*B_PAD, F) float32, time-major rows (row = t*B_PAD + b)."""
    T, BP, H = t_len, B_PAD, HIDDEN
    TB = T * BP

    def kernel(x_ref, w1_ref, b1_ref, w2_ref, b2_ref,
               wih0_ref, whh0_ref, b0_ref, wf_ref, b12_ref,
               fcw_ref, fcb_ref, out_ref, gih_ref):
        # ---------- encoder -> argmax -> one-hot (f32; keeps argmax exact) ----------
        x = x_ref[...]                                                    # (TB, F)
        h1 = jnp.maximum(
            jnp.dot(x, w1_ref[...], preferred_element_type=jnp.float32) + b1_ref[...],
            0.0)                                                          # ReLU
        logits = (jnp.dot(h1, w2_ref[...], preferred_element_type=jnp.float32)
                  + b2_ref[...])                                          # (TB, S)
        # argmax(softmax(z)) == argmax(z): no exp / normalize needed in eval branch.
        max_l = jnp.max(logits, axis=-1, keepdims=True)
        sym = lax.broadcasted_iota(jnp.int32, logits.shape, 1)
        idx = jnp.min(jnp.where(logits == max_l, sym, NUM_SYMBOLS),
                      axis=-1, keepdims=True)                             # first max
        lane_h = lax.broadcasted_iota(jnp.int32, (TB, H), 1)
        onehot = (lane_h == idx).astype(jnp.float32).astype(jnp.bfloat16)  # exact 0/1

        # ---------- hoisted layer-0 input gates: one (TB,H)@(H,4H) matmul ----------
        gih_ref[...] = (jnp.dot(onehot, wih0_ref[...],
                                preferred_element_type=jnp.float32)
                        + b0_ref[...])                                    # (TB, 4H) f32

        # ---------- 3-layer LSTM: wavefront over (layer, time) ----------
        # Gate column order [i | f | o | g].  Lanes 0:128 -> plain sigmoid;
        # lanes 128:256 -> sigmoid & tanh on the whole vreg + lane-iota blend
        # (EUP has slack; avoids any slice crossing the 128-lane vreg boundary).
        sel_o = lax.broadcasted_iota(jnp.int32, (BP, 2 * H), 1) < H        # hoisted

        def cell(gates, c_prev):
            a_lo = _sigmoid(gates[:, :2 * H])                              # i | f
            g_hi = gates[:, 2 * H:]                                        # o | g
            a_hi = jnp.where(sel_o, _sigmoid(g_hi), jnp.tanh(g_hi))
            c_new = a_lo[:, H:] * c_prev + a_lo[:, :H] * a_hi[:, H:]
            h_new = a_hi[:, :H] * jnp.tanh(c_new)
            return h_new, c_new

        zeros = jnp.zeros((BP, H), jnp.float32)
        h = [zeros] * NUM_LAYERS
        c = [zeros] * NUM_LAYERS
        # Wavefront step s handles all (l, t = s - l) with 0 <= t < T; every active
        # cell only depends on values produced at step s-1, so the (up to 3) cells
        # per step are independent and the scheduler can overlap their MXU/EUP chains.
        for s in range(T + NUM_LAYERS - 1):
            h_nxt, c_nxt = list(h), list(c)
            lo, hi = max(0, s - T + 1), min(NUM_LAYERS - 1, s)
            for l in range(lo, hi + 1):
                t = s - l
                if l == 0:
                    # input gates hoisted; only h @ whh on the recurrence.
                    gates = gih_ref[t * BP:(t + 1) * BP, :] + jnp.dot(
                        h[0].astype(jnp.bfloat16), whh0_ref[...],
                        preferred_element_type=jnp.float32)
                else:
                    # fused input+recurrent matmul: [h_{l-1,t} ; h_{l,t-1}] @ [wih; whh]
                    lhs = jnp.concatenate([h[l - 1], h[l]],
                                          axis=1).astype(jnp.bfloat16)     # (BP, 2H)
                    gates = (jnp.dot(lhs, wf_ref[l - 1],
                                     preferred_element_type=jnp.float32)
                             + b12_ref[l - 1])
                h_nxt[l], c_nxt[l] = cell(gates, c[l])
            h, c = h_nxt, c_nxt

        # ---------- fc on last layer's final hidden state, then sigmoid ----------
        logit = (jnp.dot(h[-1], fcw_ref[...], preferred_element_type=jnp.float32)
                 + fcb_ref[...])
        out_ref[...] = _sigmoid(logit)                                    # (BP, 1)

    return pl.pallas_call(
        kernel,
        out_shape=jax.ShapeDtypeStruct((BP, 1), jnp.float32),
        in_specs=[pl.BlockSpec(memory_space=pltpu.MemorySpace.VMEM)] * 12,
        out_specs=pl.BlockSpec(memory_space=pltpu.MemorySpace.VMEM),
        # Hoisted layer-0 gates, t-major: rows t*8..t*8+7 form one aligned (8,256) tile.
        scratch_shapes=[pltpu.VMEM((TB, 4 * H), jnp.float32)],
    )(x_flat, p["enc_w1"], p["enc_b1"], p["enc_w2"], p["enc_b2"],
      p["wih0"], p["whh0"], p["b0"], p["wf"], p["b12"], p["fc_w"], p["fc_b"])


# --------------------------------- params ------------------------------------------
def init_params(key):
    ks = jax.random.split(key, 7)

    def u(k, shape, fan_in):
        bound = 1.0 / (fan_in ** 0.5)
        return jax.random.uniform(k, shape, jnp.float32, -bound, bound)

    p = {}
    p["enc_w1"] = u(ks[0], (NUM_FEATURES, ENC_MID), NUM_FEATURES)
    p["enc_b1"] = u(ks[1], (1, ENC_MID), NUM_FEATURES)
    p["enc_w2"] = u(ks[2], (ENC_MID, NUM_SYMBOLS), ENC_MID)
    p["enc_b2"] = u(ks[3], (1, NUM_SYMBOLS), ENC_MID)

    def gate_blocks(k, rows):
        # [i, f, o, g] column order (see porting note at top of file).
        g = jax.random.split(k, 4)
        i_, f_, g_, o_ = (u(g[j], (rows, HIDDEN), HIDDEN) for j in range(4))
        return jnp.concatenate([i_, f_, o_, g_], axis=1)

    wih, whh, bias = [], [], []
    for l in range(NUM_LAYERS):
        in_l = NUM_SYMBOLS if l == 0 else HIDDEN
        kk = jax.random.split(jax.random.fold_in(ks[4], l), 4)
        w_ih = gate_blocks(kk[0], in_l)
        if in_l < HIDDEN:  # pad layer-0 rows; padded one-hot columns are zero -> exact
            w_ih = jnp.concatenate(
                [w_ih, jnp.zeros((HIDDEN - in_l, 4 * HIDDEN), jnp.float32)], axis=0)
        w_hh = gate_blocks(kk[1], HIDDEN)
        b_ih = gate_blocks(kk[2], 1)
        b_hh = gate_blocks(kk[3], 1)
        wih.append(w_ih); whh.append(w_hh); bias.append(b_ih + b_hh)

    # bf16 matmul operands for the recurrence; biases / elementwise stay f32.
    p["wih0"] = wih[0].astype(jnp.bfloat16)                            # (H, 4H)
    p["whh0"] = whh[0].astype(jnp.bfloat16)                            # (H, 4H)
    p["b0"]   = bias[0]                                                # (1, 4H) f32
    # Layers 1..2: stack wih over whh -> (2H, 4H) for the fused per-cell matmul.
    p["wf"]  = jnp.stack([jnp.concatenate([wih[l], whh[l]], axis=0)
                          for l in range(1, NUM_LAYERS)]).astype(jnp.bfloat16)
    p["b12"] = jnp.stack([bias[l] for l in range(1, NUM_LAYERS)])      # (2, 1, 4H)
    p["fc_w"] = u(ks[5], (HIDDEN, 1), HIDDEN)
    p["fc_b"] = u(ks[6], (1, 1), HIDDEN)
    return p


# ------------------------------ pure-JAX reference ----------------------------------
@jax.jit
def reference_forward(x, p):
    """Mirrors the kernel's numerics (bf16 LSTM matmul operands, f32 accumulate)."""
    H = HIDDEN
    h1 = jnp.maximum(x @ p["enc_w1"] + p["enc_b1"][0], 0.0)
    logits = h1 @ p["enc_w2"] + p["enc_b2"][0]                          # (B, T, S)
    idx = jnp.argmax(logits, axis=-1)
    seq = jax.nn.one_hot(idx, H, dtype=jnp.float32)                     # zero-padded
    wih = [p["wih0"]] + [p["wf"][l][:H] for l in range(NUM_LAYERS - 1)]
    whh = [p["whh0"]] + [p["wf"][l][H:] for l in range(NUM_LAYERS - 1)]
    bias = [p["b0"][0]] + [p["b12"][l][0] for l in range(NUM_LAYERS - 1)]
    B, T = x.shape[0], x.shape[1]
    inp, h = seq, None
    for l in range(NUM_LAYERS):
        h = jnp.zeros((B, H), jnp.float32)
        c = jnp.zeros((B, H), jnp.float32)
        outs = []
        for t in range(T):
            gates = (jnp.dot(inp[:, t, :].astype(jnp.bfloat16), wih[l],
                             preferred_element_type=jnp.float32)
                     + jnp.dot(h.astype(jnp.bfloat16), whh[l],
                               preferred_element_type=jnp.float32) + bias[l])
            i_g = jax.nn.sigmoid(gates[:, :H])
            f_g = jax.nn.sigmoid(gates[:, H:2 * H])
            o_g = jax.nn.sigmoid(gates[:, 2 * H:3 * H])
            g_g = jnp.tanh(gates[:, 3 * H:])
            c = f_g * c + i_g * g_g
            h = o_g * jnp.tanh(c)
            outs.append(h)
        inp = jnp.stack(outs, axis=1)
    logit = h @ p["fc_w"] + p["fc_b"][0]
    return jax.nn.sigmoid(logit)[:, 0]


# --------------------------------- forward -----------------------------------------
@jax.jit
def forward(x, params):
    """x: (B, T, F) float32 -> (B,) float32 in [0, 1]."""
    B, T, F = x.shape
    assert B <= B_PAD, "pad/tile the batch grid for B > 8"
    # Pad batch to a full 8-row sublane tile (dead rows are free on a latency-bound
    # kernel) and flatten time-major (row = t*B_PAD + b) so the in-kernel layer-0
    # gate scratch is consumed as full aligned (8, 4H) tiles.
    x_pad = jnp.pad(x, ((0, B_PAD - B), (0, 0), (0, 0)))
    x_flat = jnp.transpose(x_pad, (1, 0, 2)).reshape(T * B_PAD, F)
    out = fused_forward(x_flat, T, params)
    return out[:B, 0]                                                   # squeeze(1)


if __name__ == "__main__":
    key = jax.random.PRNGKey(0)
    kx, kp = jax.random.split(key)
    B, T = 2, 8
    x = jax.random.normal(kx, (B, T, NUM_FEATURES), dtype=jnp.float32)
    params = init_params(kp)

    y = forward(x, params)
    jax.block_until_ready(y)
    assert y.shape == (B,) and y.dtype == jnp.float32

    y_ref = reference_forward(x, params)
    jax.block_until_ready(y_ref)
    max_err = float(jnp.max(jnp.abs(y - y_ref)))
    assert max_err < 2e-3, f"mismatch vs reference: {max_err}"

    # TODO(synk): training-mode path (soft softmax probabilities fed to the LSTM) not
    # exercised; this implements the eval branch (test_with_symbols=True, argmax one-hot).
    print("KERNEL_OK")
</pallas_src>

<mosaic_0001>
module attributes {stable_mosaic.version = 11 : i64} {
  func.func @kernel(%arg0: memref<64x5xf32, #tpu.memory_space<vmem>>, %arg1: memref<5x50xf32, #tpu.memory_space<vmem>>, %arg2: memref<1x50xf32, #tpu.memory_space<vmem>>, %arg3: memref<50x10xf32, #tpu.memory_space<vmem>>, %arg4: memref<1x10xf32, #tpu.memory_space<vmem>>, %arg5: memref<64x256xbf16, #tpu.memory_space<vmem>>, %arg6: memref<64x256xbf16, #tpu.memory_space<vmem>>, %arg7: memref<1x256xf32, #tpu.memory_space<vmem>>, %arg8: memref<2x128x256xbf16, #tpu.memory_space<vmem>>, %arg9: memref<2x1x256xf32, #tpu.memory_space<vmem>>, %arg10: memref<64x1xf32, #tpu.memory_space<vmem>>, %arg11: memref<1x1xf32, #tpu.memory_space<vmem>>, %arg12: memref<8x1xf32, #tpu.memory_space<vmem>>, %arg13: memref<64x256xf32, #tpu.memory_space<vmem>>) attributes {dimension_semantics = [], scalar_prefetch = 0 : i64, scratch_operands = 1 : i64, tpu.core_type = #tpu.core_type<tc>} {
    %c0 = arith.constant 0 : index
    %c0_0 = arith.constant 0 : index
    %0 = vector.load %arg0[%c0, %c0_0] : memref<64x5xf32, #tpu.memory_space<vmem>>, vector<64x5xf32>
    %c0_1 = arith.constant 0 : index
    %c0_2 = arith.constant 0 : index
    %1 = vector.load %arg1[%c0_1, %c0_2] : memref<5x50xf32, #tpu.memory_space<vmem>>, vector<5x50xf32>
    %cst = arith.constant dense<0.000000e+00> : vector<64x50xf32>
    %2 = tpu.matmul %0, %1, %cst {dimension_numbers = #tpu.dot_dimension_numbers<[1], [0], [0], [1], [0, 0, 1, 1], [], []>} : vector<64x5xf32>, vector<5x50xf32>, vector<64x50xf32> -> vector<64x50xf32>
    %c0_3 = arith.constant 0 : index
    %c0_4 = arith.constant 0 : index
    %3 = vector.load %arg2[%c0_3, %c0_4] : memref<1x50xf32, #tpu.memory_space<vmem>>, vector<1x50xf32>
    %4 = vector.broadcast %3 : vector<1x50xf32> to vector<64x50xf32>
    %5 = arith.addf %2, %4 : vector<64x50xf32>
    %cst_5 = arith.constant 0.000000e+00 : f32
    %6 = vector.broadcast %cst_5 : f32 to vector<64x50xf32>
    %7 = arith.maximumf %5, %6 : vector<64x50xf32>
    %c0_6 = arith.constant 0 : index
    %c0_7 = arith.constant 0 : index
    %8 = vector.load %arg3[%c0_6, %c0_7] : memref<50x10xf32, #tpu.memory_space<vmem>>, vector<50x10xf32>
    %cst_8 = arith.constant dense<0.000000e+00> : vector<64x10xf32>
    %9 = tpu.matmul %7, %8, %cst_8 {dimension_numbers = #tpu.dot_dimension_numbers<[1], [0], [0], [1], [0, 0, 1, 1], [], []>} : vector<64x50xf32>, vector<50x10xf32>, vector<64x10xf32> -> vector<64x10xf32>
    %c0_9 = arith.constant 0 : index
    %c0_10 = arith.constant 0 : index
    %10 = vector.load %arg4[%c0_9, %c0_10] : memref<1x10xf32, #tpu.memory_space<vmem>>, vector<1x10xf32>
    %11 = vector.broadcast %10 : vector<1x10xf32> to vector<64x10xf32>
    %12 = arith.addf %9, %11 : vector<64x10xf32>
    %cst_11 = arith.constant dense<0xFF800000> : vector<64xf32>
    %13 = vector.multi_reduction <maximumf>, %12, %cst_11 [1] : vector<64x10xf32> to vector<64xf32>
    %14 = vector.shape_cast %13 : vector<64xf32> to vector<64x1xf32>
    %15 = tpu.iota {dimensions = array<i32: 1>} : vector<64x10xi32>
    %16 = vector.broadcast %14 : vector<64x1xf32> to vector<64x10xf32>
    %17 = arith.cmpf oeq, %12, %16 : vector<64x10xf32>
    %c10_i32 = arith.constant 10 : i32
    %18 = vector.broadcast %c10_i32 : i32 to vector<64x10xi32>
    %19 = arith.select %17, %15, %18 : vector<64x10xi1>, vector<64x10xi32>
    %cst_12 = arith.constant dense<2147483647> : vector<64xi32>
    %20 = vector.multi_reduction <minsi>, %19, %cst_12 [1] : vector<64x10xi32> to vector<64xi32>
    %21 = vector.shape_cast %20 : vector<64xi32> to vector<64x1xi32>
    %22 = tpu.iota {dimensions = array<i32: 1>} : vector<64x64xi32>
    %23 = vector.broadcast %21 : vector<64x1xi32> to vector<64x64xi32>
    %24 = arith.cmpi eq, %22, %23 : vector<64x64xi32>
    %25 = arith.extui %24 : vector<64x64xi1> to vector<64x64xi32>
    %26 = arith.sitofp %25 : vector<64x64xi32> to vector<64x64xf32>
    %27 = arith.truncf %26 : vector<64x64xf32> to vector<64x64xbf16>
    %c0_13 = arith.constant 0 : index
    %c0_14 = arith.constant 0 : index
    %28 = vector.load %arg5[%c0_13, %c0_14] : memref<64x256xbf16, #tpu.memory_space<vmem>>, vector<64x256xbf16>
    %cst_15 = arith.constant dense<0.000000e+00> : vector<64x256xf32>
    %29 = tpu.matmul %27, %28, %cst_15 {dimension_numbers = #tpu.dot_dimension_numbers<[1], [0], [0], [1], [0, 0, 1, 1], [], []>} : vector<64x64xbf16>, vector<64x256xbf16>, vector<64x256xf32> -> vector<64x256xf32>
    %c0_16 = arith.constant 0 : index
    %c0_17 = arith.constant 0 : index
    %30 = vector.load %arg7[%c0_16, %c0_17] : memref<1x256xf32, #tpu.memory_space<vmem>>, vector<1x256xf32>
    %31 = vector.broadcast %30 : vector<1x256xf32> to vector<64x256xf32>
    %32 = arith.addf %29, %31 : vector<64x256xf32>
    %c0_18 = arith.constant 0 : index
    %c0_19 = arith.constant 0 : index
    %33 = vector.load %arg13[%c0_18, %c0_19] : memref<64x256xf32, #tpu.memory_space<vmem>>, vector<64x256xf32>
    tpu.vector_store %arg13[%c0_18, %c0_19], %32 {strides = array<i32>} : memref<64x256xf32, #tpu.memory_space<vmem>>, vector<64x256xf32>,
    %34 = tpu.iota {dimensions = array<i32: 1>} : vector<8x128xi32>
    %c64_i32 = arith.constant 64 : i32
    %35 = vector.broadcast %c64_i32 : i32 to vector<8x128xi32>
    %36 = arith.cmpi slt, %34, %35 : vector<8x128xi32>
    %cst_20 = arith.constant 0.000000e+00 : f32
    %37 = vector.broadcast %cst_20 : f32 to vector<8x64xf32>
    %c0_21 = arith.constant 0 : index
    %c0_22 = arith.constant 0 : index
    %38 = vector.load %arg13[%c0_21, %c0_22] : memref<64x256xf32, #tpu.memory_space<vmem>>, vector<8x256xf32>
    %39 = arith.truncf %37 : vector<8x64xf32> to vector<8x64xbf16>
    %c0_23 = arith.constant 0 : index
    %c0_24 = arith.constant 0 : index
    %40 = vector.load %arg6[%c0_23, %c0_24] : memref<64x256xbf16, #tpu.memory_space<vmem>>, vector<64x256xbf16>
    %cst_25 = arith.constant dense<0.000000e+00> : vector<8x256xf32>
    %41 = tpu.matmul %39, %40, %cst_25 {dimension_numbers = #tpu.dot_dimension_numbers<[1], [0], [0], [1], [0, 0, 1, 1], [], []>} : vector<8x64xbf16>, vector<64x256xbf16>, vector<8x256xf32> -> vector<8x256xf32>
    %42 = arith.addf %38, %41 : vector<8x256xf32>
    %43 = vector.extract_strided_slice %42 {offsets = [0, 0], sizes = [8, 128], strides = [1, 1]} : vector<8x256xf32> to vector<8x128xf32>
    %cst_26 = arith.constant 5.000000e-01 : f32
    %44 = vector.broadcast %cst_26 : f32 to vector<8x128xf32>
    %45 = arith.mulf %44, %43 : vector<8x128xf32>
    %46 = math.tanh %45 : vector<8x128xf32>
    %cst_27 = arith.constant 1.000000e+00 : f32
    %47 = vector.broadcast %cst_27 : f32 to vector<8x128xf32>
    %48 = arith.addf %46, %47 : vector<8x128xf32>
    %cst_28 = arith.constant 5.000000e-01 : f32
    %49 = vector.broadcast %cst_28 : f32 to vector<8x128xf32>
    %50 = arith.mulf %49, %48 : vector<8x128xf32>
    %51 = vector.extract_strided_slice %42 {offsets = [0, 128], sizes = [8, 128], strides = [1, 1]} : vector<8x256xf32> to vector<8x128xf32>
    %cst_29 = arith.constant 5.000000e-01 : f32
    %52 = vector.broadcast %cst_29 : f32 to vector<8x128xf32>
    %53 = arith.mulf %52, %51 : vector<8x128xf32>
    %54 = math.tanh %53 : vector<8x128xf32>
    %cst_30 = arith.constant 1.000000e+00 : f32
    %55 = vector.broadcast %cst_30 : f32 to vector<8x128xf32>
    %56 = arith.addf %54, %55 : vector<8x128xf32>
    %cst_31 = arith.constant 5.000000e-01 : f32
    %57 = vector.broadcast %cst_31 : f32 to vector<8x128xf32>
    %58 = arith.mulf %57, %56 : vector<8x128xf32>
    %59 = math.tanh %51 : vector<8x128xf32>
    %60 = arith.select %36, %58, %59 : vector<8x128xi1>, vector<8x128xf32>
    %61 = vector.extract_strided_slice %50 {offsets = [0, 64], sizes = [8, 64], strides = [1, 1]} : vector<8x128xf32> to vector<8x64xf32>
    %62 = arith.mulf %61, %37 : vector<8x64xf32>
    %63 = vector.extract_strided_slice %50 {offsets = [0, 0], sizes = [8, 64], strides = [1, 1]} : vector<8x128xf32> to vector<8x64xf32>
    %64 = vector.extract_strided_slice %60 {offsets = [0, 64], sizes = [8, 64], strides = [1, 1]} : vector<8x128xf32> to vector<8x64xf32>
    %65 = arith.mulf %63, %64 : vector<8x64xf32>
    %66 = arith.addf %62, %65 : vector<8x64xf32>
    %67 = vector.extract_strided_slice %60 {offsets = [0, 0], sizes = [8, 64], strides = [1, 1]} : vector<8x128xf32> to vector<8x64xf32>
    %68 = math.tanh %66 : vector<8x64xf32>
    %69 = arith.mulf %67, %68 : vector<8x64xf32>
    %c8 = arith.constant 8 : index
    %c0_32 = arith.constant 0 : index
    %70 = vector.load %arg13[%c8, %c0_32] : memref<64x256xf32, #tpu.memory_space<vmem>>, vector<8x256xf32>
    %71 = arith.truncf %69 : vector<8x64xf32> to vector<8x64xbf16>
    %c0_33 = arith.constant 0 : index
    %c0_34 = arith.constant 0 : index
    %72 = vector.load %arg6[%c0_33, %c0_34] : memref<64x256xbf16, #tpu.memory_space<vmem>>, vector<64x256xbf16>
    %cst_35 = arith.constant dense<0.000000e+00> : vector<8x256xf32>
    %73 = tpu.matmul %71, %72, %cst_35 {dimension_numbers = #tpu.dot_dimension_numbers<[1], [0], [0], [1], [0, 0, 1, 1], [], []>} : vector<8x64xbf16>, vector<64x256xbf16>, vector<8x256xf32> -> vector<8x256xf32>
    %74 = arith.addf %70, %73 : vector<8x256xf32>
    %75 = vector.extract_strided_slice %74 {offsets = [0, 0], sizes = [8, 128], strides = [1, 1]} : vector<8x256xf32> to vector<8x128xf32>
    %cst_36 = arith.constant 5.000000e-01 : f32
    %76 = vector.broadcast %cst_36 : f32 to vector<8x128xf32>
    %77 = arith.mulf %76, %75 : vector<8x128xf32>
    %78 = math.tanh %77 : vector<8x128xf32>
    %cst_37 = arith.constant 1.000000e+00 : f32
    %79 = vector.broadcast %cst_37 : f32 to vector<8x128xf32>
    %80 = arith.addf %78, %79 : vector<8x128xf32>
    %cst_38 = arith.constant 5.000000e-01 : f32
    %81 = vector.broadcast %cst_38 : f32 to vector<8x128xf32>
    %82 = arith.mulf %81, %80 : vector<8x128xf32>
    %83 = vector.extract_strided_slice %74 {offsets = [0, 128], sizes = [8, 128], strides = [1, 1]} : vector<8x256xf32> to vector<8x128xf32>
    %cst_39 = arith.constant 5.000000e-01 : f32
    %84 = vector.broadcast %cst_39 : f32 to vector<8x128xf32>
    %85 = arith.mulf %84, %83 : vector<8x128xf32>
    %86 = math.tanh %85 : vector<8x128xf32>
    %cst_40 = arith.constant 1.000000e+00 : f32
    %87 = vector.broadcast %cst_40 : f32 to vector<8x128xf32>
    %88 = arith.addf %86, %87 : vector<8x128xf32>
    %cst_41 = arith.constant 5.000000e-01 : f32
    %89 = vector.broadcast %cst_41 : f32 to vector<8x128xf32>
    %90 = arith.mulf %89, %88 : vector<8x128xf32>
    %91 = math.tanh %83 : vector<8x128xf32>
    %92 = arith.select %36, %90, %91 : vector<8x128xi1>, vector<8x128xf32>
    %93 = vector.extract_strided_slice %82 {offsets = [0, 64], sizes = [8, 64], strides = [1, 1]} : vector<8x128xf32> to vector<8x64xf32>
    %94 = arith.mulf %93, %66 : vector<8x64xf32>
    %95 = vector.extract_strided_slice %82 {offsets = [0, 0], sizes = [8, 64], strides = [1, 1]} : vector<8x128xf32> to vector<8x64xf32>
    %96 = vector.extract_strided_slice %92 {offsets = [0, 64], sizes = [8, 64], strides = [1, 1]} : vector<8x128xf32> to vector<8x64xf32>
    %97 = arith.mulf %95, %96 : vector<8x64xf32>
    %98 = arith.addf %94, %97 : vector<8x64xf32>
    %99 = vector.extract_strided_slice %92 {offsets = [0, 0], sizes = [8, 64], strides = [1, 1]} : vector<8x128xf32> to vector<8x64xf32>
    %100 = math.tanh %98 : vector<8x64xf32>
    %101 = arith.mulf %99, %100 : vector<8x64xf32>
    %102 = tpu.concatenate %69, %37 in 1 : vector<8x64xf32>, vector<8x64xf32> -> vector<8x128xf32>
    %103 = arith.truncf %102 : vector<8x128xf32> to vector<8x128xbf16>
    %c0_42 = arith.constant 0 : index
    %c0_43 = arith.constant 0 : index
    %c0_44 = arith.constant 0 : index
    %104 = vector.load %arg8[%c0_42, %c0_43, %c0_44] : memref<2x128x256xbf16, #tpu.memory_space<vmem>>, vector<1x128x256xbf16>
    %105 = vector.shape_cast %104 : vector<1x128x256xbf16> to vector<128x256xbf16>
    %cst_45 = arith.constant dense<0.000000e+00> : vector<8x256xf32>
    %106 = tpu.matmul %103, %105, %cst_45 {dimension_numbers = #tpu.dot_dimension_numbers<[1], [0], [0], [1], [0, 0, 1, 1], [], []>} : vector<8x128xbf16>, vector<128x256xbf16>, vector<8x256xf32> -> vector<8x256xf32>
    %c0_46 = arith.constant 0 : index
    %c0_47 = arith.constant 0 : index
    %c0_48 = arith.constant 0 : index
    %107 = vector.load %arg9[%c0_46, %c0_47, %c0_48] : memref<2x1x256xf32, #tpu.memory_space<vmem>>, vector<1x1x256xf32>
    %108 = vector.shape_cast %107 : vector<1x1x256xf32> to vector<1x256xf32>
    %109 = vector.broadcast %108 : vector<1x256xf32> to vector<8x256xf32>
    %110 = arith.addf %106, %109 : vector<8x256xf32>
    %111 = vector.extract_strided_slice %110 {offsets = [0, 0], sizes = [8, 128], strides = [1, 1]} : vector<8x256xf32> to vector<8x128xf32>
    %cst_49 = arith.constant 5.000000e-01 : f32
    %112 = vector.broadcast %cst_49 : f32 to vector<8x128xf32>
    %113 = arith.mulf %112, %111 : vector<8x128xf32>
    %114 = math.tanh %113 : vector<8x128xf32>
    %cst_50 = arith.constant 1.000000e+00 : f32
    %115 = vector.broadcast %cst_50 : f32 to vector<8x128xf32>
    %116 = arith.addf %114, %115 : vector<8x128xf32>
    %cst_51 = arith.constant 5.000000e-01 : f32
    %117 = vector.broadcast %cst_51 : f32 to vector<8x128xf32>
    %118 = arith.mulf %117, %116 : vector<8x128xf32>
    %119 = vector.extract_strided_slice %110 {offsets = [0, 128], sizes = [8, 128], strides = [1, 1]} : vector<8x256xf32> to vector<8x128xf32>
    %cst_52 = arith.constant 5.000000e-01 : f32
    %120 = vector.broadcast %cst_52 : f32 to vector<8x128xf32>
    %121 = arith.mulf %120, %119 : vector<8x128xf32>
    %122 = math.tanh %121 : vector<8x128xf32>
    %cst_53 = arith.constant 1.000000e+00 : f32
    %123 = vector.broadcast %cst_53 : f32 to vector<8x128xf32>
    %124 = arith.addf %122, %123 : vector<8x128xf32>
    %cst_54 = arith.constant 5.000000e-01 : f32
    %125 = vector.broadcast %cst_54 : f32 to vector<8x128xf32>
    %126 = arith.mulf %125, %124 : vector<8x128xf32>
    %127 = math.tanh %119 : vector<8x128xf32>
    %128 = arith.select %36, %126, %127 : vector<8x128xi1>, vector<8x128xf32>
    %129 = vector.extract_strided_slice %118 {offsets = [0, 64], sizes = [8, 64], strides = [1, 1]} : vector<8x128xf32> to vector<8x64xf32>
    %130 = arith.mulf %129, %37 : vector<8x64xf32>
    %131 = vector.extract_strided_slice %118 {offsets = [0, 0], sizes = [8, 64], strides = [1, 1]} : vector<8x128xf32> to vector<8x64xf32>
    %132 = vector.extract_strided_slice %128 {offsets = [0, 64], sizes = [8, 64], strides = [1, 1]} : vector<8x128xf32> to vector<8x64xf32>
    %133 = arith.mulf %131, %132 : vector<8x64xf32>
    %134 = arith.addf %130, %133 : vector<8x64xf32>
    %135 = vector.extract_strided_slice %128 {offsets = [0, 0], sizes = [8, 64], strides = [1, 1]} : vector<8x128xf32> to vector<8x64xf32>
    %136 = math.tanh %134 : vector<8x64xf32>
    %137 = arith.mulf %135, %136 : vector<8x64xf32>
    %c16 = arith.constant 16 : index
    %c0_55 = arith.constant 0 : index
    %138 = vector.load %arg13[%c16, %c0_55] : memref<64x256xf32, #tpu.memory_space<vmem>>, vector<8x256xf32>
    %139 = arith.truncf %101 : vector<8x64xf32> to vector<8x64xbf16>
    %c0_56 = arith.constant 0 : index
    %c0_57 = arith.constant 0 : index
    %140 = vector.load %arg6[%c0_56, %c0_57] : memref<64x256xbf16, #tpu.memory_space<vmem>>, vector<64x256xbf16>
    %cst_58 = arith.constant dense<0.000000e+00> : vector<8x256xf32>
    %141 = tpu.matmul %139, %140, %cst_58 {dimension_numbers = #tpu.dot_dimension_numbers<[1], [0], [0], [1], [0, 0, 1, 1], [], []>} : vector<8x64xbf16>, vector<64x256xbf16>, vector<8x256xf32> -> vector<8x256xf32>
    %142 = arith.addf %138, %141 : vector<8x256xf32>
    %143 = vector.extract_strided_slice %142 {offsets = [0, 0], sizes = [8, 128], strides = [1, 1]} : vector<8x256xf32> to vector<8x128xf32>
    %cst_59 = arith.constant 5.000000e-01 : f32
    %144 = vector.broadcast %cst_59 : f32 to vector<8x128xf32>
    %145 = arith.mulf %144, %143 : vector<8x128xf32>
    %146 = math.tanh %145 : vector<8x128xf32>
    %cst_60 = arith.constant 1.000000e+00 : f32
    %147 = vector.broadcast %cst_60 : f32 to vector<8x128xf32>
    %148 = arith.addf %146, %147 : vector<8x128xf32>
    %cst_61 = arith.constant 5.000000e-01 : f32
    %149 = vector.broadcast %cst_61 : f32 to vector<8x128xf32>
    %150 = arith.mulf %149, %148 : vector<8x128xf32>
    %151 = vector.extract_strided_slice %142 {offsets = [0, 128], sizes = [8, 128], strides = [1, 1]} : vector<8x256xf32> to vector<8x128xf32>
    %cst_62 = arith.constant 5.000000e-01 : f32
    %152 = vector.broadcast %cst_62 : f32 to vector<8x128xf32>
    %153 = arith.mulf %152, %151 : vector<8x128xf32>
    %154 = math.tanh %153 : vector<8x128xf32>
    %cst_63 = arith.constant 1.000000e+00 : f32
    %155 = vector.broadcast %cst_63 : f32 to vector<8x128xf32>
    %156 = arith.addf %154, %155 : vector<8x128xf32>
    %cst_64 = arith.constant 5.000000e-01 : f32
    %157 = vector.broadcast %cst_64 : f32 to vector<8x128xf32>
    %158 = arith.mulf %157, %156 : vector<8x128xf32>
    %159 = math.tanh %151 : vector<8x128xf32>
    %160 = arith.select %36, %158, %159 : vector<8x128xi1>, vector<8x128xf32>
    %161 = vector.extract_strided_slice %150 {offsets = [0, 64], sizes = [8, 64], strides = [1, 1]} : vector<8x128xf32> to vector<8x64xf32>
    %162 = arith.mulf %161, %98 : vector<8x64xf32>
    %163 = vector.extract_strided_slice %150 {offsets = [0, 0], sizes = [8, 64], strides = [1, 1]} : vector<8x128xf32> to vector<8x64xf32>
    %164 = vector.extract_strided_slice %160 {offsets = [0, 64], sizes = [8, 64], strides = [1, 1]} : vector<8x128xf32> to vector<8x64xf32>
    %165 = arith.mulf %163, %164 : vector<8x64xf32>
    %166 = arith.addf %162, %165 : vector<8x64xf32>
    %167 = vector.extract_strided_slice %160 {offsets = [0, 0], sizes = [8, 64], strides = [1, 1]} : vector<8x128xf32> to vector<8x64xf32>
    %168 = math.tanh %166 : vector<8x64xf32>
    %169 = arith.mulf %167, %168 : vector<8x64xf32>
    %170 = tpu.concatenate %101, %137 in 1 : vector<8x64xf32>, vector<8x64xf32> -> vector<8x128xf32>
    %171 = arith.truncf %170 : vector<8x128xf32> to vector<8x128xbf16>
    %c0_65 = arith.constant 0 : index
    %c0_66 = arith.constant 0 : index
    %c0_67 = arith.constant 0 : index
    %172 = vector.load %arg8[%c0_65, %c0_66, %c0_67] : memref<2x128x256xbf16, #tpu.memory_space<vmem>>, vector<1x128x256xbf16>
    %173 = vector.shape_cast %172 : vector<1x128x256xbf16> to vector<128x256xbf16>
    %cst_68 = arith.constant dense<0.000000e+00> : vector<8x256xf32>
    %174 = tpu.matmul %171, %173, %cst_68 {dimension_numbers = #tpu.dot_dimension_numbers<[1], [0], [0], [1], [0, 0, 1, 1], [], []>} : vector<8x128xbf16>, vector<128x256xbf16>, vector<8x256xf32> -> vector<8x256xf32>
    %c0_69 = arith.constant 0 : index
    %c0_70 = arith.constant 0 : index
    %c0_71 = arith.constant 0 : index
    %175 = vector.load %arg9[%c0_69, %c0_70, %c0_71] : memref<2x1x256xf32, #tpu.memory_space<vmem>>, vector<1x1x256xf32>
    %176 = vector.shape_cast %175 : vector<1x1x256xf32> to vector<1x256xf32>
    %177 = vector.broadcast %176 : vector<1x256xf32> to vector<8x256xf32>
    %178 = arith.addf %174, %177 : vector<8x256xf32>
    %179 = vector.extract_strided_slice %178 {offsets = [0, 0], sizes = [8, 128], strides = [1, 1]} : vector<8x256xf32> to vector<8x128xf32>
    %cst_72 = arith.constant 5.000000e-01 : f32
    %180 = vector.broadcast %cst_72 : f32 to vector<8x128xf32>
    %181 = arith.mulf %180, %179 : vector<8x128xf32>
    %182 = math.tanh %181 : vector<8x128xf32>
    %cst_73 = arith.constant 1.000000e+00 : f32
    %183 = vector.broadcast %cst_73 : f32 to vector<8x128xf32>
    %184 = arith.addf %182, %183 : vector<8x128xf32>
    %cst_74 = arith.constant 5.000000e-01 : f32
    %185 = vector.broadcast %cst_74 : f32 to vector<8x128xf32>
    %186 = arith.mulf %185, %184 : vector<8x128xf32>
    %187 = vector.extract_strided_slice %178 {offsets = [0, 128], sizes = [8, 128], strides = [1, 1]} : vector<8x256xf32> to vector<8x128xf32>
    %cst_75 = arith.constant 5.000000e-01 : f32
    %188 = vector.broadcast %cst_75 : f32 to vector<8x128xf32>
    %189 = arith.mulf %188, %187 : vector<8x128xf32>
    %190 = math.tanh %189 : vector<8x128xf32>
    %cst_76 = arith.constant 1.000000e+00 : f32
    %191 = vector.broadcast %cst_76 : f32 to vector<8x128xf32>
    %192 = arith.addf %190, %191 : vector<8x128xf32>
    %cst_77 = arith.constant 5.000000e-01 : f32
    %193 = vector.broadcast %cst_77 : f32 to vector<8x128xf32>
    %194 = arith.mulf %193, %192 : vector<8x128xf32>
    %195 = math.tanh %187 : vector<8x128xf32>
    %196 = arith.select %36, %194, %195 : vector<8x128xi1>, vector<8x128xf32>
    %197 = vector.extract_strided_slice %186 {offsets = [0, 64], sizes = [8, 64], strides = [1, 1]} : vector<8x128xf32> to vector<8x64xf32>
    %198 = arith.mulf %197, %134 : vector<8x64xf32>
    %199 = vector.extract_strided_slice %186 {offsets = [0, 0], sizes = [8, 64], strides = [1, 1]} : vector<8x128xf32> to vector<8x64xf32>
    %200 = vector.extract_strided_slice %196 {offsets = [0, 64], sizes = [8, 64], strides = [1, 1]} : vector<8x128xf32> to vector<8x64xf32>
    %201 = arith.mulf %199, %200 : vector<8x64xf32>
    %202 = arith.addf %198, %201 : vector<8x64xf32>
    %203 = vector.extract_strided_slice %196 {offsets = [0, 0], sizes = [8, 64], strides = [1, 1]} : vector<8x128xf32> to vector<8x64xf32>
    %204 = math.tanh %202 : vector<8x64xf32>
    %205 = arith.mulf %203, %204 : vector<8x64xf32>
    %206 = tpu.concatenate %137, %37 in 1 : vector<8x64xf32>, vector<8x64xf32> -> vector<8x128xf32>
    %207 = arith.truncf %206 : vector<8x128xf32> to vector<8x128xbf16>
    %c1 = arith.constant 1 : index
    %c0_78 = arith.constant 0 : index
    %c0_79 = arith.constant 0 : index
    %208 = vector.load %arg8[%c1, %c0_78, %c0_79] : memref<2x128x256xbf16, #tpu.memory_space<vmem>>, vector<1x128x256xbf16>
    %209 = vector.shape_cast %208 : vector<1x128x256xbf16> to vector<128x256xbf16>
    %cst_80 = arith.constant dense<0.000000e+00> : vector<8x256xf32>
    %210 = tpu.matmul %207, %209, %cst_80 {dimension_numbers = #tpu.dot_dimension_numbers<[1], [0], [0], [1], [0, 0, 1, 1], [], []>} : vector<8x128xbf16>, vector<128x256xbf16>, vector<8x256xf32> -> vector<8x256xf32>
    %c1_81 = arith.constant 1 : index
    %c0_82 = arith.constant 0 : index
    %c0_83 = arith.constant 0 : index
    %211 = vector.load %arg9[%c1_81, %c0_82, %c0_83] : memref<2x1x256xf32, #tpu.memory_space<vmem>>, vector<1x1x256xf32>
    %212 = vector.shape_cast %211 : vector<1x1x256xf32> to vector<1x256xf32>
    %213 = vector.broadcast %212 : vector<1x256xf32> to vector<8x256xf32>
    %214 = arith.addf %210, %213 : vector<8x256xf32>
    %215 = vector.extract_strided_slice %214 {offsets = [0, 0], sizes = [8, 128], strides = [1, 1]} : vector<8x256xf32> to vector<8x128xf32>
    %cst_84 = arith.constant 5.000000e-01 : f32
    %216 = vector.broadcast %cst_84 : f32 to vector<8x128xf32>
    %217 = arith.mulf %216, %215 : vector<8x128xf32>
    %218 = math.tanh %217 : vector<8x128xf32>
    %cst_85 = arith.constant 1.000000e+00 : f32
    %219 = vector.broadcast %cst_85 : f32 to vector<8x128xf32>
    %220 = arith.addf %218, %219 : vector<8x128xf32>
    %cst_86 = arith.constant 5.000000e-01 : f32
    %221 = vector.broadcast %cst_86 : f32 to vector<8x128xf32>
    %222 = arith.mulf %221, %220 : vector<8x128xf32>
    %223 = vector.extract_strided_slice %214 {offsets = [0, 128], sizes = [8, 128], strides = [1, 1]} : vector<8x256xf32> to vector<8x128xf32>
    %cst_87 = arith.constant 5.000000e-01 : f32
    %224 = vector.broadcast %cst_87 : f32 to vector<8x128xf32>
    %225 = arith.mulf %224, %223 : vector<8x128xf32>
    %226 = math.tanh %225 : vector<8x128xf32>
    %cst_88 = arith.constant 1.000000e+00 : f32
    %227 = vector.broadcast %cst_88 : f32 to vector<8x128xf32>
    %228 = arith.addf %226, %227 : vector<8x128xf32>
    %cst_89 = arith.constant 5.000000e-01 : f32
    %229 = vector.broadcast %cst_89 : f32 to vector<8x128xf32>
    %230 = arith.mulf %229, %228 : vector<8x128xf32>
    %231 = math.tanh %223 : vector<8x128xf32>
    %232 = arith.select %36, %230, %231 : vector<8x128xi1>, vector<8x128xf32>
    %233 = vector.extract_strided_slice %222 {offsets = [0, 64], sizes = [8, 64], strides = [1, 1]} : vector<8x128xf32> to vector<8x64xf32>
    %234 = arith.mulf %233, %37 : vector<8x64xf32>
    %235 = vector.extract_strided_slice %222 {offsets = [0, 0], sizes = [8, 64], strides = [1, 1]} : vector<8x128xf32> to vector<8x64xf32>
    %236 = vector.extract_strided_slice %232 {offsets = [0, 64], sizes = [8, 64], strides = [1, 1]} : vector<8x128xf32> to vector<8x64xf32>
    %237 = arith.mulf %235, %236 : vector<8x64xf32>
    %238 = arith.addf %234, %237 : vector<8x64xf32>
    %239 = vector.extract_strided_slice %232 {offsets = [0, 0], sizes = [8, 64], strides = [1, 1]} : vector<8x128xf32> to vector<8x64xf32>
    %240 = math.tanh %238 : vector<8x64xf32>
    %241 = arith.mulf %239, %240 : vector<8x64xf32>
    %c24 = arith.constant 24 : index
    %c0_90 = arith.constant 0 : index
    %242 = vector.load %arg13[%c24, %c0_90] : memref<64x256xf32, #tpu.memory_space<vmem>>, vector<8x256xf32>
    %243 = arith.truncf %169 : vector<8x64xf32> to vector<8x64xbf16>
    %c0_91 = arith.constant 0 : index
    %c0_92 = arith.constant 0 : index
    %244 = vector.load %arg6[%c0_91, %c0_92] : memref<64x256xbf16, #tpu.memory_space<vmem>>, vector<64x256xbf16>
    %cst_93 = arith.constant dense<0.000000e+00> : vector<8x256xf32>
    %245 = tpu.matmul %243, %244, %cst_93 {dimension_numbers = #tpu.dot_dimension_numbers<[1], [0], [0], [1], [0, 0, 1, 1], [], []>} : vector<8x64xbf16>, vector<64x256xbf16>, vector<8x256xf32> -> vector<8x256xf32>
    %246 = arith.addf %242, %245 : vector<8x256xf32>
    %247 = vector.extract_strided_slice %246 {offsets = [0, 0], sizes = [8, 128], strides = [1, 1]} : vector<8x256xf32> to vector<8x128xf32>
    %cst_94 = arith.constant 5.000000e-01 : f32
    %248 = vector.broadcast %cst_94 : f32 to vector<8x128xf32>
    %249 = arith.mulf %248, %247 : vector<8x128xf32>
    %250 = math.tanh %249 : vector<8x128xf32>
    %cst_95 = arith.constant 1.000000e+00 : f32
    %251 = vector.broadcast %cst_95 : f32 to vector<8x128xf32>
    %252 = arith.addf %250, %251 : vector<8x128xf32>
    %cst_96 = arith.constant 5.000000e-01 : f32
    %253 = vector.broadcast %cst_96 : f32 to vector<8x128xf32>
    %254 = arith.mulf %253, %252 : vector<8x128xf32>
    %255 = vector.extract_strided_slice %246 {offsets = [0, 128], sizes = [8, 128], strides = [1, 1]} : vector<8x256xf32> to vector<8x128xf32>
    %cst_97 = arith.constant 5.000000e-01 : f32
    %256 = vector.broadcast %cst_97 : f32 to vector<8x128xf32>
    %257 = arith.mulf %256, %255 : vector<8x128xf32>
    %258 = math.tanh %257 : vector<8x128xf32>
    %cst_98 = arith.constant 1.000000e+00 : f32
    %259 = vector.broadcast %cst_98 : f32 to vector<8x128xf32>
    %260 = arith.addf %258, %259 : vector<8x128xf32>
    %cst_99 = arith.constant 5.000000e-01 : f32
    %261 = vector.broadcast %cst_99 : f32 to vector<8x128xf32>
    %262 = arith.mulf %261, %260 : vector<8x128xf32>
    %263 = math.tanh %255 : vector<8x128xf32>
    %264 = arith.select %36, %262, %263 : vector<8x128xi1>, vector<8x128xf32>
    %265 = vector.extract_strided_slice %254 {offsets = [0, 64], sizes = [8, 64], strides = [1, 1]} : vector<8x128xf32> to vector<8x64xf32>
    %266 = arith.mulf %265, %166 : vector<8x64xf32>
    %267 = vector.extract_strided_slice %254 {offsets = [0, 0], sizes = [8, 64], strides = [1, 1]} : vector<8x128xf32> to vector<8x64xf32>
    %268 = vector.extract_strided_slice %264 {offsets = [0, 64], sizes = [8, 64], strides = [1, 1]} : vector<8x128xf32> to vector<8x64xf32>
    %269 = arith.mulf %267, %268 : vector<8x64xf32>
    %270 = arith.addf %266, %269 : vector<8x64xf32>
    %271 = vector.extract_strided_slice %264 {offsets = [0, 0], sizes = [8, 64], strides = [1, 1]} : vector<8x128xf32> to vector<8x64xf32>
    %272 = math.tanh %270 : vector<8x64xf32>
    %273 = arith.mulf %271, %272 : vector<8x64xf32>
    %274 = tpu.concatenate %169, %205 in 1 : vector<8x64xf32>, vector<8x64xf32> -> vector<8x128xf32>
    %275 = arith.truncf %274 : vector<8x128xf32> to vector<8x128xbf16>
    %c0_100 = arith.constant 0 : index
    %c0_101 = arith.constant 0 : index
    %c0_102 = arith.constant 0 : index
    %276 = vector.load %arg8[%c0_100, %c0_101, %c0_102] : memref<2x128x256xbf16, #tpu.memory_space<vmem>>, vector<1x128x256xbf16>
    %277 = vector.shape_cast %276 : vector<1x128x256xbf16> to vector<128x256xbf16>
    %cst_103 = arith.constant dense<0.000000e+00> : vector<8x256xf32>
    %278 = tpu.matmul %275, %277, %cst_103 {dimension_numbers = #tpu.dot_dimension_numbers<[1], [0], [0], [1], [0, 0, 1, 1], [], []>} : vector<8x128xbf16>, vector<128x256xbf16>, vector<8x256xf32> -> vector<8x256xf32>
    %c0_104 = arith.constant 0 : index
    %c0_105 = arith.constant 0 : index
    %c0_106 = arith.constant 0 : index
    %279 = vector.load %arg9[%c0_104, %c0_105, %c0_106] : memref<2x1x256xf32, #tpu.memory_space<vmem>>, vector<1x1x256xf32>
    %280 = vector.shape_cast %279 : vector<1x1x256xf32> to vector<1x256xf32>
    %281 = vector.broadcast %280 : vector<1x256xf32> to vector<8x256xf32>
    %282 = arith.addf %278, %281 : vector<8x256xf32>
    %283 = vector.extract_strided_slice %282 {offsets = [0, 0], sizes = [8, 128], strides = [1, 1]} : vector<8x256xf32> to vector<8x128xf32>
    %cst_107 = arith.constant 5.000000e-01 : f32
    %284 = vector.broadcast %cst_107 : f32 to vector<8x128xf32>
    %285 = arith.mulf %284, %283 : vector<8x128xf32>
    %286 = math.tanh %285 : vector<8x128xf32>
    %cst_108 = arith.constant 1.000000e+00 : f32
    %287 = vector.broadcast %cst_108 : f32 to vector<8x128xf32>
    %288 = arith.addf %286, %287 : vector<8x128xf32>
    %cst_109 = arith.constant 5.000000e-01 : f32
    %289 = vector.broadcast %cst_109 : f32 to vector<8x128xf32>
    %290 = arith.mulf %289, %288 : vector<8x128xf32>
    %291 = vector.extract_strided_slice %282 {offsets = [0, 128], sizes = [8, 128], strides = [1, 1]} : vector<8x256xf32> to vector<8x128xf32>
    %cst_110 = arith.constant 5.000000e-01 : f32
    %292 = vector.broadcast %cst_110 : f32 to vector<8x128xf32>
    %293 = arith.mulf %292, %291 : vector<8x128xf32>
    %294 = math.tanh %293 : vector<8x128xf32>
    %cst_111 = arith.constant 1.000000e+00 : f32
    %295 = vector.broadcast %cst_111 : f32 to vector<8x128xf32>
    %296 = arith.addf %294, %295 : vector<8x128xf32>
    %cst_112 = arith.constant 5.000000e-01 : f32
    %297 = vector.broadcast %cst_112 : f32 to vector<8x128xf32>
    %298 = arith.mulf %297, %296 : vector<8x128xf32>
    %299 = math.tanh %291 : vector<8x128xf32>
    %300 = arith.select %36, %298, %299 : vector<8x128xi1>, vector<8x128xf32>
    %301 = vector.extract_strided_slice %290 {offsets = [0, 64], sizes = [8, 64], strides = [1, 1]} : vector<8x128xf32> to vector<8x64xf32>
    %302 = arith.mulf %301, %202 : vector<8x64xf32>
    %303 = vector.extract_strided_slice %290 {offsets = [0, 0], sizes = [8, 64], strides = [1, 1]} : vector<8x128xf32> to vector<8x64xf32>
    %304 = vector.extract_strided_slice %300 {offsets = [0, 64], sizes = [8, 64], strides = [1, 1]} : vector<8x128xf32> to vector<8x64xf32>
    %305 = arith.mulf %303, %304 : vector<8x64xf32>
    %306 = arith.addf %302, %305 : vector<8x64xf32>
    %307 = vector.extract_strided_slice %300 {offsets = [0, 0], sizes = [8, 64], strides = [1, 1]} : vector<8x128xf32> to vector<8x64xf32>
    %308 = math.tanh %306 : vector<8x64xf32>
    %309 = arith.mulf %307, %308 : vector<8x64xf32>
    %310 = tpu.concatenate %205, %241 in 1 : vector<8x64xf32>, vector<8x64xf32> -> vector<8x128xf32>
    %311 = arith.truncf %310 : vector<8x128xf32> to vector<8x128xbf16>
    %c1_113 = arith.constant 1 : index
    %c0_114 = arith.constant 0 : index
    %c0_115 = arith.constant 0 : index
    %312 = vector.load %arg8[%c1_113, %c0_114, %c0_115] : memref<2x128x256xbf16, #tpu.memory_space<vmem>>, vector<1x128x256xbf16>
    %313 = vector.shape_cast %312 : vector<1x128x256xbf16> to vector<128x256xbf16>
    %cst_116 = arith.constant dense<0.000000e+00> : vector<8x256xf32>
    %314 = tpu.matmul %311, %313, %cst_116 {dimension_numbers = #tpu.dot_dimension_numbers<[1], [0], [0], [1], [0, 0, 1, 1], [], []>} : vector<8x128xbf16>, vector<128x256xbf16>, vector<8x256xf32> -> vector<8x256xf32>
    %c1_117 = arith.constant 1 : index
    %c0_118 = arith.constant 0 : index
    %c0_119 = arith.constant 0 : index
    %315 = vector.load %arg9[%c1_117, %c0_118, %c0_119] : memref<2x1x256xf32, #tpu.memory_space<vmem>>, vector<1x1x256xf32>
    %316 = vector.shape_cast %315 : vector<1x1x256xf32> to vector<1x256xf32>
    %317 = vector.broadcast %316 : vector<1x256xf32> to vector<8x256xf32>
    %318 = arith.addf %314, %317 : vector<8x256xf32>
    %319 = vector.extract_strided_slice %318 {offsets = [0, 0], sizes = [8, 128], strides = [1, 1]} : vector<8x256xf32> to vector<8x128xf32>
    %cst_120 = arith.constant 5.000000e-01 : f32
    %320 = vector.broadcast %cst_120 : f32 to vector<8x128xf32>
    %321 = arith.mulf %320, %319 : vector<8x128xf32>
    %322 = math.tanh %321 : vector<8x128xf32>
    %cst_121 = arith.constant 1.000000e+00 : f32
    %323 = vector.broadcast %cst_121 : f32 to vector<8x128xf32>
    %324 = arith.addf %322, %323 : vector<8x128xf32>
    %cst_122 = arith.constant 5.000000e-01 : f32
    %325 = vector.broadcast %cst_122 : f32 to vector<8x128xf32>
    %326 = arith.mulf %325, %324 : vector<8x128xf32>
    %327 = vector.extract_strided_slice %318 {offsets = [0, 128], sizes = [8, 128], strides = [1, 1]} : vector<8x256xf32> to vector<8x128xf32>
    %cst_123 = arith.constant 5.000000e-01 : f32
    %328 = vector.broadcast %cst_123 : f32 to vector<8x128xf32>
    %329 = arith.mulf %328, %327 : vector<8x128xf32>
    %330 = math.tanh %329 : vector<8x128xf32>
    %cst_124 = arith.constant 1.000000e+00 : f32
    %331 = vector.broadcast %cst_124 : f32 to vector<8x128xf32>
    %332 = arith.addf %330, %331 : vector<8x128xf32>
    %cst_125 = arith.constant 5.000000e-01 : f32
    %333 = vector.broadcast %cst_125 : f32 to vector<8x128xf32>
    %334 = arith.mulf %333, %332 : vector<8x128xf32>
    %335 = math.tanh %327 : vector<8x128xf32>
    %336 = arith.select %36, %334, %335 : vector<8x128xi1>, vector<8x128xf32>
    %337 = vector.extract_strided_slice %326 {offsets = [0, 64], sizes = [8, 64], strides = [1, 1]} : vector<8x128xf32> to vector<8x64xf32>
    %338 = arith.mulf %337, %238 : vector<8x64xf32>
    %339 = vector.extract_strided_slice %326 {offsets = [0, 0], sizes = [8, 64], strides = [1, 1]} : vector<8x128xf32> to vector<8x64xf32>
    %340 = vector.extract_strided_slice %336 {offsets = [0, 64], sizes = [8, 64], strides = [1, 1]} : vector<8x128xf32> to vector<8x64xf32>
    %341 = arith.mulf %339, %340 : vector<8x64xf32>
    %342 = arith.addf %338, %341 : vector<8x64xf32>
    %343 = vector.extract_strided_slice %336 {offsets = [0, 0], sizes = [8, 64], strides = [1, 1]} : vector<8x128xf32> to vector<8x64xf32>
    %344 = math.tanh %342 : vector<8x64xf32>
    %345 = arith.mulf %343, %344 : vector<8x64xf32>
    %c32 = arith.constant 32 : index
    %c0_126 = arith.constant 0 : index
    %346 = vector.load %arg13[%c32, %c0_126] : memref<64x256xf32, #tpu.memory_space<vmem>>, vector<8x256xf32>
    %347 = arith.truncf %273 : vector<8x64xf32> to vector<8x64xbf16>
    %c0_127 = arith.constant 0 : index
    %c0_128 = arith.constant 0 : index
    %348 = vector.load %arg6[%c0_127, %c0_128] : memref<64x256xbf16, #tpu.memory_space<vmem>>, vector<64x256xbf16>
    %cst_129 = arith.constant dense<0.000000e+00> : vector<8x256xf32>
    %349 = tpu.matmul %347, %348, %cst_129 {dimension_numbers = #tpu.dot_dimension_numbers<[1], [0], [0], [1], [0, 0, 1, 1], [], []>} : vector<8x64xbf16>, vector<64x256xbf16>, vector<8x256xf32> -> vector<8x256xf32>
    %350 = arith.addf %346, %349 : vector<8x256xf32>
    %351 = vector.extract_strided_slice %350 {offsets = [0, 0], sizes = [8, 128], strides = [1, 1]} : vector<8x256xf32> to vector<8x128xf32>
    %cst_130 = arith.constant 5.000000e-01 : f32
    %352 = vector.broadcast %cst_130 : f32 to vector<8x128xf32>
    %353 = arith.mulf %352, %351 : vector<8x128xf32>
    %354 = math.tanh %353 : vector<8x128xf32>
    %cst_131 = arith.constant 1.000000e+00 : f32
    %355 = vector.broadcast %cst_131 : f32 to vector<8x128xf32>
    %356 = arith.addf %354, %355 : vector<8x128xf32>
    %cst_132 = arith.constant 5.000000e-01 : f32
    %357 = vector.broadcast %cst_132 : f32 to vector<8x128xf32>
    %358 = arith.mulf %357, %356 : vector<8x128xf32>
    %359 = vector.extract_strided_slice %350 {offsets = [0, 128], sizes = [8, 128], strides = [1, 1]} : vector<8x256xf32> to vector<8x128xf32>
    %cst_133 = arith.constant 5.000000e-01 : f32
    %360 = vector.broadcast %cst_133 : f32 to vector<8x128xf32>
    %361 = arith.mulf %360, %359 : vector<8x128xf32>
    %362 = math.tanh %361 : vector<8x128xf32>
    %cst_134 = arith.constant 1.000000e+00 : f32
    %363 = vector.broadcast %cst_134 : f32 to vector<8x128xf32>
    %364 = arith.addf %362, %363 : vector<8x128xf32>
    %cst_135 = arith.constant 5.000000e-01 : f32
    %365 = vector.broadcast %cst_135 : f32 to vector<8x128xf32>
    %366 = arith.mulf %365, %364 : vector<8x128xf32>
    %367 = math.tanh %359 : vector<8x128xf32>
    %368 = arith.select %36, %366, %367 : vector<8x128xi1>, vector<8x128xf32>
    %369 = vector.extract_strided_slice %358 {offsets = [0, 64], sizes = [8, 64], strides = [1, 1]} : vector<8x128xf32> to vector<8x64xf32>
    %370 = arith.mulf %369, %270 : vector<8x64xf32>
    %371 = vector.extract_strided_slice %358 {offsets = [0, 0], sizes = [8, 64], strides = [1, 1]} : vector<8x128xf32> to vector<8x64xf32>
    %372 = vector.extract_strided_slice %368 {offsets = [0, 64], sizes = [8, 64], strides = [1, 1]} : vector<8x128xf32> to vector<8x64xf32>
    %373 = arith.mulf %371, %372 : vector<8x64xf32>
    %374 = arith.addf %370, %373 : vector<8x64xf32>
    %375 = vector.extract_strided_slice %368 {offsets = [0, 0], sizes = [8, 64], strides = [1, 1]} : vector<8x128xf32> to vector<8x64xf32>
    %376 = math.tanh %374 : vector<8x64xf32>
    %377 = arith.mulf %375, %376 : vector<8x64xf32>
    %378 = tpu.concatenate %273, %309 in 1 : vector<8x64xf32>, vector<8x64xf32> -> vector<8x128xf32>
    %379 = arith.truncf %378 : vector<8x128xf32> to vector<8x128xbf16>
    %c0_136 = arith.constant 0 : index
    %c0_137 = arith.constant 0 : index
    %c0_138 = arith.constant 0 : index
    %380 = vector.load %arg8[%c0_136, %c0_137, %c0_138] : memref<2x128x256xbf16, #tpu.memory_space<vmem>>, vector<1x128x256xbf16>
    %381 = vector.shape_cast %380 : vector<1x128x256xbf16> to vector<128x256xbf16>
    %cst_139 = arith.constant dense<0.000000e+00> : vector<8x256xf32>
    %382 = tpu.matmul %379, %381, %cst_139 {dimension_numbers = #tpu.dot_dimension_numbers<[1], [0], [0], [1], [0, 0, 1, 1], [], []>} : vector<8x128xbf16>, vector<128x256xbf16>, vector<8x256xf32> -> vector<8x256xf32>
    %c0_140 = arith.constant 0 : index
    %c0_141 = arith.constant 0 : index
    %c0_142 = arith.constant 0 : index
    %383 = vector.load %arg9[%c0_140, %c0_141, %c0_142] : memref<2x1x256xf32, #tpu.memory_space<vmem>>, vector<1x1x256xf32>
    %384 = vector.shape_cast %383 : vector<1x1x256xf32> to vector<1x256xf32>
    %385 = vector.broadcast %384 : vector<1x256xf32> to vector<8x256xf32>
    %386 = arith.addf %382, %385 : vector<8x256xf32>
    %387 = vector.extract_strided_slice %386 {offsets = [0, 0], sizes = [8, 128], strides = [1, 1]} : vector<8x256xf32> to vector<8x128xf32>
    %cst_143 = arith.constant 5.000000e-01 : f32
    %388 = vector.broadcast %cst_143 : f32 to vector<8x128xf32>
    %389 = arith.mulf %388, %387 : vector<8x128xf32>
    %390 = math.tanh %389 : vector<8x128xf32>
    %cst_144 = arith.constant 1.000000e+00 : f32
    %391 = vector.broadcast %cst_144 : f32 to vector<8x128xf32>
    %392 = arith.addf %390, %391 : vector<8x128xf32>
    %cst_145 = arith.constant 5.000000e-01 : f32
    %393 = vector.broadcast %cst_145 : f32 to vector<8x128xf32>
    %394 = arith.mulf %393, %392 : vector<8x128xf32>
    %395 = vector.extract_strided_slice %386 {offsets = [0, 128], sizes = [8, 128], strides = [1, 1]} : vector<8x256xf32> to vector<8x128xf32>
    %cst_146 = arith.constant 5.000000e-01 : f32
    %396 = vector.broadcast %cst_146 : f32 to vector<8x128xf32>
    %397 = arith.mulf %396, %395 : vector<8x128xf32>
    %398 = math.tanh %397 : vector<8x128xf32>
    %cst_147 = arith.constant 1.000000e+00 : f32
    %399 = vector.broadcast %cst_147 : f32 to vector<8x128xf32>
    %400 = arith.addf %398, %399 : vector<8x128xf32>
    %cst_148 = arith.constant 5.000000e-01 : f32
    %401 = vector.broadcast %cst_148 : f32 to vector<8x128xf32>
    %402 = arith.mulf %401, %400 : vector<8x128xf32>
    %403 = math.tanh %395 : vector<8x128xf32>
    %404 = arith.select %36, %402, %403 : vector<8x128xi1>, vector<8x128xf32>
    %405 = vector.extract_strided_slice %394 {offsets = [0, 64], sizes = [8, 64], strides = [1, 1]} : vector<8x128xf32> to vector<8x64xf32>
    %406 = arith.mulf %405, %306 : vector<8x64xf32>
    %407 = vector.extract_strided_slice %394 {offsets = [0, 0], sizes = [8, 64], strides = [1, 1]} : vector<8x128xf32> to vector<8x64xf32>
    %408 = vector.extract_strided_slice %404 {offsets = [0, 64], sizes = [8, 64], strides = [1, 1]} : vector<8x128xf32> to vector<8x64xf32>
    %409 = arith.mulf %407, %408 : vector<8x64xf32>
    %410 = arith.addf %406, %409 : vector<8x64xf32>
    %411 = vector.extract_strided_slice %404 {offsets = [0, 0], sizes = [8, 64], strides = [1, 1]} : vector<8x128xf32> to vector<8x64xf32>
    %412 = math.tanh %410 : vector<8x64xf32>
    %413 = arith.mulf %411, %412 : vector<8x64xf32>
    %414 = tpu.concatenate %309, %345 in 1 : vector<8x64xf32>, vector<8x64xf32> -> vector<8x128xf32>
    %415 = arith.truncf %414 : vector<8x128xf32> to vector<8x128xbf16>
    %c1_149 = arith.constant 1 : index
    %c0_150 = arith.constant 0 : index
    %c0_151 = arith.constant 0 : index
    %416 = vector.load %arg8[%c1_149, %c0_150, %c0_151] : memref<2x128x256xbf16, #tpu.memory_space<vmem>>, vector<1x128x256xbf16>
    %417 = vector.shape_cast %416 : vector<1x128x256xbf16> to vector<128x256xbf16>
    %cst_152 = arith.constant dense<0.000000e+00> : vector<8x256xf32>
    %418 = tpu.matmul %415, %417, %cst_152 {dimension_numbers = #tpu.dot_dimension_numbers<[1], [0], [0], [1], [0, 0, 1, 1], [], []>} : vector<8x128xbf16>, vector<128x256xbf16>, vector<8x256xf32> -> vector<8x256xf32>
    %c1_153 = arith.constant 1 : index
    %c0_154 = arith.constant 0 : index
    %c0_155 = arith.constant 0 : index
    %419 = vector.load %arg9[%c1_153, %c0_154, %c0_155] : memref<2x1x256xf32, #tpu.memory_space<vmem>>, vector<1x1x256xf32>
    %420 = vector.shape_cast %419 : vector<1x1x256xf32> to vector<1x256xf32>
    %421 = vector.broadcast %420 : vector<1x256xf32> to vector<8x256xf32>
    %422 = arith.addf %418, %421 : vector<8x256xf32>
    %423 = vector.extract_strided_slice %422 {offsets = [0, 0], sizes = [8, 128], strides = [1, 1]} : vector<8x256xf32> to vector<8x128xf32>
    %cst_156 = arith.constant 5.000000e-01 : f32
    %424 = vector.broadcast %cst_156 : f32 to vector<8x128xf32>
    %425 = arith.mulf %424, %423 : vector<8x128xf32>
    %426 = math.tanh %425 : vector<8x128xf32>
    %cst_157 = arith.constant 1.000000e+00 : f32
    %427 = vector.broadcast %cst_157 : f32 to vector<8x128xf32>
    %428 = arith.addf %426, %427 : vector<8x128xf32>
    %cst_158 = arith.constant 5.000000e-01 : f32
    %429 = vector.broadcast %cst_158 : f32 to vector<8x128xf32>
    %430 = arith.mulf %429, %428 : vector<8x128xf32>
    %431 = vector.extract_strided_slice %422 {offsets = [0, 128], sizes = [8, 128], strides = [1, 1]} : vector<8x256xf32> to vector<8x128xf32>
    %cst_159 = arith.constant 5.000000e-01 : f32
    %432 = vector.broadcast %cst_159 : f32 to vector<8x128xf32>
    %433 = arith.mulf %432, %431 : vector<8x128xf32>
    %434 = math.tanh %433 : vector<8x128xf32>
    %cst_160 = arith.constant 1.000000e+00 : f32
    %435 = vector.broadcast %cst_160 : f32 to vector<8x128xf32>
    %436 = arith.addf %434, %435 : vector<8x128xf32>
    %cst_161 = arith.constant 5.000000e-01 : f32
    %437 = vector.broadcast %cst_161 : f32 to vector<8x128xf32>
    %438 = arith.mulf %437, %436 : vector<8x128xf32>
    %439 = math.tanh %431 : vector<8x128xf32>
    %440 = arith.select %36, %438, %439 : vector<8x128xi1>, vector<8x128xf32>
    %441 = vector.extract_strided_slice %430 {offsets = [0, 64], sizes = [8, 64], strides = [1, 1]} : vector<8x128xf32> to vector<8x64xf32>
    %442 = arith.mulf %441, %342 : vector<8x64xf32>
    %443 = vector.extract_strided_slice %430 {offsets = [0, 0], sizes = [8, 64], strides = [1, 1]} : vector<8x128xf32> to vector<8x64xf32>
    %444 = vector.extract_strided_slice %440 {offsets = [0, 64], sizes = [8, 64], strides = [1, 1]} : vector<8x128xf32> to vector<8x64xf32>
    %445 = arith.mulf %443, %444 : vector<8x64xf32>
    %446 = arith.addf %442, %445 : vector<8x64xf32>
    %447 = vector.extract_strided_slice %440 {offsets = [0, 0], sizes = [8, 64], strides = [1, 1]} : vector<8x128xf32> to vector<8x64xf32>
    %448 = math.tanh %446 : vector<8x64xf32>
    %449 = arith.mulf %447, %448 : vector<8x64xf32>
    %c40 = arith.constant 40 : index
    %c0_162 = arith.constant 0 : index
    %450 = vector.load %arg13[%c40, %c0_162] : memref<64x256xf32, #tpu.memory_space<vmem>>, vector<8x256xf32>
    %451 = arith.truncf %377 : vector<8x64xf32> to vector<8x64xbf16>
    %c0_163 = arith.constant 0 : index
    %c0_164 = arith.constant 0 : index
    %452 = vector.load %arg6[%c0_163, %c0_164] : memref<64x256xbf16, #tpu.memory_space<vmem>>, vector<64x256xbf16>
    %cst_165 = arith.constant dense<0.000000e+00> : vector<8x256xf32>
    %453 = tpu.matmul %451, %452, %cst_165 {dimension_numbers = #tpu.dot_dimension_numbers<[1], [0], [0], [1], [0, 0, 1, 1], [], []>} : vector<8x64xbf16>, vector<64x256xbf16>, vector<8x256xf32> -> vector<8x256xf32>
    %454 = arith.addf %450, %453 : vector<8x256xf32>
    %455 = vector.extract_strided_slice %454 {offsets = [0, 0], sizes = [8, 128], strides = [1, 1]} : vector<8x256xf32> to vector<8x128xf32>
    %cst_166 = arith.constant 5.000000e-01 : f32
    %456 = vector.broadcast %cst_166 : f32 to vector<8x128xf32>
    %457 = arith.mulf %456, %455 : vector<8x128xf32>
    %458 = math.tanh %457 : vector<8x128xf32>
    %cst_167 = arith.constant 1.000000e+00 : f32
    %459 = vector.broadcast %cst_167 : f32 to vector<8x128xf32>
    %460 = arith.addf %458, %459 : vector<8x128xf32>
    %cst_168 = arith.constant 5.000000e-01 : f32
    %461 = vector.broadcast %cst_168 : f32 to vector<8x128xf32>
    %462 = arith.mulf %461, %460 : vector<8x128xf32>
    %463 = vector.extract_strided_slice %454 {offsets = [0, 128], sizes = [8, 128], strides = [1, 1]} : vector<8x256xf32> to vector<8x128xf32>
    %cst_169 = arith.constant 5.000000e-01 : f32
    %464 = vector.broadcast %cst_169 : f32 to vector<8x128xf32>
    %465 = arith.mulf %464, %463 : vector<8x128xf32>
    %466 = math.tanh %465 : vector<8x128xf32>
    %cst_170 = arith.constant 1.000000e+00 : f32
    %467 = vector.broadcast %cst_170 : f32 to vector<8x128xf32>
    %468 = arith.addf %466, %467 : vector<8x128xf32>
    %cst_171 = arith.constant 5.000000e-01 : f32
    %469 = vector.broadcast %cst_171 : f32 to vector<8x128xf32>
    %470 = arith.mulf %469, %468 : vector<8x128xf32>
    %471 = math.tanh %463 : vector<8x128xf32>
    %472 = arith.select %36, %470, %471 : vector<8x128xi1>, vector<8x128xf32>
    %473 = vector.extract_strided_slice %462 {offsets = [0, 64], sizes = [8, 64], strides = [1, 1]} : vector<8x128xf32> to vector<8x64xf32>
    %474 = arith.mulf %473, %374 : vector<8x64xf32>
    %475 = vector.extract_strided_slice %462 {offsets = [0, 0], sizes = [8, 64], strides = [1, 1]} : vector<8x128xf32> to vector<8x64xf32>
    %476 = vector.extract_strided_slice %472 {offsets = [0, 64], sizes = [8, 64], strides = [1, 1]} : vector<8x128xf32> to vector<8x64xf32>
    %477 = arith.mulf %475, %476 : vector<8x64xf32>
    %478 = arith.addf %474, %477 : vector<8x64xf32>
    %479 = vector.extract_strided_slice %472 {offsets = [0, 0], sizes = [8, 64], strides = [1, 1]} : vector<8x128xf32> to vector<8x64xf32>
    %480 = math.tanh %478 : vector<8x64xf32>
    %481 = arith.mulf %479, %480 : vector<8x64xf32>
    %482 = tpu.concatenate %377, %413 in 1 : vector<8x64xf32>, vector<8x64xf32> -> vector<8x128xf32>
    %483 = arith.truncf %482 : vector<8x128xf32> to vector<8x128xbf16>
    %c0_172 = arith.constant 0 : index
    %c0_173 = arith.constant 0 : index
    %c0_174 = arith.constant 0 : index
    %484 = vector.load %arg8[%c0_172, %c0_173, %c0_174] : memref<2x128x256xbf16, #tpu.memory_space<vmem>>, vector<1x128x256xbf16>
    %485 = vector.shape_cast %484 : vector<1x128x256xbf16> to vector<128x256xbf16>
    %cst_175 = arith.constant dense<0.000000e+00> : vector<8x256xf32>
    %486 = tpu.matmul %483, %485, %cst_175 {dimension_numbers = #tpu.dot_dimension_numbers<[1], [0], [0], [1], [0, 0, 1, 1], [], []>} : vector<8x128xbf16>, vector<128x256xbf16>, vector<8x256xf32> -> vector<8x256xf32>
    %c0_176 = arith.constant 0 : index
    %c0_177 = arith.constant 0 : index
    %c0_178 = arith.constant 0 : index
    %487 = vector.load %arg9[%c0_176, %c0_177, %c0_178] : memref<2x1x256xf32, #tpu.memory_space<vmem>>, vector<1x1x256xf32>
    %488 = vector.shape_cast %487 : vector<1x1x256xf32> to vector<1x256xf32>
    %489 = vector.broadcast %488 : vector<1x256xf32> to vector<8x256xf32>
    %490 = arith.addf %486, %489 : vector<8x256xf32>
    %491 = vector.extract_strided_slice %490 {offsets = [0, 0], sizes = [8, 128], strides = [1, 1]} : vector<8x256xf32> to vector<8x128xf32>
    %cst_179 = arith.constant 5.000000e-01 : f32
    %492 = vector.broadcast %cst_179 : f32 to vector<8x128xf32>
    %493 = arith.mulf %492, %491 : vector<8x128xf32>
    %494 = math.tanh %493 : vector<8x128xf32>
    %cst_180 = arith.constant 1.000000e+00 : f32
    %495 = vector.broadcast %cst_180 : f32 to vector<8x128xf32>
    %496 = arith.addf %494, %495 : vector<8x128xf32>
    %cst_181 = arith.constant 5.000000e-01 : f32
    %497 = vector.broadcast %cst_181 : f32 to vector<8x128xf32>
    %498 = arith.mulf %497, %496 : vector<8x128xf32>
    %499 = vector.extract_strided_slice %490 {offsets = [0, 128], sizes = [8, 128], strides = [1, 1]} : vector<8x256xf32> to vector<8x128xf32>
    %cst_182 = arith.constant 5.000000e-01 : f32
    %500 = vector.broadcast %cst_182 : f32 to vector<8x128xf32>
    %501 = arith.mulf %500, %499 : vector<8x128xf32>
    %502 = math.tanh %501 : vector<8x128xf32>
    %cst_183 = arith.constant 1.000000e+00 : f32
    %503 = vector.broadcast %cst_183 : f32 to vector<8x128xf32>
    %504 = arith.addf %502, %503 : vector<8x128xf32>
    %cst_184 = arith.constant 5.000000e-01 : f32
    %505 = vector.broadcast %cst_184 : f32 to vector<8x128xf32>
    %506 = arith.mulf %505, %504 : vector<8x128xf32>
    %507 = math.tanh %499 : vector<8x128xf32>
    %508 = arith.select %36, %506, %507 : vector<8x128xi1>, vector<8x128xf32>
    %509 = vector.extract_strided_slice %498 {offsets = [0, 64], sizes = [8, 64], strides = [1, 1]} : vector<8x128xf32> to vector<8x64xf32>
    %510 = arith.mulf %509, %410 : vector<8x64xf32>
    %511 = vector.extract_strided_slice %498 {offsets = [0, 0], sizes = [8, 64], strides = [1, 1]} : vector<8x128xf32> to vector<8x64xf32>
    %512 = vector.extract_strided_slice %508 {offsets = [0, 64], sizes = [8, 64], strides = [1, 1]} : vector<8x128xf32> to vector<8x64xf32>
    %513 = arith.mulf %511, %512 : vector<8x64xf32>
    %514 = arith.addf %510, %513 : vector<8x64xf32>
    %515 = vector.extract_strided_slice %508 {offsets = [0, 0], sizes = [8, 64], strides = [1, 1]} : vector<8x128xf32> to vector<8x64xf32>
    %516 = math.tanh %514 : vector<8x64xf32>
    %517 = arith.mulf %515, %516 : vector<8x64xf32>
    %518 = tpu.concatenate %413, %449 in 1 : vector<8x64xf32>, vector<8x64xf32> -> vector<8x128xf32>
    %519 = arith.truncf %518 : vector<8x128xf32> to vector<8x128xbf16>
    %c1_185 = arith.constant 1 : index
    %c0_186 = arith.constant 0 : index
    %c0_187 = arith.constant 0 : index
    %520 = vector.load %arg8[%c1_185, %c0_186, %c0_187] : memref<2x128x256xbf16, #tpu.memory_space<vmem>>, vector<1x128x256xbf16>
    %521 = vector.shape_cast %520 : vector<1x128x256xbf16> to vector<128x256xbf16>
    %cst_188 = arith.constant dense<0.000000e+00> : vector<8x256xf32>
    %522 = tpu.matmul %519, %521, %cst_188 {dimension_numbers = #tpu.dot_dimension_numbers<[1], [0], [0], [1], [0, 0, 1, 1], [], []>} : vector<8x128xbf16>, vector<128x256xbf16>, vector<8x256xf32> -> vector<8x256xf32>
    %c1_189 = arith.constant 1 : index
    %c0_190 = arith.constant 0 : index
    %c0_191 = arith.constant 0 : index
    %523 = vector.load %arg9[%c1_189, %c0_190, %c0_191] : memref<2x1x256xf32, #tpu.memory_space<vmem>>, vector<1x1x256xf32>
    %524 = vector.shape_cast %523 : vector<1x1x256xf32> to vector<1x256xf32>
    %525 = vector.broadcast %524 : vector<1x256xf32> to vector<8x256xf32>
    %526 = arith.addf %522, %525 : vector<8x256xf32>
    %527 = vector.extract_strided_slice %526 {offsets = [0, 0], sizes = [8, 128], strides = [1, 1]} : vector<8x256xf32> to vector<8x128xf32>
    %cst_192 = arith.constant 5.000000e-01 : f32
    %528 = vector.broadcast %cst_192 : f32 to vector<8x128xf32>
    %529 = arith.mulf %528, %527 : vector<8x128xf32>
    %530 = math.tanh %529 : vector<8x128xf32>
    %cst_193 = arith.constant 1.000000e+00 : f32
    %531 = vector.broadcast %cst_193 : f32 to vector<8x128xf32>
    %532 = arith.addf %530, %531 : vector<8x128xf32>
    %cst_194 = arith.constant 5.000000e-01 : f32
    %533 = vector.broadcast %cst_194 : f32 to vector<8x128xf32>
    %534 = arith.mulf %533, %532 : vector<8x128xf32>
    %535 = vector.extract_strided_slice %526 {offsets = [0, 128], sizes = [8, 128], strides = [1, 1]} : vector<8x256xf32> to vector<8x128xf32>
    %cst_195 = arith.constant 5.000000e-01 : f32
    %536 = vector.broadcast %cst_195 : f32 to vector<8x128xf32>
    %537 = arith.mulf %536, %535 : vector<8x128xf32>
    %538 = math.tanh %537 : vector<8x128xf32>
    %cst_196 = arith.constant 1.000000e+00 : f32
    %539 = vector.broadcast %cst_196 : f32 to vector<8x128xf32>
    %540 = arith.addf %538, %539 : vector<8x128xf32>
    %cst_197 = arith.constant 5.000000e-01 : f32
    %541 = vector.broadcast %cst_197 : f32 to vector<8x128xf32>
    %542 = arith.mulf %541, %540 : vector<8x128xf32>
    %543 = math.tanh %535 : vector<8x128xf32>
    %544 = arith.select %36, %542, %543 : vector<8x128xi1>, vector<8x128xf32>
    %545 = vector.extract_strided_slice %534 {offsets = [0, 64], sizes = [8, 64], strides = [1, 1]} : vector<8x128xf32> to vector<8x64xf32>
    %546 = arith.mulf %545, %446 : vector<8x64xf32>
    %547 = vector.extract_strided_slice %534 {offsets = [0, 0], sizes = [8, 64], strides = [1, 1]} : vector<8x128xf32> to vector<8x64xf32>
    %548 = vector.extract_strided_slice %544 {offsets = [0, 64], sizes = [8, 64], strides = [1, 1]} : vector<8x128xf32> to vector<8x64xf32>
    %549 = arith.mulf %547, %548 : vector<8x64xf32>
    %550 = arith.addf %546, %549 : vector<8x64xf32>
    %551 = vector.extract_strided_slice %544 {offsets = [0, 0], sizes = [8, 64], strides = [1, 1]} : vector<8x128xf32> to vector<8x64xf32>
    %552 = math.tanh %550 : vector<8x64xf32>
    %553 = arith.mulf %551, %552 : vector<8x64xf32>
    %c48 = arith.constant 48 : index
    %c0_198 = arith.constant 0 : index
    %554 = vector.load %arg13[%c48, %c0_198] : memref<64x256xf32, #tpu.memory_space<vmem>>, vector<8x256xf32>
    %555 = arith.truncf %481 : vector<8x64xf32> to vector<8x64xbf16>
    %c0_199 = arith.constant 0 : index
    %c0_200 = arith.constant 0 : index
    %556 = vector.load %arg6[%c0_199, %c0_200] : memref<64x256xbf16, #tpu.memory_space<vmem>>, vector<64x256xbf16>
    %cst_201 = arith.constant dense<0.000000e+00> : vector<8x256xf32>
    %557 = tpu.matmul %555, %556, %cst_201 {dimension_numbers = #tpu.dot_dimension_numbers<[1], [0], [0], [1], [0, 0, 1, 1], [], []>} : vector<8x64xbf16>, vector<64x256xbf16>, vector<8x256xf32> -> vector<8x256xf32>
    %558 = arith.addf %554, %557 : vector<8x256xf32>
    %559 = vector.extract_strided_slice %558 {offsets = [0, 0], sizes = [8, 128], strides = [1, 1]} : vector<8x256xf32> to vector<8x128xf32>
    %cst_202 = arith.constant 5.000000e-01 : f32
    %560 = vector.broadcast %cst_202 : f32 to vector<8x128xf32>
    %561 = arith.mulf %560, %559 : vector<8x128xf32>
    %562 = math.tanh %561 : vector<8x128xf32>
    %cst_203 = arith.constant 1.000000e+00 : f32
    %563 = vector.broadcast %cst_203 : f32 to vector<8x128xf32>
    %564 = arith.addf %562, %563 : vector<8x128xf32>
    %cst_204 = arith.constant 5.000000e-01 : f32
    %565 = vector.broadcast %cst_204 : f32 to vector<8x128xf32>
    %566 = arith.mulf %565, %564 : vector<8x128xf32>
    %567 = vector.extract_strided_slice %558 {offsets = [0, 128], sizes = [8, 128], strides = [1, 1]} : vector<8x256xf32> to vector<8x128xf32>
    %cst_205 = arith.constant 5.000000e-01 : f32
    %568 = vector.broadcast %cst_205 : f32 to vector<8x128xf32>
    %569 = arith.mulf %568, %567 : vector<8x128xf32>
    %570 = math.tanh %569 : vector<8x128xf32>
    %cst_206 = arith.constant 1.000000e+00 : f32
    %571 = vector.broadcast %cst_206 : f32 to vector<8x128xf32>
    %572 = arith.addf %570, %571 : vector<8x128xf32>
    %cst_207 = arith.constant 5.000000e-01 : f32
    %573 = vector.broadcast %cst_207 : f32 to vector<8x128xf32>
    %574 = arith.mulf %573, %572 : vector<8x128xf32>
    %575 = math.tanh %567 : vector<8x128xf32>
    %576 = arith.select %36, %574, %575 : vector<8x128xi1>, vector<8x128xf32>
    %577 = vector.extract_strided_slice %566 {offsets = [0, 64], sizes = [8, 64], strides = [1, 1]} : vector<8x128xf32> to vector<8x64xf32>
    %578 = arith.mulf %577, %478 : vector<8x64xf32>
    %579 = vector.extract_strided_slice %566 {offsets = [0, 0], sizes = [8, 64], strides = [1, 1]} : vector<8x128xf32> to vector<8x64xf32>
    %580 = vector.extract_strided_slice %576 {offsets = [0, 64], sizes = [8, 64], strides = [1, 1]} : vector<8x128xf32> to vector<8x64xf32>
    %581 = arith.mulf %579, %580 : vector<8x64xf32>
    %582 = arith.addf %578, %581 : vector<8x64xf32>
    %583 = vector.extract_strided_slice %576 {offsets = [0, 0], sizes = [8, 64], strides = [1, 1]} : vector<8x128xf32> to vector<8x64xf32>
    %584 = math.tanh %582 : vector<8x64xf32>
    %585 = arith.mulf %583, %584 : vector<8x64xf32>
    %586 = tpu.concatenate %481, %517 in 1 : vector<8x64xf32>, vector<8x64xf32> -> vector<8x128xf32>
    %587 = arith.truncf %586 : vector<8x128xf32> to vector<8x128xbf16>
    %c0_208 = arith.constant 0 : index
    %c0_209 = arith.constant 0 : index
    %c0_210 = arith.constant 0 : index
    %588 = vector.load %arg8[%c0_208, %c0_209, %c0_210] : memref<2x128x256xbf16, #tpu.memory_space<vmem>>, vector<1x128x256xbf16>
    %589 = vector.shape_cast %588 : vector<1x128x256xbf16> to vector<128x256xbf16>
    %cst_211 = arith.constant dense<0.000000e+00> : vector<8x256xf32>
    %590 = tpu.matmul %587, %589, %cst_211 {dimension_numbers = #tpu.dot_dimension_numbers<[1], [0], [0], [1], [0, 0, 1, 1], [], []>} : vector<8x128xbf16>, vector<128x256xbf16>, vector<8x256xf32> -> vector<8x256xf32>
    %c0_212 = arith.constant 0 : index
    %c0_213 = arith.constant 0 : index
    %c0_214 = arith.constant 0 : index
    %591 = vector.load %arg9[%c0_212, %c0_213, %c0_214] : memref<2x1x256xf32, #tpu.memory_space<vmem>>, vector<1x1x256xf32>
    %592 = vector.shape_cast %591 : vector<1x1x256xf32> to vector<1x256xf32>
    %593 = vector.broadcast %592 : vector<1x256xf32> to vector<8x256xf32>
    %594 = arith.addf %590, %593 : vector<8x256xf32>
    %595 = vector.extract_strided_slice %594 {offsets = [0, 0], sizes = [8, 128], strides = [1, 1]} : vector<8x256xf32> to vector<8x128xf32>
    %cst_215 = arith.constant 5.000000e-01 : f32
    %596 = vector.broadcast %cst_215 : f32 to vector<8x128xf32>
    %597 = arith.mulf %596, %595 : vector<8x128xf32>
    %598 = math.tanh %597 : vector<8x128xf32>
    %cst_216 = arith.constant 1.000000e+00 : f32
    %599 = vector.broadcast %cst_216 : f32 to vector<8x128xf32>
    %600 = arith.addf %598, %599 : vector<8x128xf32>
    %cst_217 = arith.constant 5.000000e-01 : f32
    %601 = vector.broadcast %cst_217 : f32 to vector<8x128xf32>
    %602 = arith.mulf %601, %600 : vector<8x128xf32>
    %603 = vector.extract_strided_slice %594 {offsets = [0, 128], sizes = [8, 128], strides = [1, 1]} : vector<8x256xf32> to vector<8x128xf32>
    %cst_218 = arith.constant 5.000000e-01 : f32
    %604 = vector.broadcast %cst_218 : f32 to vector<8x128xf32>
    %605 = arith.mulf %604, %603 : vector<8x128xf32>
    %606 = math.tanh %605 : vector<8x128xf32>
    %cst_219 = arith.constant 1.000000e+00 : f32
    %607 = vector.broadcast %cst_219 : f32 to vector<8x128xf32>
    %608 = arith.addf %606, %607 : vector<8x128xf32>
    %cst_220 = arith.constant 5.000000e-01 : f32
    %609 = vector.broadcast %cst_220 : f32 to vector<8x128xf32>
    %610 = arith.mulf %609, %608 : vector<8x128xf32>
    %611 = math.tanh %603 : vector<8x128xf32>
    %612 = arith.select %36, %610, %611 : vector<8x128xi1>, vector<8x128xf32>
    %613 = vector.extract_strided_slice %602 {offsets = [0, 64], sizes = [8, 64], strides = [1, 1]} : vector<8x128xf32> to vector<8x64xf32>
    %614 = arith.mulf %613, %514 : vector<8x64xf32>
    %615 = vector.extract_strided_slice %602 {offsets = [0, 0], sizes = [8, 64], strides = [1, 1]} : vector<8x128xf32> to vector<8x64xf32>
    %616 = vector.extract_strided_slice %612 {offsets = [0, 64], sizes = [8, 64], strides = [1, 1]} : vector<8x128xf32> to vector<8x64xf32>
    %617 = arith.mulf %615, %616 : vector<8x64xf32>
    %618 = arith.addf %614, %617 : vector<8x64xf32>
    %619 = vector.extract_strided_slice %612 {offsets = [0, 0], sizes = [8, 64], strides = [1, 1]} : vector<8x128xf32> to vector<8x64xf32>
    %620 = math.tanh %618 : vector<8x64xf32>
    %621 = arith.mulf %619, %620 : vector<8x64xf32>
    %622 = tpu.concatenate %517, %553 in 1 : vector<8x64xf32>, vector<8x64xf32> -> vector<8x128xf32>
    %623 = arith.truncf %622 : vector<8x128xf32> to vector<8x128xbf16>
    %c1_221 = arith.constant 1 : index
    %c0_222 = arith.constant 0 : index
    %c0_223 = arith.constant 0 : index
    %624 = vector.load %arg8[%c1_221, %c0_222, %c0_223] : memref<2x128x256xbf16, #tpu.memory_space<vmem>>, vector<1x128x256xbf16>
    %625 = vector.shape_cast %624 : vector<1x128x256xbf16> to vector<128x256xbf16>
    %cst_224 = arith.constant dense<0.000000e+00> : vector<8x256xf32>
    %626 = tpu.matmul %623, %625, %cst_224 {dimension_numbers = #tpu.dot_dimension_numbers<[1], [0], [0], [1], [0, 0, 1, 1], [], []>} : vector<8x128xbf16>, vector<128x256xbf16>, vector<8x256xf32> -> vector<8x256xf32>
    %c1_225 = arith.constant 1 : index
    %c0_226 = arith.constant 0 : index
    %c0_227 = arith.constant 0 : index
    %627 = vector.load %arg9[%c1_225, %c0_226, %c0_227] : memref<2x1x256xf32, #tpu.memory_space<vmem>>, vector<1x1x256xf32>
    %628 = vector.shape_cast %627 : vector<1x1x256xf32> to vector<1x256xf32>
    %629 = vector.broadcast %628 : vector<1x256xf32> to vector<8x256xf32>
    %630 = arith.addf %626, %629 : vector<8x256xf32>
    %631 = vector.extract_strided_slice %630 {offsets = [0, 0], sizes = [8, 128], strides = [1, 1]} : vector<8x256xf32> to vector<8x128xf32>
    %cst_228 = arith.constant 5.000000e-01 : f32
    %632 = vector.broadcast %cst_228 : f32 to vector<8x128xf32>
    %633 = arith.mulf %632, %631 : vector<8x128xf32>
    %634 = math.tanh %633 : vector<8x128xf32>
    %cst_229 = arith.constant 1.000000e+00 : f32
    %635 = vector.broadcast %cst_229 : f32 to vector<8x128xf32>
    %636 = arith.addf %634, %635 : vector<8x128xf32>
    %cst_230 = arith.constant 5.000000e-01 : f32
    %637 = vector.broadcast %cst_230 : f32 to vector<8x128xf32>
    %638 = arith.mulf %637, %636 : vector<8x128xf32>
    %639 = vector.extract_strided_slice %630 {offsets = [0, 128], sizes = [8, 128], strides = [1, 1]} : vector<8x256xf32> to vector<8x128xf32>
    %cst_231 = arith.constant 5.000000e-01 : f32
    %640 = vector.broadcast %cst_231 : f32 to vector<8x128xf32>
    %641 = arith.mulf %640, %639 : vector<8x128xf32>
    %642 = math.tanh %641 : vector<8x128xf32>
    %cst_232 = arith.constant 1.000000e+00 : f32
    %643 = vector.broadcast %cst_232 : f32 to vector<8x128xf32>
    %644 = arith.addf %642, %643 : vector<8x128xf32>
    %cst_233 = arith.constant 5.000000e-01 : f32
    %645 = vector.broadcast %cst_233 : f32 to vector<8x128xf32>
    %646 = arith.mulf %645, %644 : vector<8x128xf32>
    %647 = math.tanh %639 : vector<8x128xf32>
    %648 = arith.select %36, %646, %647 : vector<8x128xi1>, vector<8x128xf32>
    %649 = vector.extract_strided_slice %638 {offsets = [0, 64], sizes = [8, 64], strides = [1, 1]} : vector<8x128xf32> to vector<8x64xf32>
    %650 = arith.mulf %649, %550 : vector<8x64xf32>
    %651 = vector.extract_strided_slice %638 {offsets = [0, 0], sizes = [8, 64], strides = [1, 1]} : vector<8x128xf32> to vector<8x64xf32>
    %652 = vector.extract_strided_slice %648 {offsets = [0, 64], sizes = [8, 64], strides = [1, 1]} : vector<8x128xf32> to vector<8x64xf32>
    %653 = arith.mulf %651, %652 : vector<8x64xf32>
    %654 = arith.addf %650, %653 : vector<8x64xf32>
    %655 = vector.extract_strided_slice %648 {offsets = [0, 0], sizes = [8, 64], strides = [1, 1]} : vector<8x128xf32> to vector<8x64xf32>
    %656 = math.tanh %654 : vector<8x64xf32>
    %657 = arith.mulf %655, %656 : vector<8x64xf32>
    %c56 = arith.constant 56 : index
    %c0_234 = arith.constant 0 : index
    %658 = vector.load %arg13[%c56, %c0_234] : memref<64x256xf32, #tpu.memory_space<vmem>>, vector<8x256xf32>
    %659 = arith.truncf %585 : vector<8x64xf32> to vector<8x64xbf16>
    %c0_235 = arith.constant 0 : index
    %c0_236 = arith.constant 0 : index
    %660 = vector.load %arg6[%c0_235, %c0_236] : memref<64x256xbf16, #tpu.memory_space<vmem>>, vector<64x256xbf16>
    %cst_237 = arith.constant dense<0.000000e+00> : vector<8x256xf32>
    %661 = tpu.matmul %659, %660, %cst_237 {dimension_numbers = #tpu.dot_dimension_numbers<[1], [0], [0], [1], [0, 0, 1, 1], [], []>} : vector<8x64xbf16>, vector<64x256xbf16>, vector<8x256xf32> -> vector<8x256xf32>
    %662 = arith.addf %658, %661 : vector<8x256xf32>
    %663 = vector.extract_strided_slice %662 {offsets = [0, 0], sizes = [8, 128], strides = [1, 1]} : vector<8x256xf32> to vector<8x128xf32>
    %cst_238 = arith.constant 5.000000e-01 : f32
    %664 = vector.broadcast %cst_238 : f32 to vector<8x128xf32>
    %665 = arith.mulf %664, %663 : vector<8x128xf32>
    %666 = math.tanh %665 : vector<8x128xf32>
    %cst_239 = arith.constant 1.000000e+00 : f32
    %667 = vector.broadcast %cst_239 : f32 to vector<8x128xf32>
    %668 = arith.addf %666, %667 : vector<8x128xf32>
    %cst_240 = arith.constant 5.000000e-01 : f32
    %669 = vector.broadcast %cst_240 : f32 to vector<8x128xf32>
    %670 = arith.mulf %669, %668 : vector<8x128xf32>
    %671 = vector.extract_strided_slice %662 {offsets = [0, 128], sizes = [8, 128], strides = [1, 1]} : vector<8x256xf32> to vector<8x128xf32>
    %cst_241 = arith.constant 5.000000e-01 : f32
    %672 = vector.broadcast %cst_241 : f32 to vector<8x128xf32>
    %673 = arith.mulf %672, %671 : vector<8x128xf32>
    %674 = math.tanh %673 : vector<8x128xf32>
    %cst_242 = arith.constant 1.000000e+00 : f32
    %675 = vector.broadcast %cst_242 : f32 to vector<8x128xf32>
    %676 = arith.addf %674, %675 : vector<8x128xf32>
    %cst_243 = arith.constant 5.000000e-01 : f32
    %677 = vector.broadcast %cst_243 : f32 to vector<8x128xf32>
    %678 = arith.mulf %677, %676 : vector<8x128xf32>
    %679 = math.tanh %671 : vector<8x128xf32>
    %680 = arith.select %36, %678, %679 : vector<8x128xi1>, vector<8x128xf32>
    %681 = vector.extract_strided_slice %670 {offsets = [0, 64], sizes = [8, 64], strides = [1, 1]} : vector<8x128xf32> to vector<8x64xf32>
    %682 = arith.mulf %681, %582 : vector<8x64xf32>
    %683 = vector.extract_strided_slice %670 {offsets = [0, 0], sizes = [8, 64], strides = [1, 1]} : vector<8x128xf32> to vector<8x64xf32>
    %684 = vector.extract_strided_slice %680 {offsets = [0, 64], sizes = [8, 64], strides = [1, 1]} : vector<8x128xf32> to vector<8x64xf32>
    %685 = arith.mulf %683, %684 : vector<8x64xf32>
    %686 = arith.addf %682, %685 : vector<8x64xf32>
    %687 = vector.extract_strided_slice %680 {offsets = [0, 0], sizes = [8, 64], strides = [1, 1]} : vector<8x128xf32> to vector<8x64xf32>
    %688 = math.tanh %686 : vector<8x64xf32>
    %689 = arith.mulf %687, %688 : vector<8x64xf32>
    %690 = tpu.concatenate %585, %621 in 1 : vector<8x64xf32>, vector<8x64xf32> -> vector<8x128xf32>
    %691 = arith.truncf %690 : vector<8x128xf32> to vector<8x128xbf16>
    %c0_244 = arith.constant 0 : index
    %c0_245 = arith.constant 0 : index
    %c0_246 = arith.constant 0 : index
    %692 = vector.load %arg8[%c0_244, %c0_245, %c0_246] : memref<2x128x256xbf16, #tpu.memory_space<vmem>>, vector<1x128x256xbf16>
    %693 = vector.shape_cast %692 : vector<1x128x256xbf16> to vector<128x256xbf16>
    %cst_247 = arith.constant dense<0.000000e+00> : vector<8x256xf32>
    %694 = tpu.matmul %691, %693, %cst_247 {dimension_numbers = #tpu.dot_dimension_numbers<[1], [0], [0], [1], [0, 0, 1, 1], [], []>} : vector<8x128xbf16>, vector<128x256xbf16>, vector<8x256xf32> -> vector<8x256xf32>
    %c0_248 = arith.constant 0 : index
    %c0_249 = arith.constant 0 : index
    %c0_250 = arith.constant 0 : index
    %695 = vector.load %arg9[%c0_248, %c0_249, %c0_250] : memref<2x1x256xf32, #tpu.memory_space<vmem>>, vector<1x1x256xf32>
    %696 = vector.shape_cast %695 : vector<1x1x256xf32> to vector<1x256xf32>
    %697 = vector.broadcast %696 : vector<1x256xf32> to vector<8x256xf32>
    %698 = arith.addf %694, %697 : vector<8x256xf32>
    %699 = vector.extract_strided_slice %698 {offsets = [0, 0], sizes = [8, 128], strides = [1, 1]} : vector<8x256xf32> to vector<8x128xf32>
    %cst_251 = arith.constant 5.000000e-01 : f32
    %700 = vector.broadcast %cst_251 : f32 to vector<8x128xf32>
    %701 = arith.mulf %700, %699 : vector<8x128xf32>
    %702 = math.tanh %701 : vector<8x128xf32>
    %cst_252 = arith.constant 1.000000e+00 : f32
    %703 = vector.broadcast %cst_252 : f32 to vector<8x128xf32>
    %704 = arith.addf %702, %703 : vector<8x128xf32>
    %cst_253 = arith.constant 5.000000e-01 : f32
    %705 = vector.broadcast %cst_253 : f32 to vector<8x128xf32>
    %706 = arith.mulf %705, %704 : vector<8x128xf32>
    %707 = vector.extract_strided_slice %698 {offsets = [0, 128], sizes = [8, 128], strides = [1, 1]} : vector<8x256xf32> to vector<8x128xf32>
    %cst_254 = arith.constant 5.000000e-01 : f32
    %708 = vector.broadcast %cst_254 : f32 to vector<8x128xf32>
    %709 = arith.mulf %708, %707 : vector<8x128xf32>
    %710 = math.tanh %709 : vector<8x128xf32>
    %cst_255 = arith.constant 1.000000e+00 : f32
    %711 = vector.broadcast %cst_255 : f32 to vector<8x128xf32>
    %712 = arith.addf %710, %711 : vector<8x128xf32>
    %cst_256 = arith.constant 5.000000e-01 : f32
    %713 = vector.broadcast %cst_256 : f32 to vector<8x128xf32>
    %714 = arith.mulf %713, %712 : vector<8x128xf32>
    %715 = math.tanh %707 : vector<8x128xf32>
    %716 = arith.select %36, %714, %715 : vector<8x128xi1>, vector<8x128xf32>
    %717 = vector.extract_strided_slice %706 {offsets = [0, 64], sizes = [8, 64], strides = [1, 1]} : vector<8x128xf32> to vector<8x64xf32>
    %718 = arith.mulf %717, %618 : vector<8x64xf32>
    %719 = vector.extract_strided_slice %706 {offsets = [0, 0], sizes = [8, 64], strides = [1, 1]} : vector<8x128xf32> to vector<8x64xf32>
    %720 = vector.extract_strided_slice %716 {offsets = [0, 64], sizes = [8, 64], strides = [1, 1]} : vector<8x128xf32> to vector<8x64xf32>
    %721 = arith.mulf %719, %720 : vector<8x64xf32>
    %722 = arith.addf %718, %721 : vector<8x64xf32>
    %723 = vector.extract_strided_slice %716 {offsets = [0, 0], sizes = [8, 64], strides = [1, 1]} : vector<8x128xf32> to vector<8x64xf32>
    %724 = math.tanh %722 : vector<8x64xf32>
    %725 = arith.mulf %723, %724 : vector<8x64xf32>
    %726 = tpu.concatenate %621, %657 in 1 : vector<8x64xf32>, vector<8x64xf32> -> vector<8x128xf32>
    %727 = arith.truncf %726 : vector<8x128xf32> to vector<8x128xbf16>
    %c1_257 = arith.constant 1 : index
    %c0_258 = arith.constant 0 : index
    %c0_259 = arith.constant 0 : index
    %728 = vector.load %arg8[%c1_257, %c0_258, %c0_259] : memref<2x128x256xbf16, #tpu.memory_space<vmem>>, vector<1x128x256xbf16>
    %729 = vector.shape_cast %728 : vector<1x128x256xbf16> to vector<128x256xbf16>
    %cst_260 = arith.constant dense<0.000000e+00> : vector<8x256xf32>
    %730 = tpu.matmul %727, %729, %cst_260 {dimension_numbers = #tpu.dot_dimension_numbers<[1], [0], [0], [1], [0, 0, 1, 1], [], []>} : vector<8x128xbf16>, vector<128x256xbf16>, vector<8x256xf32> -> vector<8x256xf32>
    %c1_261 = arith.constant 1 : index
    %c0_262 = arith.constant 0 : index
    %c0_263 = arith.constant 0 : index
    %731 = vector.load %arg9[%c1_261, %c0_262, %c0_263] : memref<2x1x256xf32, #tpu.memory_space<vmem>>, vector<1x1x256xf32>
    %732 = vector.shape_cast %731 : vector<1x1x256xf32> to vector<1x256xf32>
    %733 = vector.broadcast %732 : vector<1x256xf32> to vector<8x256xf32>
    %734 = arith.addf %730, %733 : vector<8x256xf32>
    %735 = vector.extract_strided_slice %734 {offsets = [0, 0], sizes = [8, 128], strides = [1, 1]} : vector<8x256xf32> to vector<8x128xf32>
    %cst_264 = arith.constant 5.000000e-01 : f32
    %736 = vector.broadcast %cst_264 : f32 to vector<8x128xf32>
    %737 = arith.mulf %736, %735 : vector<8x128xf32>
    %738 = math.tanh %737 : vector<8x128xf32>
    %cst_265 = arith.constant 1.000000e+00 : f32
    %739 = vector.broadcast %cst_265 : f32 to vector<8x128xf32>
    %740 = arith.addf %738, %739 : vector<8x128xf32>
    %cst_266 = arith.constant 5.000000e-01 : f32
    %741 = vector.broadcast %cst_266 : f32 to vector<8x128xf32>
    %742 = arith.mulf %741, %740 : vector<8x128xf32>
    %743 = vector.extract_strided_slice %734 {offsets = [0, 128], sizes = [8, 128], strides = [1, 1]} : vector<8x256xf32> to vector<8x128xf32>
    %cst_267 = arith.constant 5.000000e-01 : f32
    %744 = vector.broadcast %cst_267 : f32 to vector<8x128xf32>
    %745 = arith.mulf %744, %743 : vector<8x128xf32>
    %746 = math.tanh %745 : vector<8x128xf32>
    %cst_268 = arith.constant 1.000000e+00 : f32
    %747 = vector.broadcast %cst_268 : f32 to vector<8x128xf32>
    %748 = arith.addf %746, %747 : vector<8x128xf32>
    %cst_269 = arith.constant 5.000000e-01 : f32
    %749 = vector.broadcast %cst_269 : f32 to vector<8x128xf32>
    %750 = arith.mulf %749, %748 : vector<8x128xf32>
    %751 = math.tanh %743 : vector<8x128xf32>
    %752 = arith.select %36, %750, %751 : vector<8x128xi1>, vector<8x128xf32>
    %753 = vector.extract_strided_slice %742 {offsets = [0, 64], sizes = [8, 64], strides = [1, 1]} : vector<8x128xf32> to vector<8x64xf32>
    %754 = arith.mulf %753, %654 : vector<8x64xf32>
    %755 = vector.extract_strided_slice %742 {offsets = [0, 0], sizes = [8, 64], strides = [1, 1]} : vector<8x128xf32> to vector<8x64xf32>
    %756 = vector.extract_strided_slice %752 {offsets = [0, 64], sizes = [8, 64], strides = [1, 1]} : vector<8x128xf32> to vector<8x64xf32>
    %757 = arith.mulf %755, %756 : vector<8x64xf32>
    %758 = arith.addf %754, %757 : vector<8x64xf32>
    %759 = vector.extract_strided_slice %752 {offsets = [0, 0], sizes = [8, 64], strides = [1, 1]} : vector<8x128xf32> to vector<8x64xf32>
    %760 = math.tanh %758 : vector<8x64xf32>
    %761 = arith.mulf %759, %760 : vector<8x64xf32>
    %762 = tpu.concatenate %689, %725 in 1 : vector<8x64xf32>, vector<8x64xf32> -> vector<8x128xf32>
    %763 = arith.truncf %762 : vector<8x128xf32> to vector<8x128xbf16>
    %c0_270 = arith.constant 0 : index
    %c0_271 = arith.constant 0 : index
    %c0_272 = arith.constant 0 : index
    %764 = vector.load %arg8[%c0_270, %c0_271, %c0_272] : memref<2x128x256xbf16, #tpu.memory_space<vmem>>, vector<1x128x256xbf16>
    %765 = vector.shape_cast %764 : vector<1x128x256xbf16> to vector<128x256xbf16>
    %cst_273 = arith.constant dense<0.000000e+00> : vector<8x256xf32>
    %766 = tpu.matmul %763, %765, %cst_273 {dimension_numbers = #tpu.dot_dimension_numbers<[1], [0], [0], [1], [0, 0, 1, 1], [], []>} : vector<8x128xbf16>, vector<128x256xbf16>, vector<8x256xf32> -> vector<8x256xf32>
    %c0_274 = arith.constant 0 : index
    %c0_275 = arith.constant 0 : index
    %c0_276 = arith.constant 0 : index
    %767 = vector.load %arg9[%c0_274, %c0_275, %c0_276] : memref<2x1x256xf32, #tpu.memory_space<vmem>>, vector<1x1x256xf32>
    %768 = vector.shape_cast %767 : vector<1x1x256xf32> to vector<1x256xf32>
    %769 = vector.broadcast %768 : vector<1x256xf32> to vector<8x256xf32>
    %770 = arith.addf %766, %769 : vector<8x256xf32>
    %771 = vector.extract_strided_slice %770 {offsets = [0, 0], sizes = [8, 128], strides = [1, 1]} : vector<8x256xf32> to vector<8x128xf32>
    %cst_277 = arith.constant 5.000000e-01 : f32
    %772 = vector.broadcast %cst_277 : f32 to vector<8x128xf32>
    %773 = arith.mulf %772, %771 : vector<8x128xf32>
    %774 = math.tanh %773 : vector<8x128xf32>
    %cst_278 = arith.constant 1.000000e+00 : f32
    %775 = vector.broadcast %cst_278 : f32 to vector<8x128xf32>
    %776 = arith.addf %774, %775 : vector<8x128xf32>
    %cst_279 = arith.constant 5.000000e-01 : f32
    %777 = vector.broadcast %cst_279 : f32 to vector<8x128xf32>
    %778 = arith.mulf %777, %776 : vector<8x128xf32>
    %779 = vector.extract_strided_slice %770 {offsets = [0, 128], sizes = [8, 128], strides = [1, 1]} : vector<8x256xf32> to vector<8x128xf32>
    %cst_280 = arith.constant 5.000000e-01 : f32
    %780 = vector.broadcast %cst_280 : f32 to vector<8x128xf32>
    %781 = arith.mulf %780, %779 : vector<8x128xf32>
    %782 = math.tanh %781 : vector<8x128xf32>
    %cst_281 = arith.constant 1.000000e+00 : f32
    %783 = vector.broadcast %cst_281 : f32 to vector<8x128xf32>
    %784 = arith.addf %782, %783 : vector<8x128xf32>
    %cst_282 = arith.constant 5.000000e-01 : f32
    %785 = vector.broadcast %cst_282 : f32 to vector<8x128xf32>
    %786 = arith.mulf %785, %784 : vector<8x128xf32>
    %787 = math.tanh %779 : vector<8x128xf32>
    %788 = arith.select %36, %786, %787 : vector<8x128xi1>, vector<8x128xf32>
    %789 = vector.extract_strided_slice %778 {offsets = [0, 64], sizes = [8, 64], strides = [1, 1]} : vector<8x128xf32> to vector<8x64xf32>
    %790 = arith.mulf %789, %722 : vector<8x64xf32>
    %791 = vector.extract_strided_slice %778 {offsets = [0, 0], sizes = [8, 64], strides = [1, 1]} : vector<8x128xf32> to vector<8x64xf32>
    %792 = vector.extract_strided_slice %788 {offsets = [0, 64], sizes = [8, 64], strides = [1, 1]} : vector<8x128xf32> to vector<8x64xf32>
    %793 = arith.mulf %791, %792 : vector<8x64xf32>
    %794 = arith.addf %790, %793 : vector<8x64xf32>
    %795 = vector.extract_strided_slice %788 {offsets = [0, 0], sizes = [8, 64], strides = [1, 1]} : vector<8x128xf32> to vector<8x64xf32>
    %796 = math.tanh %794 : vector<8x64xf32>
    %797 = arith.mulf %795, %796 : vector<8x64xf32>
    %798 = tpu.concatenate %725, %761 in 1 : vector<8x64xf32>, vector<8x64xf32> -> vector<8x128xf32>
    %799 = arith.truncf %798 : vector<8x128xf32> to vector<8x128xbf16>
    %c1_283 = arith.constant 1 : index
    %c0_284 = arith.constant 0 : index
    %c0_285 = arith.constant 0 : index
    %800 = vector.load %arg8[%c1_283, %c0_284, %c0_285] : memref<2x128x256xbf16, #tpu.memory_space<vmem>>, vector<1x128x256xbf16>
    %801 = vector.shape_cast %800 : vector<1x128x256xbf16> to vector<128x256xbf16>
    %cst_286 = arith.constant dense<0.000000e+00> : vector<8x256xf32>
    %802 = tpu.matmul %799, %801, %cst_286 {dimension_numbers = #tpu.dot_dimension_numbers<[1], [0], [0], [1], [0, 0, 1, 1], [], []>} : vector<8x128xbf16>, vector<128x256xbf16>, vector<8x256xf32> -> vector<8x256xf32>
    %c1_287 = arith.constant 1 : index
    %c0_288 = arith.constant 0 : index
    %c0_289 = arith.constant 0 : index
    %803 = vector.load %arg9[%c1_287, %c0_288, %c0_289] : memref<2x1x256xf32, #tpu.memory_space<vmem>>, vector<1x1x256xf32>
    %804 = vector.shape_cast %803 : vector<1x1x256xf32> to vector<1x256xf32>
    %805 = vector.broadcast %804 : vector<1x256xf32> to vector<8x256xf32>
    %806 = arith.addf %802, %805 : vector<8x256xf32>
    %807 = vector.extract_strided_slice %806 {offsets = [0, 0], sizes = [8, 128], strides = [1, 1]} : vector<8x256xf32> to vector<8x128xf32>
    %cst_290 = arith.constant 5.000000e-01 : f32
    %808 = vector.broadcast %cst_290 : f32 to vector<8x128xf32>
    %809 = arith.mulf %808, %807 : vector<8x128xf32>
    %810 = math.tanh %809 : vector<8x128xf32>
    %cst_291 = arith.constant 1.000000e+00 : f32
    %811 = vector.broadcast %cst_291 : f32 to vector<8x128xf32>
    %812 = arith.addf %810, %811 : vector<8x128xf32>
    %cst_292 = arith.constant 5.000000e-01 : f32
    %813 = vector.broadcast %cst_292 : f32 to vector<8x128xf32>
    %814 = arith.mulf %813, %812 : vector<8x128xf32>
    %815 = vector.extract_strided_slice %806 {offsets = [0, 128], sizes = [8, 128], strides = [1, 1]} : vector<8x256xf32> to vector<8x128xf32>
    %cst_293 = arith.constant 5.000000e-01 : f32
    %816 = vector.broadcast %cst_293 : f32 to vector<8x128xf32>
    %817 = arith.mulf %816, %815 : vector<8x128xf32>
    %818 = math.tanh %817 : vector<8x128xf32>
    %cst_294 = arith.constant 1.000000e+00 : f32
    %819 = vector.broadcast %cst_294 : f32 to vector<8x128xf32>
    %820 = arith.addf %818, %819 : vector<8x128xf32>
    %cst_295 = arith.constant 5.000000e-01 : f32
    %821 = vector.broadcast %cst_295 : f32 to vector<8x128xf32>
    %822 = arith.mulf %821, %820 : vector<8x128xf32>
    %823 = math.tanh %815 : vector<8x128xf32>
    %824 = arith.select %36, %822, %823 : vector<8x128xi1>, vector<8x128xf32>
    %825 = vector.extract_strided_slice %814 {offsets = [0, 64], sizes = [8, 64], strides = [1, 1]} : vector<8x128xf32> to vector<8x64xf32>
    %826 = arith.mulf %825, %758 : vector<8x64xf32>
    %827 = vector.extract_strided_slice %814 {offsets = [0, 0], sizes = [8, 64], strides = [1, 1]} : vector<8x128xf32> to vector<8x64xf32>
    %828 = vector.extract_strided_slice %824 {offsets = [0, 64], sizes = [8, 64], strides = [1, 1]} : vector<8x128xf32> to vector<8x64xf32>
    %829 = arith.mulf %827, %828 : vector<8x64xf32>
    %830 = arith.addf %826, %829 : vector<8x64xf32>
    %831 = vector.extract_strided_slice %824 {offsets = [0, 0], sizes = [8, 64], strides = [1, 1]} : vector<8x128xf32> to vector<8x64xf32>
    %832 = math.tanh %830 : vector<8x64xf32>
    %833 = arith.mulf %831, %832 : vector<8x64xf32>
    %834 = tpu.concatenate %797, %833 in 1 : vector<8x64xf32>, vector<8x64xf32> -> vector<8x128xf32>
    %835 = arith.truncf %834 : vector<8x128xf32> to vector<8x128xbf16>
    %c1_296 = arith.constant 1 : index
    %c0_297 = arith.constant 0 : index
    %c0_298 = arith.constant 0 : index
    %836 = vector.load %arg8[%c1_296, %c0_297, %c0_298] : memref<2x128x256xbf16, #tpu.memory_space<vmem>>, vector<1x128x256xbf16>
    %837 = vector.shape_cast %836 : vector<1x128x256xbf16> to vector<128x256xbf16>
    %cst_299 = arith.constant dense<0.000000e+00> : vector<8x256xf32>
    %838 = tpu.matmul %835, %837, %cst_299 {dimension_numbers = #tpu.dot_dimension_numbers<[1], [0], [0], [1], [0, 0, 1, 1], [], []>} : vector<8x128xbf16>, vector<128x256xbf16>, vector<8x256xf32> -> vector<8x256xf32>
    %c1_300 = arith.constant 1 : index
    %c0_301 = arith.constant 0 : index
    %c0_302 = arith.constant 0 : index
    %839 = vector.load %arg9[%c1_300, %c0_301, %c0_302] : memref<2x1x256xf32, #tpu.memory_space<vmem>>, vector<1x1x256xf32>
    %840 = vector.shape_cast %839 : vector<1x1x256xf32> to vector<1x256xf32>
    %841 = vector.broadcast %840 : vector<1x256xf32> to vector<8x256xf32>
    %842 = arith.addf %838, %841 : vector<8x256xf32>
    %843 = vector.extract_strided_slice %842 {offsets = [0, 0], sizes = [8, 128], strides = [1, 1]} : vector<8x256xf32> to vector<8x128xf32>
    %cst_303 = arith.constant 5.000000e-01 : f32
    %844 = vector.broadcast %cst_303 : f32 to vector<8x128xf32>
    %845 = arith.mulf %844, %843 : vector<8x128xf32>
    %846 = math.tanh %845 : vector<8x128xf32>
    %cst_304 = arith.constant 1.000000e+00 : f32
    %847 = vector.broadcast %cst_304 : f32 to vector<8x128xf32>
    %848 = arith.addf %846, %847 : vector<8x128xf32>
    %cst_305 = arith.constant 5.000000e-01 : f32
    %849 = vector.broadcast %cst_305 : f32 to vector<8x128xf32>
    %850 = arith.mulf %849, %848 : vector<8x128xf32>
    %851 = vector.extract_strided_slice %842 {offsets = [0, 128], sizes = [8, 128], strides = [1, 1]} : vector<8x256xf32> to vector<8x128xf32>
    %cst_306 = arith.constant 5.000000e-01 : f32
    %852 = vector.broadcast %cst_306 : f32 to vector<8x128xf32>
    %853 = arith.mulf %852, %851 : vector<8x128xf32>
    %854 = math.tanh %853 : vector<8x128xf32>
    %cst_307 = arith.constant 1.000000e+00 : f32
    %855 = vector.broadcast %cst_307 : f32 to vector<8x128xf32>
    %856 = arith.addf %854, %855 : vector<8x128xf32>
    %cst_308 = arith.constant 5.000000e-01 : f32
    %857 = vector.broadcast %cst_308 : f32 to vector<8x128xf32>
    %858 = arith.mulf %857, %856 : vector<8x128xf32>
    %859 = math.tanh %851 : vector<8x128xf32>
    %860 = arith.select %36, %858, %859 : vector<8x128xi1>, vector<8x128xf32>
    %861 = vector.extract_strided_slice %850 {offsets = [0, 64], sizes = [8, 64], strides = [1, 1]} : vector<8x128xf32> to vector<8x64xf32>
    %862 = arith.mulf %861, %830 : vector<8x64xf32>
    %863 = vector.extract_strided_slice %850 {offsets = [0, 0], sizes = [8, 64], strides = [1, 1]} : vector<8x128xf32> to vector<8x64xf32>
    %864 = vector.extract_strided_slice %860 {offsets = [0, 64], sizes = [8, 64], strides = [1, 1]} : vector<8x128xf32> to vector<8x64xf32>
    %865 = arith.mulf %863, %864 : vector<8x64xf32>
    %866 = arith.addf %862, %865 : vector<8x64xf32>
    %867 = vector.extract_strided_slice %860 {offsets = [0, 0], sizes = [8, 64], strides = [1, 1]} : vector<8x128xf32> to vector<8x64xf32>
    %868 = math.tanh %866 : vector<8x64xf32>
    %869 = arith.mulf %867, %868 : vector<8x64xf32>
    %c0_309 = arith.constant 0 : index
    %c0_310 = arith.constant 0 : index
    %870 = vector.load %arg10[%c0_309, %c0_310] : memref<64x1xf32, #tpu.memory_space<vmem>>, vector<64x1xf32>
    %cst_311 = arith.constant dense<0.000000e+00> : vector<8x1xf32>
    %871 = tpu.matmul %869, %870, %cst_311 {dimension_numbers = #tpu.dot_dimension_numbers<[1], [0], [0], [1], [0, 0, 1, 1], [], []>} : vector<8x64xf32>, vector<64x1xf32>, vector<8x1xf32> -> vector<8x1xf32>
    %c0_312 = arith.constant 0 : index
    %c0_313 = arith.constant 0 : index
    %872 = vector.load %arg11[%c0_312, %c0_313] : memref<1x1xf32, #tpu.memory_space<vmem>>, vector<1x1xf32>
    %873 = vector.broadcast %872 : vector<1x1xf32> to vector<8x1xf32>
    %874 = arith.addf %871, %873 : vector<8x1xf32>
    %cst_314 = arith.constant 5.000000e-01 : f32
    %875 = vector.broadcast %cst_314 : f32 to vector<8x1xf32>
    %876 = arith.mulf %875, %874 : vector<8x1xf32>
    %877 = math.tanh %876 : vector<8x1xf32>
    %cst_315 = arith.constant 1.000000e+00 : f32
    %878 = vector.broadcast %cst_315 : f32 to vector<8x1xf32>
    %879 = arith.addf %877, %878 : vector<8x1xf32>
    %cst_316 = arith.constant 5.000000e-01 : f32
    %880 = vector.broadcast %cst_316 : f32 to vector<8x1xf32>
    %881 = arith.mulf %880, %879 : vector<8x1xf32>
    %c0_317 = arith.constant 0 : index
    %c0_318 = arith.constant 0 : index
    %882 = vector.load %arg12[%c0_317, %c0_318] : memref<8x1xf32, #tpu.memory_space<vmem>>, vector<8x1xf32>
    tpu.vector_store %arg12[%c0_317, %c0_318], %881 {strides = array<i32>} : memref<8x1xf32, #tpu.memory_space<vmem>>, vector<8x1xf32>,
    return
  }
}

</mosaic_0001>

<llo_original>
// kernel: forward.1
$region0: #{forward.1}
  #allocation0 [shape = 'u32[]', space=smem, size = 0x4, offset = 0x4, fixed_abs, tag = 'smem constant byte address 0x4 - core index']
  #allocation1 [shape = 'u32[144,128]{1,0:T(1,128)}', space=vmem, size = 0x12000, scoped, tag = 'internal scratch']
  #allocation2 [shape = 'f32[64,256]{1,0:T(8,128)}', space=vmem, size = 0x10000, scoped, tag = 'scratch operand']
  #allocation3 [shape = 'f32[1,1]{1,0:T(1,128)S(1)}', space=vmem, size = 0x200, scoped, tag = 'scoped memory for forward.1']
  %s0 = inlined_call_operand.vmem [shape: f32[64,5], index: 0, kind: input, shape index: {}]
  %s1 = inlined_call_operand.vmem [shape: f32[5,50], index: 1, kind: input, shape index: {}]
  %s2 = inlined_call_operand.hbm [shape: f32[1,50], index: 2, kind: input, shape index: {}]
  %s3 = inlined_call_operand.vmem [shape: f32[50,10], index: 3, kind: input, shape index: {}]
  %s4 = inlined_call_operand.hbm [shape: f32[1,10], index: 4, kind: input, shape index: {}]
  %s5 = inlined_call_operand.vmem [shape: bf16[64,256], index: 5, kind: input, shape index: {}]
  %s6 = inlined_call_operand.hbm [shape: bf16[64,256], index: 6, kind: input, shape index: {}]
  %s7 = inlined_call_operand.hbm [shape: f32[1,256], index: 7, kind: input, shape index: {}]
  %s8 = inlined_call_operand.vmem [shape: bf16[2,128,256], index: 8, kind: input, shape index: {}]
  %s9 = inlined_call_operand.hbm [shape: f32[2,1,256], index: 9, kind: input, shape index: {}]
  %s10 = inlined_call_operand.vmem [shape: f32[64,1], index: 10, kind: input, shape index: {}]
  %s11 = inlined_call_operand.<no memory space> [shape: f32[1,1], index: 11, kind: input, shape index: {}]
  %s12 = inlined_call_operand.vmem [shape: f32[8,1], index: 12, kind: output, shape index: {}]
  %s13 = sld [smem:[#allocation0]]
  $region78: #{forward.1} parent=0
    _
  %s15 = ssub.s32 1, %s13
  %s16 = scalar_select 0, %s15, %s13
  %v17 = vstv %s11
  %18 = vst [vmem:[#allocation3] sm:$0x1] %v17
  $region1: #{forward.1} parent=0
    #allocation4 [shape = 'u8[512]{0}', space=vmem, size = 0x400, scoped, tag = 'input window, operand 2, single buffered']
    #allocation5 [shape = 's32[1]{0}', space=sflag, size = 0x4, scoped, tag = 'scoped memory for forward.1']
    #allocation6 [shape = 'u8[512]{0}', space=vmem, size = 0x400, scoped, tag = 'input window, operand 4, single buffered']
    #allocation7 [shape = 's32[1]{0}', space=sflag, size = 0x4, scoped, tag = 'scoped memory for forward.1']
    #allocation8 [shape = 'u8[32768]{0}', space=vmem, size = 0x8000, scoped, tag = 'input window, operand 6, single buffered']
    #allocation9 [shape = 'u8[1024]{0}', space=vmem, size = 0x400, scoped, tag = 'input window, operand 7, single buffered']
    #allocation10 [shape = 's32[1]{0}', space=sflag, size = 0x4, scoped, tag = 'scoped memory for forward.1']
    #allocation11 [shape = 'u8[2048]{0}', space=vmem, size = 0x800, scoped, tag = 'input window, operand 9, single buffered']
    %19 = vsyncpa [#allocation5], 0
    %20 = vsyncpa [#allocation7], 0
    %21 = vsyncpa [#allocation10], 0
    // Predicated region
    $region2: #{forward.1} parent=1 // pred_check
      _
    $region3: #{forward.1} parent=1 // pred_check_branch
      %23 = sbr.rel (0) target = $region5
    $region4: #{forward.1} parent=1 // pred_region
      _
    $region5: #{forward.1} parent=1 // pred_fallthru
      _
    // Predicated region
    $region6: #{forward.1} parent=1 // pred_check
      _
    $region7: #{forward.1} parent=1 // pred_check_branch
      %25 = sbr.rel (0) target = $region9
    $region8: #{forward.1} parent=1 // pred_region
      _
    $region9: #{forward.1} parent=1 // pred_fallthru
      _
    // Predicated region
    $region10: #{forward.1} parent=1 // pred_check
      _
    $region11: #{forward.1} parent=1 // pred_check_branch
      %27 = sbr.rel (0) target = $region13
    $region12: #{forward.1} parent=1 // pred_region
      %s29 = ssub.s32 16, 16
      %30 = vsyncadd [#allocation5], %s29
      %s32 = sshll.u32 [#allocation4], 4
      %s33 = int_to_ptr.vmem [resolvable:$true] %s32
      %35 = dma.hbm_to_vmem [thread:$0]  %s2, 16, %s33, [#allocation5]
    $region13: #{forward.1} parent=1 // pred_fallthru
      _
    // Predicated region
    $region14: #{forward.1} parent=1 // pred_check
      _
    $region15: #{forward.1} parent=1 // pred_check_branch
      %37 = sbr.rel (0) target = $region17
    $region16: #{forward.1} parent=1 // pred_region
      _
    $region17: #{forward.1} parent=1 // pred_fallthru
      _
    // Predicated region
    $region18: #{forward.1} parent=1 // pred_check
      _
    $region19: #{forward.1} parent=1 // pred_check_branch
      %39 = sbr.rel (0) target = $region21
    $region20: #{forward.1} parent=1 // pred_region
      %s41 = ssub.s32 16, 16
      %42 = vsyncadd [#allocation7], %s41
      %s44 = sshll.u32 [#allocation6], 4
      %s45 = int_to_ptr.vmem [resolvable:$true] %s44
      %47 = dma.hbm_to_vmem [thread:$0]  %s4, 16, %s45, [#allocation7]
    $region21: #{forward.1} parent=1 // pred_fallthru
      _
    // Predicated region
    $region22: #{forward.1} parent=1 // pred_check
      _
    $region23: #{forward.1} parent=1 // pred_check_branch
      %49 = sbr.rel (0) target = $region25
    $region24: #{forward.1} parent=1 // pred_region
      _
    $region25: #{forward.1} parent=1 // pred_fallthru
      _
    // Predicated region
    $region26: #{forward.1} parent=1 // pred_check
      _
    $region27: #{forward.1} parent=1 // pred_check_branch
      %51 = sbr.rel (0) target = $region29
    $region28: #{forward.1} parent=1 // pred_region
      %s53 = ssub.s32 1024, 1024
      %54 = vsyncadd [#allocation7], %s53
      %s55 = sshll.u32 [#allocation8], 4
      %s56 = int_to_ptr.vmem [resolvable:$true] %s55
      %61 = dma.hbm_to_vmem [thread:$0]  %s6, 1024, %s56, [#allocation7], 128, 128, 8
    $region29: #{forward.1} parent=1 // pred_fallthru
      _
    // Predicated region
    $region30: #{forward.1} parent=1 // pred_check
      _
    $region31: #{forward.1} parent=1 // pred_check_branch
      %63 = sbr.rel (0) target = $region33
    $region32: #{forward.1} parent=1 // pred_region
      %s65 = ssub.s32 32, 32
      %66 = vsyncadd [#allocation10], %s65
      %s68 = sshll.u32 [#allocation9], 4
      %s69 = int_to_ptr.vmem [resolvable:$true] %s68
      %71 = dma.hbm_to_vmem [thread:$0]  %s7, 32, %s69, [#allocation10]
    $region33: #{forward.1} parent=1 // pred_fallthru
      _
    // Predicated region
    $region34: #{forward.1} parent=1 // pred_check
      _
    $region35: #{forward.1} parent=1 // pred_check_branch
      %73 = sbr.rel (0) target = $region37
    $region36: #{forward.1} parent=1 // pred_region
      _
    $region37: #{forward.1} parent=1 // pred_fallthru
      _
    // Predicated region
    $region38: #{forward.1} parent=1 // pred_check
      _
    $region39: #{forward.1} parent=1 // pred_check_branch
      %75 = sbr.rel (0) target = $region41
    $region40: #{forward.1} parent=1 // pred_region
      %s77 = ssub.s32 64, 64
      %78 = vsyncadd [#allocation10], %s77
      %s79 = sshll.u32 [#allocation11], 4
      %s80 = int_to_ptr.vmem [resolvable:$true] %s79
      %85 = dma.hbm_to_vmem [thread:$0]  %s9, 64, %s80, [#allocation10], 32, 32, 2
    $region41: #{forward.1} parent=1 // pred_fallthru
      _
    // Predicated region
    $region42: #{forward.1} parent=1 // pred_check
      _
    $region43: #{forward.1} parent=1 // pred_check_branch
      %87 = sbr.rel (0) target = $region45
    $region44: #{forward.1} parent=1 // pred_region
      _
    $region45: #{forward.1} parent=1 // pred_fallthru
      _
    // Predicated region
    $region46: #{forward.1} parent=1 // pred_check
      _
    $region47: #{forward.1} parent=1 // pred_check_branch
      %89 = sbr.rel (0) target = $region49
    $region48: #{forward.1} parent=1 // pred_region
      _
    $region49: #{forward.1} parent=1 // pred_fallthru
      _
    // Predicated region
    $region50: #{forward.1} parent=1 // pred_check
      _
    $region51: #{forward.1} parent=1 // pred_check_branch
      %91 = sbr.rel (0) target = $region53
    $region52: #{forward.1} parent=1 // pred_region
      %92 = dma.done [#allocation5], 16
    $region53: #{forward.1} parent=1 // pred_fallthru
      _
    // Predicated region
    $region54: #{forward.1} parent=1 // pred_check
      _
    $region55: #{forward.1} parent=1 // pred_check_branch
      %94 = sbr.rel (0) target = $region57
    $region56: #{forward.1} parent=1 // pred_region
      %95 = dma.done [#allocation7], 16
    $region57: #{forward.1} parent=1 // pred_fallthru
      _
    // Predicated region
    $region58: #{forward.1} parent=1 // pred_check
      _
    $region59: #{forward.1} parent=1 // pred_check_branch
      %97 = sbr.rel (0) target = $region61
    $region60: #{forward.1} parent=1 // pred_region
      %98 = dma.done [#allocation7], 1024
    $region61: #{forward.1} parent=1 // pred_fallthru
      _
    // Predicated region
    $region62: #{forward.1} parent=1 // pred_check
      _
    $region63: #{forward.1} parent=1 // pred_check_branch
      %100 = sbr.rel (0) target = $region65
    $region64: #{forward.1} parent=1 // pred_region
      %101 = dma.done [#allocation10], 32
    $region65: #{forward.1} parent=1 // pred_fallthru
      _
    // Predicated region
    $region66: #{forward.1} parent=1 // pred_check
      _
    $region67: #{forward.1} parent=1 // pred_check_branch
      %103 = sbr.rel (0) target = $region69
    $region68: #{forward.1} parent=1 // pred_region
      %104 = dma.done [#allocation10], 64
    $region69: #{forward.1} parent=1 // pred_fallthru
      _
    %v106 = vld [vmem:[%s0] sm:$0xff]
    %v107 = vld [vmem:[%s0 + $0x8] sm:$0xff]
    %v108 = vld [vmem:[%s0 + $0x10] sm:$0xff]
    %v109 = vld [vmem:[%s0 + $0x18] sm:$0xff]
    %v110 = vld [vmem:[%s0 + $0x20] sm:$0xff]
    %v111 = vld [vmem:[%s0 + $0x28] sm:$0xff]
    %v112 = vld [vmem:[%s0 + $0x30] sm:$0xff]
    %v113 = vld [vmem:[%s0 + $0x38] sm:$0xff]
    %v114 = vld [vmem:[%s1] sm:$0x1f]
    %v115 = vld [vmem:[#allocation4] sm:$0x1]
    %v117 = vlaneseq
    %v118 = vshrl.u32 %v117, 7
    %v119 = vsub.s32 0, %v118
    %v120 = vrot.slane %v115, %v119
    %vm122 = vcmask 39936
    %v124 = vsel %vm122, %v106, 0
    %v127 = vsel %vm122, %v107, 0
    %v130 = vsel %vm122, %v108, 0
    %v133 = vsel %vm122, %v109, 0
    %v136 = vsel %vm122, %v110, 0
    %v139 = vsel %vm122, %v111, 0
    %v142 = vsel %vm122, %v112, 0
    %v145 = vsel %vm122, %v113, 0
    %vm147 = vcmask 1044480
    %v149 = vsel %vm147, %v114, 0
    %151 = vmatprep.subr.mxu0 0.0
    %152 = vmatpush1.msra.mxu0 %v149
    %153 = vmatprep.subr.mxu0 0.0
    %154 = vmatpush1.msra.mxu0 0.0
    %155 = vmatprep.subr.mxu0 0.0
    %156 = vmatpush1.msra.mxu0 0.0
    %157 = vmatprep.subr.mxu0 0.0
    %158 = vmatpush1.msra.mxu0 0.0
    %159 = vmatprep.subr.mxu0 0.0
    %160 = vmatpush1.msra.mxu0 0.0
    %161 = vmatprep.subr.mxu0 0.0
    %162 = vmatpush1.msra.mxu0 0.0
    %163 = vmatprep.subr.mxu0 0.0
    %164 = vmatpush1.msra.mxu0 0.0
    %165 = vmatprep.subr.mxu0 0.0
    %166 = vmatpush1.msra.mxu0 0.0
    %167 = vmatprep.subr.mxu0 0.0
    %168 = vmatpush1.msra.mxu0 0.0
    %169 = vmatprep.subr.mxu0 0.0
    %170 = vmatpush1.msra.mxu0 0.0
    %171 = vmatprep.subr.mxu0 0.0
    %172 = vmatpush1.msra.mxu0 0.0
    %173 = vmatprep.subr.mxu0 0.0
    %174 = vmatpush1.msra.mxu0 0.0
    %175 = vmatprep.subr.mxu0 0.0
    %176 = vmatpush1.msra.mxu0 0.0
    %177 = vmatprep.subr.mxu0 0.0
    %178 = vmatpush1.msra.mxu0 0.0
    %179 = vmatprep.subr.mxu0 0.0
    %180 = vmatpush1.msra.mxu0 0.0
    %181 = vmatprep.subr.mxu0 0.0
    %182 = vmatpush1.msra.mxu0 0.0
    %183 = vmatprep.subr.mxu0 0.0
    %184 = vmatpush1.msra.mxu0 0.0
    %185 = vmatprep.subr.mxu0 0.0
    %186 = vmatpush1.msra.mxu0 0.0
    %187 = vmatprep.subr.mxu0 0.0
    %188 = vmatpush1.msra.mxu0 0.0
    %189 = vmatprep.subr.mxu0 0.0
    %190 = vmatpush1.msra.mxu0 0.0
    %191 = vmatprep.subr.mxu0 0.0
    %192 = vmatpush1.msra.mxu0 0.0
    %193 = vmatprep.subr.mxu0 0.0
    %194 = vmatpush1.msra.mxu0 0.0
    %195 = vmatprep.subr.mxu0 0.0
    %196 = vmatpush1.msra.mxu0 0.0
    %197 = vmatprep.subr.mxu0 0.0
    %198 = vmatpush1.msra.mxu0 0.0
    %199 = vmatprep.subr.mxu0 0.0
    %200 = vmatpush1.msra.mxu0 0.0
    %201 = vmatprep.subr.mxu0 0.0
    %202 = vmatpush1.msra.mxu0 0.0
    %203 = vmatprep.subr.mxu0 0.0
    %204 = vmatpush1.msra.mxu0 0.0
    %205 = vmatprep.subr.mxu0 0.0
    %206 = vmatpush1.msra.mxu0 0.0
    %207 = vmatprep.subr.mxu0 0.0
    %208 = vmatpush1.msra.mxu0 0.0
    %209 = vmatprep.subr.mxu0 0.0
    %210 = vmatpush1.msra.mxu0 0.0
    %211 = vmatprep.subr.mxu0 0.0
    %212 = vmatpush1.msra.mxu0 0.0
    %213 = vmatprep.subr.mxu0 0.0
    %214 = vmatpush1.msra.mxu0 0.0
    %215 = vmatprep.mubr.f32.mxu0 0.0
    %216 = vmatmul.mubr.f32.gmra.mrb[0].mxu0 %v124
    %v217 = vpop.f32.mrb[0].mxu0
    %v218 = vadd.f32 %v120, %v217
    %v219 = vpop.f32.mrb[0].mxu0
    %220 = vmatprep.mubr.f32.mxu0 0.0
    %221 = vmatmul.mubr.f32.gmra.mrb[0].mxu0 %v127
    %v222 = vpop.f32.mrb[0].mxu0
    %v223 = vadd.f32 %v120, %v222
    %v224 = vpop.f32.mrb[0].mxu0
    %225 = vmatprep.mubr.f32.mxu0 0.0
    %226 = vmatmul.mubr.f32.gmra.mrb[0].mxu0 %v130
    %v227 = vpop.f32.mrb[0].mxu0
    %v228 = vadd.f32 %v120, %v227
    %v229 = vpop.f32.mrb[0].mxu0
    %230 = vmatprep.mubr.f32.mxu0 0.0
    %231 = vmatmul.mubr.f32.gmra.mrb[0].mxu0 %v133
    %v232 = vpop.f32.mrb[0].mxu0
    %v233 = vadd.f32 %v120, %v232
    %v234 = vpop.f32.mrb[0].mxu0
    %235 = vmatprep.mubr.f32.mxu0 0.0
    %236 = vmatmul.mubr.f32.gmra.mrb[0].mxu0 %v136
    %v237 = vpop.f32.mrb[0].mxu0
    %v238 = vadd.f32 %v120, %v237
    %v239 = vpop.f32.mrb[0].mxu0
    %240 = vmatprep.mubr.f32.mxu0 0.0
    %241 = vmatmul.mubr.f32.gmra.mrb[0].mxu0 %v139
    %v242 = vpop.f32.mrb[0].mxu0
    %v243 = vadd.f32 %v120, %v242
    %v244 = vpop.f32.mrb[0].mxu0
    %245 = vmatprep.mubr.f32.mxu0 0.0
    %246 = vmatmul.mubr.f32.gmra.mrb[0].mxu0 %v142
    %v247 = vpop.f32.mrb[0].mxu0
    %v248 = vadd.f32 %v120, %v247
    %v249 = vpop.f32.mrb[0].mxu0
    %250 = vmatprep.mubr.f32.mxu0 0.0
    %251 = vmatmul.mubr.f32.gmra.mrb[0].mxu0 %v145
    %v252 = vpop.f32.mrb[0].mxu0
    %v253 = vadd.f32 %v120, %v252
    %v254 = vpop.f32.mrb[0].mxu0
    %255 = vdwg.mxu0
    %v256 = vmax.f32 %v218, 0.0
    %v257 = vmax.f32 %v223, 0.0
    %v258 = vmax.f32 %v228, 0.0
    %v259 = vmax.f32 %v233, 0.0
    %v260 = vmax.f32 %v238, 0.0
    %v261 = vmax.f32 %v243, 0.0
    %v262 = vmax.f32 %v248, 0.0
    %v263 = vmax.f32 %v253, 0.0
    %v264 = vld [vmem:[%s3] sm:$0xff]
    %v265 = vld [vmem:[%s3 + $0x8] sm:$0xff]
    %v266 = vld [vmem:[%s3 + $0x10] sm:$0xff]
    %v267 = vld [vmem:[%s3 + $0x18] sm:$0xff]
    %v268 = vld [vmem:[%s3 + $0x20] sm:$0xff]
    %v269 = vld [vmem:[%s3 + $0x28] sm:$0xff]
    %v270 = vld [vmem:[%s3 + $0x30] sm:$0x3]
    %v271 = vld [vmem:[#allocation6] sm:$0x1]
    %v273 = vlaneseq
    %v274 = vshrl.u32 %v273, 7
    %v275 = vsub.s32 0, %v274
    %v276 = vrot.slane %v271, %v275
    %vm278 = vcmask 408576
    %v280 = vsel %vm278, %v256, 0
    %v283 = vsel %vm278, %v257, 0
    %v286 = vsel %vm278, %v258, 0
    %v289 = vsel %vm278, %v259, 0
    %v292 = vsel %vm278, %v260, 0
    %v295 = vsel %vm278, %v261, 0
    %v298 = vsel %vm278, %v262, 0
    %v301 = vsel %vm278, %v263, 0
    %vm303 = vcmask 1041408
    %v305 = vsel %vm303, %v270, 0
    %307 = vmatprep.subr.mxu0 0.0
    %308 = vmatpush1.msra.mxu0 %v264
    %309 = vmatprep.subr.mxu0 0.0
    %310 = vmatpush1.msra.mxu0 %v265
    %311 = vmatprep.subr.mxu0 0.0
    %312 = vmatpush1.msra.mxu0 %v266
    %313 = vmatprep.subr.mxu0 0.0
    %314 = vmatpush1.msra.mxu0 %v267
    %315 = vmatprep.subr.mxu0 0.0
    %316 = vmatpush1.msra.mxu0 %v268
    %317 = vmatprep.subr.mxu0 0.0
    %318 = vmatpush1.msra.mxu0 %v269
    %319 = vmatprep.subr.mxu0 0.0
    %320 = vmatpush1.msra.mxu0 %v305
    %321 = vmatprep.subr.mxu0 0.0
    %322 = vmatpush1.msra.mxu0 0.0
    %323 = vmatprep.subr.mxu0 0.0
    %324 = vmatpush1.msra.mxu0 0.0
    %325 = vmatprep.subr.mxu0 0.0
    %326 = vmatpush1.msra.mxu0 0.0
    %327 = vmatprep.subr.mxu0 0.0
    %328 = vmatpush1.msra.mxu0 0.0
    %329 = vmatprep.subr.mxu0 0.0
    %330 = vmatpush1.msra.mxu0 0.0
    %331 = vmatprep.subr.mxu0 0.0
    %332 = vmatpush1.msra.mxu0 0.0
    %333 = vmatprep.subr.mxu0 0.0
    %334 = vmatpush1.msra.mxu0 0.0
    %335 = vmatprep.subr.mxu0 0.0
    %336 = vmatpush1.msra.mxu0 0.0
    %337 = vmatprep.subr.mxu0 0.0
    %338 = vmatpush1.msra.mxu0 0.0
    %339 = vmatprep.subr.mxu0 0.0
    %340 = vmatpush1.msra.mxu0 0.0
    %341 = vmatprep.subr.mxu0 0.0
    %342 = vmatpush1.msra.mxu0 0.0
    %343 = vmatprep.subr.mxu0 0.0
    %344 = vmatpush1.msra.mxu0 0.0
    %345 = vmatprep.subr.mxu0 0.0
    %346 = vmatpush1.msra.mxu0 0.0
    %347 = vmatprep.subr.mxu0 0.0
    %348 = vmatpush1.msra.mxu0 0.0
    %349 = vmatprep.subr.mxu0 0.0
    %350 = vmatpush1.msra.mxu0 0.0
    %351 = vmatprep.subr.mxu0 0.0
    %352 = vmatpush1.msra.mxu0 0.0
    %353 = vmatprep.subr.mxu0 0.0
    %354 = vmatpush1.msra.mxu0 0.0
    %355 = vmatprep.subr.mxu0 0.0
    %356 = vmatpush1.msra.mxu0 0.0
    %357 = vmatprep.subr.mxu0 0.0
    %358 = vmatpush1.msra.mxu0 0.0
    %359 = vmatprep.subr.mxu0 0.0
    %360 = vmatpush1.msra.mxu0 0.0
    %361 = vmatprep.subr.mxu0 0.0
    %362 = vmatpush1.msra.mxu0 0.0
    %363 = vmatprep.subr.mxu0 0.0
    %364 = vmatpush1.msra.mxu0 0.0
    %365 = vmatprep.subr.mxu0 0.0
    %366 = vmatpush1.msra.mxu0 0.0
    %367 = vmatprep.subr.mxu0 0.0
    %368 = vmatpush1.msra.mxu0 0.0
    %369 = vmatprep.subr.mxu0 0.0
    %370 = vmatpush1.msra.mxu0 0.0
    %371 = vmatprep.mubr.f32.mxu0 0.0
    %372 = vmatmul.mubr.f32.gmra.mrb[0].mxu0 %v280
    %v373 = vpop.f32.mrb[0].mxu0
    %v374 = vadd.f32 %v276, %v373
    %v375 = vpop.f32.mrb[0].mxu0
    %376 = vmatprep.mubr.f32.mxu0 0.0
    %377 = vmatmul.mubr.f32.gmra.mrb[0].mxu0 %v283
    %v378 = vpop.f32.mrb[0].mxu0
    %v379 = vadd.f32 %v276, %v378
    %v380 = vpop.f32.mrb[0].mxu0
    %381 = vmatprep.mubr.f32.mxu0 0.0
    %382 = vmatmul.mubr.f32.gmra.mrb[0].mxu0 %v286
    %v383 = vpop.f32.mrb[0].mxu0
    %v384 = vadd.f32 %v276, %v383
    %v385 = vpop.f32.mrb[0].mxu0
    %386 = vmatprep.mubr.f32.mxu0 0.0
    %387 = vmatmul.mubr.f32.gmra.mrb[0].mxu0 %v289
    %v388 = vpop.f32.mrb[0].mxu0
    %v389 = vadd.f32 %v276, %v388
    %v390 = vpop.f32.mrb[0].mxu0
    %391 = vmatprep.mubr.f32.mxu0 0.0
    %392 = vmatmul.mubr.f32.gmra.mrb[0].mxu0 %v292
    %v393 = vpop.f32.mrb[0].mxu0
    %v394 = vadd.f32 %v276, %v393
    %v395 = vpop.f32.mrb[0].mxu0
    %396 = vmatprep.mubr.f32.mxu0 0.0
    %397 = vmatmul.mubr.f32.gmra.mrb[0].mxu0 %v295
    %v398 = vpop.f32.mrb[0].mxu0
    %v399 = vadd.f32 %v276, %v398
    %v400 = vpop.f32.mrb[0].mxu0
    %401 = vmatprep.mubr.f32.mxu0 0.0
    %402 = vmatmul.mubr.f32.gmra.mrb[0].mxu0 %v298
    %v403 = vpop.f32.mrb[0].mxu0
    %v404 = vadd.f32 %v276, %v403
    %v405 = vpop.f32.mrb[0].mxu0
    %406 = vmatprep.mubr.f32.mxu0 0.0
    %407 = vmatmul.mubr.f32.gmra.mrb[0].mxu0 %v301
    %v408 = vpop.f32.mrb[0].mxu0
    %v409 = vadd.f32 %v276, %v408
    %v410 = vpop.f32.mrb[0].mxu0
    %411 = vdwg.mxu0
    %vm412 = vcmask 80896
    %v413 = vsel %vm412, %v374, -inf
    %414 = vmax.xlane.f32.xlu0 %v413
    %v415 = vpop.xlane.xlu0 %414
    %v416 = vsel %vm412, %v379, -inf
    %417 = vmax.xlane.f32.xlu0 %v416
    %v418 = vpop.xlane.xlu0 %417
    %v419 = vsel %vm412, %v384, -inf
    %420 = vmax.xlane.f32.xlu0 %v419
    %v421 = vpop.xlane.xlu0 %420
    %v422 = vsel %vm412, %v389, -inf
    %423 = vmax.xlane.f32.xlu0 %v422
    %v424 = vpop.xlane.xlu0 %423
    %v425 = vsel %vm412, %v394, -inf
    %426 = vmax.xlane.f32.xlu0 %v425
    %v427 = vpop.xlane.xlu0 %426
    %v428 = vsel %vm412, %v399, -inf
    %429 = vmax.xlane.f32.xlu0 %v428
    %v430 = vpop.xlane.xlu0 %429
    %v431 = vsel %vm412, %v404, -inf
    %432 = vmax.xlane.f32.xlu0 %v431
    %v433 = vpop.xlane.xlu0 %432
    %v434 = vsel %vm412, %v409, -inf
    %435 = vmax.xlane.f32.xlu0 %v434
    %v436 = vpop.xlane.xlu0 %435
    %v437 = vlaneseq
    %v438 = vand.u32 %v437, 127
    %vm439 = vcmp.eq.f32.partialorder %v374, %v415
    %vm440 = vcmp.eq.f32.partialorder %v379, %v418
    %vm441 = vcmp.eq.f32.partialorder %v384, %v421
    %vm442 = vcmp.eq.f32.partialorder %v389, %v424
    %vm443 = vcmp.eq.f32.partialorder %v394, %v427
    %vm444 = vcmp.eq.f32.partialorder %v399, %v430
    %vm445 = vcmp.eq.f32.partialorder %v404, %v433
    %vm446 = vcmp.eq.f32.partialorder %v409, %v436
    %v447 = vsel %vm439, %v438, 10
    %v448 = vsel %vm440, %v438, 10
    %v449 = vsel %vm441, %v438, 10
    %v450 = vsel %vm442, %v438, 10
    %v451 = vsel %vm443, %v438, 10
    %v452 = vsel %vm444, %v438, 10
    %v453 = vsel %vm445, %v438, 10
    %v454 = vsel %vm446, %v438, 10
    %v455 = vsel %vm412, %v447, 2147483647
    %v456 = vand.u32 %v455, 65535
    %v457 = vshra.s32 %v455, 16
    %v458 = vcvt.s32.f32 %v456
    %v459 = vcvt.s32.f32 %v457
    %460 = vmin.xlane.f32.xlu0 %v459
    %v461 = vpop.xlane.xlu0 %460
    %vm462 = vcmp.eq.f32.partialorder %v459, %v461
    %v463 = vsel %vm462, %v458, inf
    %464 = vmin.xlane.f32.xlu0 %v463
    %v465 = vpop.xlane.xlu0 %464
    %v466 = vcvt.f32.s32 %v465
    %v467 = vcvt.f32.s32 %v461
    %v468 = vshll.u32 %v467, 16
    %v469 = vadd.s32 %v468, %v466
    %v470 = vsel %vm412, %v448, 2147483647
    %v471 = vand.u32 %v470, 65535
    %v472 = vshra.s32 %v470, 16
    %v473 = vcvt.s32.f32 %v471
    %v474 = vcvt.s32.f32 %v472
    %475 = vmin.xlane.f32.xlu0 %v474
    %v476 = vpop.xlane.xlu0 %475
    %vm477 = vcmp.eq.f32.partialorder %v474, %v476
    %v478 = vsel %vm477, %v473, inf
    %479 = vmin.xlane.f32.xlu0 %v478
    %v480 = vpop.xlane.xlu0 %479
    %v481 = vcvt.f32.s32 %v480
    %v482 = vcvt.f32.s32 %v476
    %v483 = vshll.u32 %v482, 16
    %v484 = vadd.s32 %v483, %v481
    %v485 = vsel %vm412, %v449, 2147483647
    %v486 = vand.u32 %v485, 65535
    %v487 = vshra.s32 %v485, 16
    %v488 = vcvt.s32.f32 %v486
    %v489 = vcvt.s32.f32 %v487
    %490 = vmin.xlane.f32.xlu0 %v489
    %v491 = vpop.xlane.xlu0 %490
    %vm492 = vcmp.eq.f32.partialorder %v489, %v491
    %v493 = vsel %vm492, %v488, inf
    %494 = vmin.xlane.f32.xlu0 %v493
    %v495 = vpop.xlane.xlu0 %494
    %v496 = vcvt.f32.s32 %v495
    %v497 = vcvt.f32.s32 %v491
    %v498 = vshll.u32 %v497, 16
    %v499 = vadd.s32 %v498, %v496
    %v500 = vsel %vm412, %v450, 2147483647
    %v501 = vand.u32 %v500, 65535
    %v502 = vshra.s32 %v500, 16
    %v503 = vcvt.s32.f32 %v501
    %v504 = vcvt.s32.f32 %v502
    %505 = vmin.xlane.f32.xlu0 %v504
    %v506 = vpop.xlane.xlu0 %505
    %vm507 = vcmp.eq.f32.partialorder %v504, %v506
    %v508 = vsel %vm507, %v503, inf
    %509 = vmin.xlane.f32.xlu0 %v508
    %v510 = vpop.xlane.xlu0 %509
    %v511 = vcvt.f32.s32 %v510
    %v512 = vcvt.f32.s32 %v506
    %v513 = vshll.u32 %v512, 16
    %v514 = vadd.s32 %v513, %v511
    %v515 = vsel %vm412, %v451, 2147483647
    %v516 = vand.u32 %v515, 65535
    %v517 = vshra.s32 %v515, 16
    %v518 = vcvt.s32.f32 %v516
    %v519 = vcvt.s32.f32 %v517
    %520 = vmin.xlane.f32.xlu0 %v519
    %v521 = vpop.xlane.xlu0 %520
    %vm522 = vcmp.eq.f32.partialorder %v519, %v521
    %v523 = vsel %vm522, %v518, inf
    %524 = vmin.xlane.f32.xlu0 %v523
    %v525 = vpop.xlane.xlu0 %524
    %v526 = vcvt.f32.s32 %v525
    %v527 = vcvt.f32.s32 %v521
    %v528 = vshll.u32 %v527, 16
    %v529 = vadd.s32 %v528, %v526
    %v530 = vsel %vm412, %v452, 2147483647
    %v531 = vand.u32 %v530, 65535
    %v532 = vshra.s32 %v530, 16
    %v533 = vcvt.s32.f32 %v531
    %v534 = vcvt.s32.f32 %v532
    %535 = vmin.xlane.f32.xlu0 %v534
    %v536 = vpop.xlane.xlu0 %535
    %vm537 = vcmp.eq.f32.partialorder %v534, %v536
    %v538 = vsel %vm537, %v533, inf
    %539 = vmin.xlane.f32.xlu0 %v538
    %v540 = vpop.xlane.xlu0 %539
    %v541 = vcvt.f32.s32 %v540
    %v542 = vcvt.f32.s32 %v536
    %v543 = vshll.u32 %v542, 16
    %v544 = vadd.s32 %v543, %v541
    %v545 = vsel %vm412, %v453, 2147483647
    %v546 = vand.u32 %v545, 65535
    %v547 = vshra.s32 %v545, 16
    %v548 = vcvt.s32.f32 %v546
    %v549 = vcvt.s32.f32 %v547
    %550 = vmin.xlane.f32.xlu0 %v549
    %v551 = vpop.xlane.xlu0 %550
    %vm552 = vcmp.eq.f32.partialorder %v549, %v551
    %v553 = vsel %vm552, %v548, inf
    %554 = vmin.xlane.f32.xlu0 %v553
    %v555 = vpop.xlane.xlu0 %554
    %v556 = vcvt.f32.s32 %v555
    %v557 = vcvt.f32.s32 %v551
    %v558 = vshll.u32 %v557, 16
    %v559 = vadd.s32 %v558, %v556
    %v560 = vsel %vm412, %v454, 2147483647
    %v561 = vand.u32 %v560, 65535
    %v562 = vshra.s32 %v560, 16
    %v563 = vcvt.s32.f32 %v561
    %v564 = vcvt.s32.f32 %v562
    %565 = vmin.xlane.f32.xlu0 %v564
    %v566 = vpop.xlane.xlu0 %565
    %vm567 = vcmp.eq.f32.partialorder %v564, %v566
    %v568 = vsel %vm567, %v563, inf
    %569 = vmin.xlane.f32.xlu0 %v568
    %v570 = vpop.xlane.xlu0 %569
    %v571 = vcvt.f32.s32 %v570
    %v572 = vcvt.f32.s32 %v566
    %v573 = vshll.u32 %v572, 16
    %v574 = vadd.s32 %v573, %v571
    %vm575 = vcmp.eq.s32.totalorder %v438, %v469
    %vm576 = vcmp.eq.s32.totalorder %v438, %v484
    %vm577 = vcmp.eq.s32.totalorder %v438, %v499
    %vm578 = vcmp.eq.s32.totalorder %v438, %v514
    %vm579 = vcmp.eq.s32.totalorder %v438, %v529
    %vm580 = vcmp.eq.s32.totalorder %v438, %v544
    %vm581 = vcmp.eq.s32.totalorder %v438, %v559
    %vm582 = vcmp.eq.s32.totalorder %v438, %v574
    %v583 = vsel %vm575, 1, 0
    %v584 = vsel %vm576, 1, 0
    %v585 = vsel %vm577, 1, 0
    %v586 = vsel %vm578, 1, 0
    %v587 = vsel %vm579, 1, 0
    %v588 = vsel %vm580, 1, 0
    %v589 = vsel %vm581, 1, 0
    %v590 = vsel %vm582, 1, 0
    %v591 = vcvt.s32.f32 %v583
    %v592 = vcvt.s32.f32 %v584
    %v593 = vcvt.s32.f32 %v585
    %v594 = vcvt.s32.f32 %v586
    %v595 = vcvt.s32.f32 %v587
    %v596 = vcvt.s32.f32 %v588
    %v597 = vcvt.s32.f32 %v589
    %v598 = vcvt.s32.f32 %v590
    %v599 = vpack.c.bf16 %v592, %v591
    %v600 = vpack.c.bf16 %v594, %v593
    %v601 = vpack.c.bf16 %v596, %v595
    %v602 = vpack.c.bf16 %v598, %v597
    %v603 = vld [vmem:[%s5] sm:$0xff]
    %v604 = vld [vmem:[%s5 + $0x8] sm:$0xff]
    %v605 = vld [vmem:[%s5 + $0x10] sm:$0xff]
    %v606 = vld [vmem:[%s5 + $0x18] sm:$0xff]
    %v607 = vld [vmem:[%s5 + $0x20] sm:$0xff]
    %v608 = vld [vmem:[%s5 + $0x28] sm:$0xff]
    %v609 = vld [vmem:[%s5 + $0x30] sm:$0xff]
    %v610 = vld [vmem:[%s5 + $0x38] sm:$0xff]
    %v611 = vld [vmem:[#allocation9] sm:$0x3]
    %v613 = vlaneseq
    %v614 = vshrl.u32 %v613, 7
    %v615 = vsub.s32 0, %v614
    %v616 = vrot.slane %v611, %v615
    %v617 = vlaneseq
    %v618 = vshrl.u32 %v617, 7
    %v619 = vsub.s32 1, %v618
    %v620 = vrot.slane %v611, %v619
    %v631 = vunpack.c.l.b16 %v603
    %v632 = vunpack.c.h.b16 %v603
    %v633 = vunpack.c.l.b16 %v604
    %v634 = vunpack.c.h.b16 %v604
    %v635 = vunpack.c.l.b16 %v605
    %v636 = vunpack.c.h.b16 %v605
    %v637 = vunpack.c.l.b16 %v606
    %v638 = vunpack.c.h.b16 %v606
    %v639 = vunpack.c.l.b16 %v607
    %v640 = vunpack.c.h.b16 %v607
    %v641 = vunpack.c.l.b16 %v608
    %v642 = vunpack.c.h.b16 %v608
    %v643 = vunpack.c.l.b16 %v609
    %v644 = vunpack.c.h.b16 %v609
    %v645 = vunpack.c.l.b16 %v610
    %v646 = vunpack.c.h.b16 %v610
    %v647 = vpack.c.b16 %v633, %v631
    %v648 = vpack.c.b16 %v634, %v632
    %v649 = vpack.c.b16 %v637, %v635
    %v650 = vpack.c.b16 %v638, %v636
    %v651 = vpack.c.b16 %v641, %v639
    %v652 = vpack.c.b16 %v642, %v640
    %v653 = vpack.c.b16 %v645, %v643
    %v654 = vpack.c.b16 %v646, %v644
    %vm663 = vcmask 523264
    %v665 = vsel %vm663, %v599, 0
    %v668 = vsel %vm663, %v600, 0
    %v671 = vsel %vm663, %v601, 0
    %v674 = vsel %vm663, %v602, 0
    %676 = vmatprep.subr.bf16.mxu0 %v648
    %677 = vmatpush1.bf16.msra.mxu0 %v647
    %678 = vmatprep.subr.bf16.mxu0 %v650
    %679 = vmatpush1.bf16.msra.mxu0 %v649
    %680 = vmatprep.subr.bf16.mxu0 %v652
    %681 = vmatpush1.bf16.msra.mxu0 %v651
    %682 = vmatprep.subr.bf16.mxu0 %v654
    %683 = vmatpush1.bf16.msra.mxu0 %v653
    %684 = vmatprep.subr.bf16.mxu0 0
    %685 = vmatpush1.bf16.msra.mxu0 0
    %686 = vmatprep.subr.bf16.mxu0 0
    %687 = vmatpush1.bf16.msra.mxu0 0
    %688 = vmatprep.subr.bf16.mxu0 0
    %689 = vmatpush1.bf16.msra.mxu0 0
    %690 = vmatprep.subr.bf16.mxu0 0
    %691 = vmatpush1.bf16.msra.mxu0 0
    %692 = vmatprep.subr.bf16.mxu0 0
    %693 = vmatpush1.bf16.msra.mxu0 0
    %694 = vmatprep.subr.bf16.mxu0 0
    %695 = vmatpush1.bf16.msra.mxu0 0
    %696 = vmatprep.subr.bf16.mxu0 0
    %697 = vmatpush1.bf16.msra.mxu0 0
    %698 = vmatprep.subr.bf16.mxu0 0
    %699 = vmatpush1.bf16.msra.mxu0 0
    %700 = vmatprep.subr.bf16.mxu0 0
    %701 = vmatpush1.bf16.msra.mxu0 0
    %702 = vmatprep.subr.bf16.mxu0 0
    %703 = vmatpush1.bf16.msra.mxu0 0
    %704 = vmatprep.subr.bf16.mxu0 0
    %705 = vmatpush1.bf16.msra.mxu0 0
    %706 = vmatprep.subr.bf16.mxu0 0
    %707 = vmatpush1.bf16.msra.mxu0 0
    %708 = vmatprep.mubr.bf16.mxu0 0
    %709 = vmatmul.mubr.bf16.gmra.mrb[0].mxu0 %v665
    %v710 = vpop.f32.mrb[0].mxu0
    %v711 = vadd.f32 %v616, %v710
    %v712 = vpop.f32.mrb[0].mxu0
    %v713 = vadd.f32 %v620, %v712
    %v714 = vpop.f32.mrb[0].mxu0
    %v715 = vadd.f32 %v616, %v714
    %v716 = vpop.f32.mrb[0].mxu0
    %v717 = vadd.f32 %v620, %v716
    %718 = vmatprep.mubr.bf16.mxu0 0
    %719 = vmatmul.mubr.bf16.gmra.mrb[0].mxu0 %v668
    %v720 = vpop.f32.mrb[0].mxu0
    %v721 = vadd.f32 %v616, %v720
    %v722 = vpop.f32.mrb[0].mxu0
    %v723 = vadd.f32 %v620, %v722
    %v724 = vpop.f32.mrb[0].mxu0
    %v725 = vadd.f32 %v616, %v724
    %v726 = vpop.f32.mrb[0].mxu0
    %v727 = vadd.f32 %v620, %v726
    %728 = vmatprep.mubr.bf16.mxu0 0
    %729 = vmatmul.mubr.bf16.gmra.mrb[0].mxu0 %v671
    %v730 = vpop.f32.mrb[0].mxu0
    %v731 = vadd.f32 %v616, %v730
    %v732 = vpop.f32.mrb[0].mxu0
    %v733 = vadd.f32 %v620, %v732
    %v734 = vpop.f32.mrb[0].mxu0
    %v735 = vadd.f32 %v616, %v734
    %v736 = vpop.f32.mrb[0].mxu0
    %v737 = vadd.f32 %v620, %v736
    %738 = vmatprep.mubr.bf16.mxu0 0
    %739 = vmatmul.mubr.bf16.gmra.mrb[0].mxu0 %v674
    %v740 = vpop.f32.mrb[0].mxu0
    %v741 = vadd.f32 %v616, %v740
    %v742 = vpop.f32.mrb[0].mxu0
    %v743 = vadd.f32 %v620, %v742
    %v744 = vpop.f32.mrb[0].mxu0
    %v745 = vadd.f32 %v616, %v744
    %v746 = vpop.f32.mrb[0].mxu0
    %v747 = vadd.f32 %v620, %v746
    %748 = vdwg.mxu0
    %749 = vst [vmem:[#allocation2] sm:$0xff] %v711
    %750 = vst [vmem:[#allocation2 + $0x8] sm:$0xff] %v713
    %751 = vst [vmem:[#allocation2 + $0x10] sm:$0xff] %v715
    %752 = vst [vmem:[#allocation2 + $0x18] sm:$0xff] %v717
    %753 = vst [vmem:[#allocation2 + $0x20] sm:$0xff] %v721
    %754 = vst [vmem:[#allocation2 + $0x28] sm:$0xff] %v723
    %755 = vst [vmem:[#allocation2 + $0x30] sm:$0xff] %v725
    %756 = vst [vmem:[#allocation2 + $0x38] sm:$0xff] %v727
    %757 = vst [vmem:[#allocation2 + $0x40] sm:$0xff] %v731
    %758 = vst [vmem:[#allocation2 + $0x48] sm:$0xff] %v733
    %759 = vst [vmem:[#allocation2 + $0x50] sm:$0xff] %v735
    %760 = vst [vmem:[#allocation2 + $0x58] sm:$0xff] %v737
    %761 = vst [vmem:[#allocation2 + $0x60] sm:$0xff] %v741
    %762 = vst [vmem:[#allocation2 + $0x68] sm:$0xff] %v743
    %763 = vst [vmem:[#allocation2 + $0x70] sm:$0xff] %v745
    %764 = vst [vmem:[#allocation2 + $0x78] sm:$0xff] %v747
    %vm765 = vcmp.lt.s32.totalorder %v438, 64
    %v766 = vld [vmem:[#allocation2] sm:$0xff]
    %v767 = vld [vmem:[#allocation2 + $0x8] sm:$0xff]
    %v768 = vld [vmem:[#allocation8] sm:$0xff]
    %v769 = vld [vmem:[#allocation8 + $0x8] sm:$0xff]
    %v770 = vld [vmem:[#allocation8 + $0x10] sm:$0xff]
    %v771 = vld [vmem:[#allocation8 + $0x18] sm:$0xff]
    %v772 = vld [vmem:[#allocation8 + $0x20] sm:$0xff]
    %v773 = vld [vmem:[#allocation8 + $0x28] sm:$0xff]
    %v774 = vld [vmem:[#allocation8 + $0x30] sm:$0xff]
    %v775 = vld [vmem:[#allocation8 + $0x38] sm:$0xff]
    %v784 = vunpack.c.l.b16 %v768
    %v785 = vunpack.c.h.b16 %v768
    %v786 = vunpack.c.l.b16 %v769
    %v787 = vunpack.c.h.b16 %v769
    %v788 = vunpack.c.l.b16 %v770
    %v789 = vunpack.c.h.b16 %v770
    %v790 = vunpack.c.l.b16 %v771
    %v791 = vunpack.c.h.b16 %v771
    %v792 = vunpack.c.l.b16 %v772
    %v793 = vunpack.c.h.b16 %v772
    %v794 = vunpack.c.l.b16 %v773
    %v795 = vunpack.c.h.b16 %v773
    %v796 = vunpack.c.l.b16 %v774
    %v797 = vunpack.c.h.b16 %v774
    %v798 = vunpack.c.l.b16 %v775
    %v799 = vunpack.c.h.b16 %v775
    %v800 = vpack.c.b16 %v786, %v784
    %v801 = vpack.c.b16 %v787, %v785
    %v802 = vpack.c.b16 %v790, %v788
    %v803 = vpack.c.b16 %v791, %v789
    %v804 = vpack.c.b16 %v794, %v792
    %v805 = vpack.c.b16 %v795, %v793
    %v806 = vpack.c.b16 %v798, %v796
    %v807 = vpack.c.b16 %v799, %v797
    %v817 = vsel %vm663, 0, 0
    %819 = vmatprep.subr.bf16.mxu0 %v801
    %820 = vmatpush1.bf16.msra.mxu0 %v800
    %821 = vmatprep.subr.bf16.mxu0 %v803
    %822 = vmatpush1.bf16.msra.mxu0 %v802
    %823 = vmatprep.subr.bf16.mxu0 %v805
    %824 = vmatpush1.bf16.msra.mxu0 %v804
    %825 = vmatprep.subr.bf16.mxu0 %v807
    %826 = vmatpush1.bf16.msra.mxu0 %v806
    %827 = vmatprep.subr.bf16.mxu0 0
    %828 = vmatpush1.bf16.msra.mxu0 0
    %829 = vmatprep.subr.bf16.mxu0 0
    %830 = vmatpush1.bf16.msra.mxu0 0
    %831 = vmatprep.subr.bf16.mxu0 0
    %832 = vmatpush1.bf16.msra.mxu0 0
    %833 = vmatprep.subr.bf16.mxu0 0
    %834 = vmatpush1.bf16.msra.mxu0 0
    %835 = vmatprep.subr.bf16.mxu0 0
    %836 = vmatpush1.bf16.msra.mxu0 0
    %837 = vmatprep.subr.bf16.mxu0 0
    %838 = vmatpush1.bf16.msra.mxu0 0
    %839 = vmatprep.subr.bf16.mxu0 0
    %840 = vmatpush1.bf16.msra.mxu0 0
    %841 = vmatprep.subr.bf16.mxu0 0
    %842 = vmatpush1.bf16.msra.mxu0 0
    %843 = vmatprep.subr.bf16.mxu0 0
    %844 = vmatpush1.bf16.msra.mxu0 0
    %845 = vmatprep.subr.bf16.mxu0 0
    %846 = vmatpush1.bf16.msra.mxu0 0
    %847 = vmatprep.subr.bf16.mxu0 0
    %848 = vmatpush1.bf16.msra.mxu0 0
    %849 = vmatprep.subr.bf16.mxu0 0
    %850 = vmatpush1.bf16.msra.mxu0 0
    %851 = vmatprep.mubr.bf16.mxu0 0
    %852 = vmatmul.mubr.bf16.gmra.mrb[0].mxu0 %v817
    %v853 = vpop.f32.mrb[0].mxu0
    %v854 = vadd.f32 0.0, %v853
    %v855 = vpop.f32.mrb[0].mxu0
    %v856 = vadd.f32 0.0, %v855
    %v857 = vpop.f32.mrb[0].mxu0
    %v858 = vpop.f32.mrb[0].mxu0
    %859 = vdwg.mxu0
    %v860 = vadd.f32 %v766, %v854
    %v861 = vadd.f32 %v767, %v856
    %v862 = vmul.f32 %v860, 0.5
    %v863 = vtanh.pop %v862
    %v864 = vadd.f32 %v863, 1.0
    %v865 = vmul.f32 %v864, 0.5
    %v866 = vmul.f32 %v861, 0.5
    %v867 = vtanh.pop %v866
    %v868 = vadd.f32 %v867, 1.0
    %v869 = vmul.f32 %v868, 0.5
    %v870 = vtanh.pop %v861
    %v871 = vsel %vm765, %v869, %v870
    %v872 = vmul.f32 %v865, 0.0
    %874 = vrot.lane.b32.xlu0 %v871, 64
    %v875 = vpop.permute.xlu0 %874
    %v877 = vmul.f32 %v865, %v875
    %879 = vrot.lane.b32.xlu0 %v877, 64
    %v880 = vpop.permute.xlu0 %879
    %v882 = vadd.f32 %v872, %v880
    %v883 = vtanh.pop %v882
    %885 = vrot.lane.b32.xlu0 %v883, 64
    %v886 = vpop.permute.xlu0 %885
    %v888 = vmul.f32 %v871, %v886
    %v889 = vld [vmem:[#allocation2 + $0x10] sm:$0xff]
    %v890 = vld [vmem:[#allocation2 + $0x18] sm:$0xff]
    %v891 = vpack.c.bf16 %v888, %v888
    %v893 = vsel %vm663, %v891, 0
    %895 = vmatprep.subr.bf16.mxu0 %v801
    %896 = vmatpush1.bf16.msra.mxu0 %v800
    %897 = vmatprep.subr.bf16.mxu0 %v803
    %898 = vmatpush1.bf16.msra.mxu0 %v802
    %899 = vmatprep.subr.bf16.mxu0 %v805
    %900 = vmatpush1.bf16.msra.mxu0 %v804
    %901 = vmatprep.subr.bf16.mxu0 %v807
    %902 = vmatpush1.bf16.msra.mxu0 %v806
    %903 = vmatprep.subr.bf16.mxu0 0
    %904 = vmatpush1.bf16.msra.mxu0 0
    %905 = vmatprep.subr.bf16.mxu0 0
    %906 = vmatpush1.bf16.msra.mxu0 0
    %907 = vmatprep.subr.bf16.mxu0 0
    %908 = vmatpush1.bf16.msra.mxu0 0
    %909 = vmatprep.subr.bf16.mxu0 0
    %910 = vmatpush1.bf16.msra.mxu0 0
    %911 = vmatprep.subr.bf16.mxu0 0
    %912 = vmatpush1.bf16.msra.mxu0 0
    %913 = vmatprep.subr.bf16.mxu0 0
    %914 = vmatpush1.bf16.msra.mxu0 0
    %915 = vmatprep.subr.bf16.mxu0 0
    %916 = vmatpush1.bf16.msra.mxu0 0
    %917 = vmatprep.subr.bf16.mxu0 0
    %918 = vmatpush1.bf16.msra.mxu0 0
    %919 = vmatprep.subr.bf16.mxu0 0
    %920 = vmatpush1.bf16.msra.mxu0 0
    %921 = vmatprep.subr.bf16.mxu0 0
    %922 = vmatpush1.bf16.msra.mxu0 0
    %923 = vmatprep.subr.bf16.mxu0 0
    %924 = vmatpush1.bf16.msra.mxu0 0
    %925 = vmatprep.subr.bf16.mxu0 0
    %926 = vmatpush1.bf16.msra.mxu0 0
    %927 = vmatprep.mubr.bf16.mxu0 0
    %928 = vmatmul.mubr.bf16.gmra.mrb[0].mxu0 %v893
    %v929 = vpop.f32.mrb[0].mxu0
    %v930 = vadd.f32 0.0, %v929
    %v931 = vpop.f32.mrb[0].mxu0
    %v932 = vadd.f32 0.0, %v931
    %v933 = vpop.f32.mrb[0].mxu0
    %v934 = vpop.f32.mrb[0].mxu0
    %935 = vdwg.mxu0
    %v936 = vadd.f32 %v889, %v930
    %v937 = vadd.f32 %v890, %v932
    %v938 = vmul.f32 %v936, 0.5
    %v939 = vtanh.pop %v938
    %v940 = vadd.f32 %v939, 1.0
    %v941 = vmul.f32 %v940, 0.5
    %v942 = vmul.f32 %v937, 0.5
    %v943 = vtanh.pop %v942
    %v944 = vadd.f32 %v943, 1.0
    %v945 = vmul.f32 %v944, 0.5
    %v946 = vtanh.pop %v937
    %v947 = vsel %vm765, %v945, %v946
    %v948 = vmul.f32 %v941, %v882
    %950 = vrot.lane.b32.xlu0 %v947, 64
    %v951 = vpop.permute.xlu0 %950
    %v953 = vmul.f32 %v941, %v951
    %955 = vrot.lane.b32.xlu0 %v953, 64
    %v956 = vpop.permute.xlu0 %955
    %v958 = vadd.f32 %v948, %v956
    %v959 = vtanh.pop %v958
    %961 = vrot.lane.b32.xlu0 %v959, 64
    %v962 = vpop.permute.xlu0 %961
    %v964 = vmul.f32 %v947, %v962
    %v965 = vsel %vm663, %v888, 0.0
    %v966 = vpack.c.bf16 %v965, %v965
    %v967 = vld [vmem:[%s8] sm:$0xff]
    %v968 = vld [vmem:[%s8 + $0x8] sm:$0xff]
    %v969 = vld [vmem:[%s8 + $0x10] sm:$0xff]
    %v970 = vld [vmem:[%s8 + $0x18] sm:$0xff]
    %v971 = vld [vmem:[%s8 + $0x20] sm:$0xff]
    %v972 = vld [vmem:[%s8 + $0x28] sm:$0xff]
    %v973 = vld [vmem:[%s8 + $0x30] sm:$0xff]
    %v974 = vld [vmem:[%s8 + $0x38] sm:$0xff]
    %v975 = vld [vmem:[%s8 + $0x40] sm:$0xff]
    %v976 = vld [vmem:[%s8 + $0x48] sm:$0xff]
    %v977 = vld [vmem:[%s8 + $0x50] sm:$0xff]
    %v978 = vld [vmem:[%s8 + $0x58] sm:$0xff]
    %v979 = vld [vmem:[%s8 + $0x60] sm:$0xff]
    %v980 = vld [vmem:[%s8 + $0x68] sm:$0xff]
    %v981 = vld [vmem:[%s8 + $0x70] sm:$0xff]
    %v982 = vld [vmem:[%s8 + $0x78] sm:$0xff]
    %v983 = vld [vmem:[#allocation11] sm:$0x3]
    %v985 = vlaneseq
    %v986 = vshrl.u32 %v985, 7
    %v987 = vsub.s32 0, %v986
    %v988 = vrot.slane %v983, %v987
    %v989 = vlaneseq
    %v990 = vshrl.u32 %v989, 7
    %v991 = vsub.s32 1, %v990
    %v992 = vrot.slane %v983, %v991
    %v1011 = vunpack.c.l.b16 %v967
    %v1012 = vunpack.c.h.b16 %v967
    %v1013 = vunpack.c.l.b16 %v968
    %v1014 = vunpack.c.h.b16 %v968
    %v1015 = vunpack.c.l.b16 %v969
    %v1016 = vunpack.c.h.b16 %v969
    %v1017 = vunpack.c.l.b16 %v970
    %v1018 = vunpack.c.h.b16 %v970
    %v1019 = vunpack.c.l.b16 %v971
    %v1020 = vunpack.c.h.b16 %v971
    %v1021 = vunpack.c.l.b16 %v972
    %v1022 = vunpack.c.h.b16 %v972
    %v1023 = vunpack.c.l.b16 %v973
    %v1024 = vunpack.c.h.b16 %v973
    %v1025 = vunpack.c.l.b16 %v974
    %v1026 = vunpack.c.h.b16 %v974
    %v1027 = vunpack.c.l.b16 %v975
    %v1028 = vunpack.c.h.b16 %v975
    %v1029 = vunpack.c.l.b16 %v976
    %v1030 = vunpack.c.h.b16 %v976
    %v1031 = vunpack.c.l.b16 %v977
    %v1032 = vunpack.c.h.b16 %v977
    %v1033 = vunpack.c.l.b16 %v978
    %v1034 = vunpack.c.h.b16 %v978
    %v1035 = vunpack.c.l.b16 %v979
    %v1036 = vunpack.c.h.b16 %v979
    %v1037 = vunpack.c.l.b16 %v980
    %v1038 = vunpack.c.h.b16 %v980
    %v1039 = vunpack.c.l.b16 %v981
    %v1040 = vunpack.c.h.b16 %v981
    %v1041 = vunpack.c.l.b16 %v982
    %v1042 = vunpack.c.h.b16 %v982
    %v1043 = vpack.c.b16 %v1013, %v1011
    %v1044 = vpack.c.b16 %v1014, %v1012
    %v1045 = vpack.c.b16 %v1017, %v1015
    %v1046 = vpack.c.b16 %v1018, %v1016
    %v1047 = vpack.c.b16 %v1021, %v1019
    %v1048 = vpack.c.b16 %v1022, %v1020
    %v1049 = vpack.c.b16 %v1025, %v1023
    %v1050 = vpack.c.b16 %v1026, %v1024
    %v1051 = vpack.c.b16 %v1029, %v1027
    %v1052 = vpack.c.b16 %v1030, %v1028
    %v1053 = vpack.c.b16 %v1033, %v1031
    %v1054 = vpack.c.b16 %v1034, %v1032
    %v1055 = vpack.c.b16 %v1037, %v1035
    %v1056 = vpack.c.b16 %v1038, %v1036
    %v1057 = vpack.c.b16 %v1041, %v1039
    %v1058 = vpack.c.b16 %v1042, %v1040
    %1075 = vmatprep.subr.bf16.mxu0 %v1044
    %1076 = vmatpush1.bf16.msra.mxu0 %v1043
    %1077 = vmatprep.subr.bf16.mxu0 %v1046
    %1078 = vmatpush1.bf16.msra.mxu0 %v1045
    %1079 = vmatprep.subr.bf16.mxu0 %v1048
    %1080 = vmatpush1.bf16.msra.mxu0 %v1047
    %1081 = vmatprep.subr.bf16.mxu0 %v1050
    %1082 = vmatpush1.bf16.msra.mxu0 %v1049
    %1083 = vmatprep.subr.bf16.mxu0 %v1052
    %1084 = vmatpush1.bf16.msra.mxu0 %v1051
    %1085 = vmatprep.subr.bf16.mxu0 %v1054
    %1086 = vmatpush1.bf16.msra.mxu0 %v1053
    %1087 = vmatprep.subr.bf16.mxu0 %v1056
    %1088 = vmatpush1.bf16.msra.mxu0 %v1055
    %1089 = vmatprep.subr.bf16.mxu0 %v1058
    %1090 = vmatpush1.bf16.msra.mxu0 %v1057
    %1091 = vmatprep.subr.bf16.mxu0 0
    %1092 = vmatpush1.bf16.msra.mxu0 0
    %1093 = vmatprep.subr.bf16.mxu0 0
    %1094 = vmatpush1.bf16.msra.mxu0 0
    %1095 = vmatprep.subr.bf16.mxu0 0
    %1096 = vmatpush1.bf16.msra.mxu0 0
    %1097 = vmatprep.subr.bf16.mxu0 0
    %1098 = vmatpush1.bf16.msra.mxu0 0
    %1099 = vmatprep.subr.bf16.mxu0 0
    %1100 = vmatpush1.bf16.msra.mxu0 0
    %1101 = vmatprep.subr.bf16.mxu0 0
    %1102 = vmatpush1.bf16.msra.mxu0 0
    %1103 = vmatprep.subr.bf16.mxu0 0
    %1104 = vmatpush1.bf16.msra.mxu0 0
    %1105 = vmatprep.subr.bf16.mxu0 0
    %1106 = vmatpush1.bf16.msra.mxu0 0
    %1107 = vmatprep.mubr.bf16.mxu0 0
    %1108 = vmatmul.mubr.bf16.gmra.mrb[0].mxu0 %v966
    %v1109 = vpop.f32.mrb[0].mxu0
    %v1110 = vadd.f32 %v988, %v1109
    %v1111 = vpop.f32.mrb[0].mxu0
    %v1112 = vadd.f32 %v992, %v1111
    %v1113 = vpop.f32.mrb[0].mxu0
    %v1114 = vpop.f32.mrb[0].mxu0
    %1115 = vdwg.mxu0
    %v1116 = vmul.f32 %v1110, 0.5
    %v1117 = vtanh.pop %v1116
    %v1118 = vadd.f32 %v1117, 1.0
    %v1119 = vmul.f32 %v1118, 0.5
    %v1120 = vmul.f32 %v1112, 0.5
    %v1121 = vtanh.pop %v1120
    %v1122 = vadd.f32 %v1121, 1.0
    %v1123 = vmul.f32 %v1122, 0.5
    %v1124 = vtanh.pop %v1112
    %v1125 = vsel %vm765, %v1123, %v1124
    %v1126 = vmul.f32 %v1119, 0.0
    %1128 = vrot.lane.b32.xlu0 %v1125, 64
    %v1129 = vpop.permute.xlu0 %1128
    %v1131 = vmul.f32 %v1119, %v1129
    %1133 = vrot.lane.b32.xlu0 %v1131, 64
    %v1134 = vpop.permute.xlu0 %1133
    %v1136 = vadd.f32 %v1126, %v1134
    %v1137 = vtanh.pop %v1136
    %1139 = vrot.lane.b32.xlu0 %v1137, 64
    %v1140 = vpop.permute.xlu0 %1139
    %v1142 = vmul.f32 %v1125, %v1140
    %v1143 = vld [vmem:[#allocation2 + $0x20] sm:$0xff]
    %v1144 = vld [vmem:[#allocation2 + $0x28] sm:$0xff]
    %v1145 = vpack.c.bf16 %v964, %v964
    %v1147 = vsel %vm663, %v1145, 0
    %1149 = vmatprep.subr.bf16.mxu0 %v801
    %1150 = vmatpush1.bf16.msra.mxu0 %v800
    %1151 = vmatprep.subr.bf16.mxu0 %v803
    %1152 = vmatpush1.bf16.msra.mxu0 %v802
    %1153 = vmatprep.subr.bf16.mxu0 %v805
    %1154 = vmatpush1.bf16.msra.mxu0 %v804
    %1155 = vmatprep.subr.bf16.mxu0 %v807
    %1156 = vmatpush1.bf16.msra.mxu0 %v806
    %1157 = vmatprep.subr.bf16.mxu0 0
    %1158 = vmatpush1.bf16.msra.mxu0 0
    %1159 = vmatprep.subr.bf16.mxu0 0
    %1160 = vmatpush1.bf16.msra.mxu0 0
    %1161 = vmatprep.subr.bf16.mxu0 0
    %1162 = vmatpush1.bf16.msra.mxu0 0
    %1163 = vmatprep.subr.bf16.mxu0 0
    %1164 = vmatpush1.bf16.msra.mxu0 0
    %1165 = vmatprep.subr.bf16.mxu0 0
    %1166 = vmatpush1.bf16.msra.mxu0 0
    %1167 = vmatprep.subr.bf16.mxu0 0
    %1168 = vmatpush1.bf16.msra.mxu0 0
    %1169 = vmatprep.subr.bf16.mxu0 0
    %1170 = vmatpush1.bf16.msra.mxu0 0
    %1171 = vmatprep.subr.bf16.mxu0 0
    %1172 = vmatpush1.bf16.msra.mxu0 0
    %1173 = vmatprep.subr.bf16.mxu0 0
    %1174 = vmatpush1.bf16.msra.mxu0 0
    %1175 = vmatprep.subr.bf16.mxu0 0
    %1176 = vmatpush1.bf16.msra.mxu0 0
    %1177 = vmatprep.subr.bf16.mxu0 0
    %1178 = vmatpush1.bf16.msra.mxu0 0
    %1179 = vmatprep.subr.bf16.mxu0 0
    %1180 = vmatpush1.bf16.msra.mxu0 0
    %1181 = vmatprep.mubr.bf16.mxu0 0
    %1182 = vmatmul.mubr.bf16.gmra.mrb[0].mxu0 %v1147
    %v1183 = vpop.f32.mrb[0].mxu0
    %v1184 = vadd.f32 0.0, %v1183
    %v1185 = vpop.f32.mrb[0].mxu0
    %v1186 = vadd.f32 0.0, %v1185
    %v1187 = vpop.f32.mrb[0].mxu0
    %v1188 = vpop.f32.mrb[0].mxu0
    %1189 = vdwg.mxu0
    %v1190 = vadd.f32 %v1143, %v1184
    %v1191 = vadd.f32 %v1144, %v1186
    %v1192 = vmul.f32 %v1190, 0.5
    %v1193 = vtanh.pop %v1192
    %v1194 = vadd.f32 %v1193, 1.0
    %v1195 = vmul.f32 %v1194, 0.5
    %v1196 = vmul.f32 %v1191, 0.5
    %v1197 = vtanh.pop %v1196
    %v1198 = vadd.f32 %v1197, 1.0
    %v1199 = vmul.f32 %v1198, 0.5
    %v1200 = vtanh.pop %v1191
    %v1201 = vsel %vm765, %v1199, %v1200
    %v1202 = vmul.f32 %v1195, %v958
    %1204 = vrot.lane.b32.xlu0 %v1201, 64
    %v1205 = vpop.permute.xlu0 %1204
    %v1207 = vmul.f32 %v1195, %v1205
    %1209 = vrot.lane.b32.xlu0 %v1207, 64
    %v1210 = vpop.permute.xlu0 %1209
    %v1212 = vadd.f32 %v1202, %v1210
    %v1213 = vtanh.pop %v1212
    %1215 = vrot.lane.b32.xlu0 %v1213, 64
    %v1216 = vpop.permute.xlu0 %1215
    %v1218 = vmul.f32 %v1201, %v1216
    %1220 = vrot.lane.b32.xlu0 %v1142, 64
    %v1221 = vpop.permute.xlu0 %1220
    %v1223 = vsel %vm663, %v964, %v1221
    %v1224 = vpack.c.bf16 %v1223, %v1223
    %1225 = vmatprep.subr.bf16.mxu0 %v1044
    %1226 = vmatpush1.bf16.msra.mxu0 %v1043
    %1227 = vmatprep.subr.bf16.mxu0 %v1046
    %1228 = vmatpush1.bf16.msra.mxu0 %v1045
    %1229 = vmatprep.subr.bf16.mxu0 %v1048
    %1230 = vmatpush1.bf16.msra.mxu0 %v1047
    %1231 = vmatprep.subr.bf16.mxu0 %v1050
    %1232 = vmatpush1.bf16.msra.mxu0 %v1049
    %1233 = vmatprep.subr.bf16.mxu0 %v1052
    %1234 = vmatpush1.bf16.msra.mxu0 %v1051
    %1235 = vmatprep.subr.bf16.mxu0 %v1054
    %1236 = vmatpush1.bf16.msra.mxu0 %v1053
    %1237 = vmatprep.subr.bf16.mxu0 %v1056
    %1238 = vmatpush1.bf16.msra.mxu0 %v1055
    %1239 = vmatprep.subr.bf16.mxu0 %v1058
    %1240 = vmatpush1.bf16.msra.mxu0 %v1057
    %1241 = vmatprep.subr.bf16.mxu0 0
    %1242 = vmatpush1.bf16.msra.mxu0 0
    %1243 = vmatprep.subr.bf16.mxu0 0
    %1244 = vmatpush1.bf16.msra.mxu0 0
    %1245 = vmatprep.subr.bf16.mxu0 0
    %1246 = vmatpush1.bf16.msra.mxu0 0
    %1247 = vmatprep.subr.bf16.mxu0 0
    %1248 = vmatpush1.bf16.msra.mxu0 0
    %1249 = vmatprep.subr.bf16.mxu0 0
    %1250 = vmatpush1.bf16.msra.mxu0 0
    %1251 = vmatprep.subr.bf16.mxu0 0
    %1252 = vmatpush1.bf16.msra.mxu0 0
    %1253 = vmatprep.subr.bf16.mxu0 0
    %1254 = vmatpush1.bf16.msra.mxu0 0
    %1255 = vmatprep.subr.bf16.mxu0 0
    %1256 = vmatpush1.bf16.msra.mxu0 0
    %1257 = vmatprep.mubr.bf16.mxu0 0
    %1258 = vmatmul.mubr.bf16.gmra.mrb[0].mxu0 %v1224
    %v1259 = vpop.f32.mrb[0].mxu0
    %v1260 = vadd.f32 %v988, %v1259
    %v1261 = vpop.f32.mrb[0].mxu0
    %v1262 = vadd.f32 %v992, %v1261
    %v1263 = vpop.f32.mrb[0].mxu0
    %v1264 = vpop.f32.mrb[0].mxu0
    %1265 = vdwg.mxu0
    %v1266 = vmul.f32 %v1260, 0.5
    %v1267 = vtanh.pop %v1266
    %v1268 = vadd.f32 %v1267, 1.0
    %v1269 = vmul.f32 %v1268, 0.5
    %v1270 = vmul.f32 %v1262, 0.5
    %v1271 = vtanh.pop %v1270
    %v1272 = vadd.f32 %v1271, 1.0
    %v1273 = vmul.f32 %v1272, 0.5
    %v1274 = vtanh.pop %v1262
    %v1275 = vsel %vm765, %v1273, %v1274
    %v1276 = vmul.f32 %v1269, %v1136
    %1278 = vrot.lane.b32.xlu0 %v1275, 64
    %v1279 = vpop.permute.xlu0 %1278
    %v1281 = vmul.f32 %v1269, %v1279
    %1283 = vrot.lane.b32.xlu0 %v1281, 64
    %v1284 = vpop.permute.xlu0 %1283
    %v1286 = vadd.f32 %v1276, %v1284
    %v1287 = vtanh.pop %v1286
    %1289 = vrot.lane.b32.xlu0 %v1287, 64
    %v1290 = vpop.permute.xlu0 %1289
    %v1292 = vmul.f32 %v1275, %v1290
    %v1293 = vsel %vm663, %v1142, 0.0
    %v1294 = vpack.c.bf16 %v1293, %v1293
    %s1295 = scalar_lea.vmem %s8, 128
    %v1296 = vld [vmem:[%s1295] sm:$0xff]
    %v1297 = vld [vmem:[%s1295 + $0x8] sm:$0xff]
    %v1298 = vld [vmem:[%s1295 + $0x10] sm:$0xff]
    %v1299 = vld [vmem:[%s1295 + $0x18] sm:$0xff]
    %v1300 = vld [vmem:[%s1295 + $0x20] sm:$0xff]
    %v1301 = vld [vmem:[%s1295 + $0x28] sm:$0xff]
    %v1302 = vld [vmem:[%s1295 + $0x30] sm:$0xff]
    %v1303 = vld [vmem:[%s1295 + $0x38] sm:$0xff]
    %v1304 = vld [vmem:[%s1295 + $0x40] sm:$0xff]
    %v1305 = vld [vmem:[%s1295 + $0x48] sm:$0xff]
    %v1306 = vld [vmem:[%s1295 + $0x50] sm:$0xff]
    %v1307 = vld [vmem:[%s1295 + $0x58] sm:$0xff]
    %v1308 = vld [vmem:[%s1295 + $0x60] sm:$0xff]
    %v1309 = vld [vmem:[%s1295 + $0x68] sm:$0xff]
    %v1310 = vld [vmem:[%s1295 + $0x70] sm:$0xff]
    %v1311 = vld [vmem:[%s1295 + $0x78] sm:$0xff]
    %s1312 = scalar_lea.vmem [#allocation11], 2
    %v1313 = vld [vmem:[%s1312] sm:$0x3]
    %v1315 = vlaneseq
    %v1316 = vshrl.u32 %v1315, 7
    %v1317 = vsub.s32 0, %v1316
    %v1318 = vrot.slane %v1313, %v1317
    %v1319 = vlaneseq
    %v1320 = vshrl.u32 %v1319, 7
    %v1321 = vsub.s32 1, %v1320
    %v1322 = vrot.slane %v1313, %v1321
    %v1341 = vunpack.c.l.b16 %v1296
    %v1342 = vunpack.c.h.b16 %v1296
    %v1343 = vunpack.c.l.b16 %v1297
    %v1344 = vunpack.c.h.b16 %v1297
    %v1345 = vunpack.c.l.b16 %v1298
    %v1346 = vunpack.c.h.b16 %v1298
    %v1347 = vunpack.c.l.b16 %v1299
    %v1348 = vunpack.c.h.b16 %v1299
    %v1349 = vunpack.c.l.b16 %v1300
    %v1350 = vunpack.c.h.b16 %v1300
    %v1351 = vunpack.c.l.b16 %v1301
    %v1352 = vunpack.c.h.b16 %v1301
    %v1353 = vunpack.c.l.b16 %v1302
    %v1354 = vunpack.c.h.b16 %v1302
    %v1355 = vunpack.c.l.b16 %v1303
    %v1356 = vunpack.c.h.b16 %v1303
    %v1357 = vunpack.c.l.b16 %v1304
    %v1358 = vunpack.c.h.b16 %v1304
    %v1359 = vunpack.c.l.b16 %v1305
    %v1360 = vunpack.c.h.b16 %v1305
    %v1361 = vunpack.c.l.b16 %v1306
    %v1362 = vunpack.c.h.b16 %v1306
    %v1363 = vunpack.c.l.b16 %v1307
    %v1364 = vunpack.c.h.b16 %v1307
    %v1365 = vunpack.c.l.b16 %v1308
    %v1366 = vunpack.c.h.b16 %v1308
    %v1367 = vunpack.c.l.b16 %v1309
    %v1368 = vunpack.c.h.b16 %v1309
    %v1369 = vunpack.c.l.b16 %v1310
    %v1370 = vunpack.c.h.b16 %v1310
    %v1371 = vunpack.c.l.b16 %v1311
    %v1372 = vunpack.c.h.b16 %v1311
    %v1373 = vpack.c.b16 %v1343, %v1341
    %v1374 = vpack.c.b16 %v1344, %v1342
    %v1375 = vpack.c.b16 %v1347, %v1345
    %v1376 = vpack.c.b16 %v1348, %v1346
    %v1377 = vpack.c.b16 %v1351, %v1349
    %v1378 = vpack.c.b16 %v1352, %v1350
    %v1379 = vpack.c.b16 %v1355, %v1353
    %v1380 = vpack.c.b16 %v1356, %v1354
    %v1381 = vpack.c.b16 %v1359, %v1357
    %v1382 = vpack.c.b16 %v1360, %v1358
    %v1383 = vpack.c.b16 %v1363, %v1361
    %v1384 = vpack.c.b16 %v1364, %v1362
    %v1385 = vpack.c.b16 %v1367, %v1365
    %v1386 = vpack.c.b16 %v1368, %v1366
    %v1387 = vpack.c.b16 %v1371, %v1369
    %v1388 = vpack.c.b16 %v1372, %v1370
    %1405 = vmatprep.subr.bf16.mxu0 %v1374
    %1406 = vmatpush1.bf16.msra.mxu0 %v1373
    %1407 = vmatprep.subr.bf16.mxu0 %v1376
    %1408 = vmatpush1.bf16.msra.mxu0 %v1375
    %1409 = vmatprep.subr.bf16.mxu0 %v1378
    %1410 = vmatpush1.bf16.msra.mxu0 %v1377
    %1411 = vmatprep.subr.bf16.mxu0 %v1380
    %1412 = vmatpush1.bf16.msra.mxu0 %v1379
    %1413 = vmatprep.subr.bf16.mxu0 %v1382
    %1414 = vmatpush1.bf16.msra.mxu0 %v1381
    %1415 = vmatprep.subr.bf16.mxu0 %v1384
    %1416 = vmatpush1.bf16.msra.mxu0 %v1383
    %1417 = vmatprep.subr.bf16.mxu0 %v1386
    %1418 = vmatpush1.bf16.msra.mxu0 %v1385
    %1419 = vmatprep.subr.bf16.mxu0 %v1388
    %1420 = vmatpush1.bf16.msra.mxu0 %v1387
    %1421 = vmatprep.subr.bf16.mxu0 0
    %1422 = vmatpush1.bf16.msra.mxu0 0
    %1423 = vmatprep.subr.bf16.mxu0 0
    %1424 = vmatpush1.bf16.msra.mxu0 0
    %1425 = vmatprep.subr.bf16.mxu0 0
    %1426 = vmatpush1.bf16.msra.mxu0 0
    %1427 = vmatprep.subr.bf16.mxu0 0
    %1428 = vmatpush1.bf16.msra.mxu0 0
    %1429 = vmatprep.subr.bf16.mxu0 0
    %1430 = vmatpush1.bf16.msra.mxu0 0
    %1431 = vmatprep.subr.bf16.mxu0 0
    %1432 = vmatpush1.bf16.msra.mxu0 0
    %1433 = vmatprep.subr.bf16.mxu0 0
    %1434 = vmatpush1.bf16.msra.mxu0 0
    %1435 = vmatprep.subr.bf16.mxu0 0
    %1436 = vmatpush1.bf16.msra.mxu0 0
    %1437 = vmatprep.mubr.bf16.mxu0 0
    %1438 = vmatmul.mubr.bf16.gmra.mrb[0].mxu0 %v1294
    %v1439 = vpop.f32.mrb[0].mxu0
    %v1440 = vadd.f32 %v1318, %v1439
    %v1441 = vpop.f32.mrb[0].mxu0
    %v1442 = vadd.f32 %v1322, %v1441
    %v1443 = vpop.f32.mrb[0].mxu0
    %v1444 = vpop.f32.mrb[0].mxu0
    %1445 = vdwg.mxu0
    %v1446 = vmul.f32 %v1440, 0.5
    %v1447 = vtanh.pop %v1446
    %v1448 = vadd.f32 %v1447, 1.0
    %v1449 = vmul.f32 %v1448, 0.5
    %v1450 = vmul.f32 %v1442, 0.5
    %v1451 = vtanh.pop %v1450
    %v1452 = vadd.f32 %v1451, 1.0
    %v1453 = vmul.f32 %v1452, 0.5
    %v1454 = vtanh.pop %v1442
    %v1455 = vsel %vm765, %v1453, %v1454
    %v1456 = vmul.f32 %v1449, 0.0
    %1458 = vrot.lane.b32.xlu0 %v1455, 64
    %v1459 = vpop.permute.xlu0 %1458
    %v1461 = vmul.f32 %v1449, %v1459
    %1463 = vrot.lane.b32.xlu0 %v1461, 64
    %v1464 = vpop.permute.xlu0 %1463
    %v1466 = vadd.f32 %v1456, %v1464
    %v1467 = vtanh.pop %v1466
    %1469 = vrot.lane.b32.xlu0 %v1467, 64
    %v1470 = vpop.permute.xlu0 %1469
    %v1472 = vmul.f32 %v1455, %v1470
    %v1473 = vld [vmem:[#allocation2 + $0x30] sm:$0xff]
    %v1474 = vld [vmem:[#allocation2 + $0x38] sm:$0xff]
    %v1475 = vpack.c.bf16 %v1218, %v1218
    %v1477 = vsel %vm663, %v1475, 0
    %1479 = vmatprep.subr.bf16.mxu0 %v801
    %1480 = vmatpush1.bf16.msra.mxu0 %v800
    %1481 = vmatprep.subr.bf16.mxu0 %v803
    %1482 = vmatpush1.bf16.msra.mxu0 %v802
    %1483 = vmatprep.subr.bf16.mxu0 %v805
    %1484 = vmatpush1.bf16.msra.mxu0 %v804
    %1485 = vmatprep.subr.bf16.mxu0 %v807
    %1486 = vmatpush1.bf16.msra.mxu0 %v806
    %1487 = vmatprep.subr.bf16.mxu0 0
    %1488 = vmatpush1.bf16.msra.mxu0 0
    %1489 = vmatprep.subr.bf16.mxu0 0
    %1490 = vmatpush1.bf16.msra.mxu0 0
    %1491 = vmatprep.subr.bf16.mxu0 0
    %1492 = vmatpush1.bf16.msra.mxu0 0
    %1493 = vmatprep.subr.bf16.mxu0 0
    %1494 = vmatpush1.bf16.msra.mxu0 0
    %1495 = vmatprep.subr.bf16.mxu0 0
    %1496 = vmatpush1.bf16.msra.mxu0 0
    %1497 = vmatprep.subr.bf16.mxu0 0
    %1498 = vmatpush1.bf16.msra.mxu0 0
    %1499 = vmatprep.subr.bf16.mxu0 0
    %1500 = vmatpush1.bf16.msra.mxu0 0
    %1501 = vmatprep.subr.bf16.mxu0 0
    %1502 = vmatpush1.bf16.msra.mxu0 0
    %1503 = vmatprep.subr.bf16.mxu0 0
    %1504 = vmatpush1.bf16.msra.mxu0 0
    %1505 = vmatprep.subr.bf16.mxu0 0
    %1506 = vmatpush1.bf16.msra.mxu0 0
    %1507 = vmatprep.subr.bf16.mxu0 0
    %1508 = vmatpush1.bf16.msra.mxu0 0
    %1509 = vmatprep.subr.bf16.mxu0 0
    %1510 = vmatpush1.bf16.msra.mxu0 0
    %1511 = vmatprep.mubr.bf16.mxu0 0
    %1512 = vmatmul.mubr.bf16.gmra.mrb[0].mxu0 %v1477
    %v1513 = vpop.f32.mrb[0].mxu0
    %v1514 = vadd.f32 0.0, %v1513
    %v1515 = vpop.f32.mrb[0].mxu0
    %v1516 = vadd.f32 0.0, %v1515
    %v1517 = vpop.f32.mrb[0].mxu0
    %v1518 = vpop.f32.mrb[0].mxu0
    %1519 = vdwg.mxu0
    %v1520 = vadd.f32 %v1473, %v1514
    %v1521 = vadd.f32 %v1474, %v1516
    %v1522 = vmul.f32 %v1520, 0.5
    %v1523 = vtanh.pop %v1522
    %v1524 = vadd.f32 %v1523, 1.0
    %v1525 = vmul.f32 %v1524, 0.5
    %v1526 = vmul.f32 %v1521, 0.5
    %v1527 = vtanh.pop %v1526
    %v1528 = vadd.f32 %v1527, 1.0
    %v1529 = vmul.f32 %v1528, 0.5
    %v1530 = vtanh.pop %v1521
    %v1531 = vsel %vm765, %v1529, %v1530
    %v1532 = vmul.f32 %v1525, %v1212
    %1534 = vrot.lane.b32.xlu0 %v1531, 64
    %v1535 = vpop.permute.xlu0 %1534
    %v1537 = vmul.f32 %v1525, %v1535
    %1539 = vrot.lane.b32.xlu0 %v1537, 64
    %v1540 = vpop.permute.xlu0 %1539
    %v1542 = vadd.f32 %v1532, %v1540
    %v1543 = vtanh.pop %v1542
    %1545 = vrot.lane.b32.xlu0 %v1543, 64
    %v1546 = vpop.permute.xlu0 %1545
    %v1548 = vmul.f32 %v1531, %v1546
    %1550 = vrot.lane.b32.xlu0 %v1292, 64
    %v1551 = vpop.permute.xlu0 %1550
    %v1553 = vsel %vm663, %v1218, %v1551
    %v1554 = vpack.c.bf16 %v1553, %v1553
    %1555 = vmatprep.subr.bf16.mxu0 %v1044
    %1556 = vmatpush1.bf16.msra.mxu0 %v1043
    %1557 = vmatprep.subr.bf16.mxu0 %v1046
    %1558 = vmatpush1.bf16.msra.mxu0 %v1045
    %1559 = vmatprep.subr.bf16.mxu0 %v1048
    %1560 = vmatpush1.bf16.msra.mxu0 %v1047
    %1561 = vmatprep.subr.bf16.mxu0 %v1050
    %1562 = vmatpush1.bf16.msra.mxu0 %v1049
    %1563 = vmatprep.subr.bf16.mxu0 %v1052
    %1564 = vmatpush1.bf16.msra.mxu0 %v1051
    %1565 = vmatprep.subr.bf16.mxu0 %v1054
    %1566 = vmatpush1.bf16.msra.mxu0 %v1053
    %1567 = vmatprep.subr.bf16.mxu0 %v1056
    %1568 = vmatpush1.bf16.msra.mxu0 %v1055
    %1569 = vmatprep.subr.bf16.mxu0 %v1058
    %1570 = vmatpush1.bf16.msra.mxu0 %v1057
    %1571 = vmatprep.subr.bf16.mxu0 0
    %1572 = vmatpush1.bf16.msra.mxu0 0
    %1573 = vmatprep.subr.bf16.mxu0 0
    %1574 = vmatpush1.bf16.msra.mxu0 0
    %1575 = vmatprep.subr.bf16.mxu0 0
    %1576 = vmatpush1.bf16.msra.mxu0 0
    %1577 = vmatprep.subr.bf16.mxu0 0
    %1578 = vmatpush1.bf16.msra.mxu0 0
    %1579 = vmatprep.subr.bf16.mxu0 0
    %1580 = vmatpush1.bf16.msra.mxu0 0
    %1581 = vmatprep.subr.bf16.mxu0 0
    %1582 = vmatpush1.bf16.msra.mxu0 0
    %1583 = vmatprep.subr.bf16.mxu0 0
    %1584 = vmatpush1.bf16.msra.mxu0 0
    %1585 = vmatprep.subr.bf16.mxu0 0
    %1586 = vmatpush1.bf16.msra.mxu0 0
    %1587 = vmatprep.mubr.bf16.mxu0 0
    %1588 = vmatmul.mubr.bf16.gmra.mrb[0].mxu0 %v1554
    %v1589 = vpop.f32.mrb[0].mxu0
    %v1590 = vadd.f32 %v988, %v1589
    %v1591 = vpop.f32.mrb[0].mxu0
    %v1592 = vadd.f32 %v992, %v1591
    %v1593 = vpop.f32.mrb[0].mxu0
    %v1594 = vpop.f32.mrb[0].mxu0
    %1595 = vdwg.mxu0
    %v1596 = vmul.f32 %v1590, 0.5
    %v1597 = vtanh.pop %v1596
    %v1598 = vadd.f32 %v1597, 1.0
    %v1599 = vmul.f32 %v1598, 0.5
    %v1600 = vmul.f32 %v1592, 0.5
    %v1601 = vtanh.pop %v1600
    %v1602 = vadd.f32 %v1601, 1.0
    %v1603 = vmul.f32 %v1602, 0.5
    %v1604 = vtanh.pop %v1592
    %v1605 = vsel %vm765, %v1603, %v1604
    %v1606 = vmul.f32 %v1599, %v1286
    %1608 = vrot.lane.b32.xlu0 %v1605, 64
    %v1609 = vpop.permute.xlu0 %1608
    %v1611 = vmul.f32 %v1599, %v1609
    %1613 = vrot.lane.b32.xlu0 %v1611, 64
    %v1614 = vpop.permute.xlu0 %1613
    %v1616 = vadd.f32 %v1606, %v1614
    %v1617 = vtanh.pop %v1616
    %1619 = vrot.lane.b32.xlu0 %v1617, 64
    %v1620 = vpop.permute.xlu0 %1619
    %v1622 = vmul.f32 %v1605, %v1620
    %1624 = vrot.lane.b32.xlu0 %v1472, 64
    %v1625 = vpop.permute.xlu0 %1624
    %v1627 = vsel %vm663, %v1292, %v1625
    %v1628 = vpack.c.bf16 %v1627, %v1627
    %1629 = vmatprep.subr.bf16.mxu0 %v1374
    %1630 = vmatpush1.bf16.msra.mxu0 %v1373
    %1631 = vmatprep.subr.bf16.mxu0 %v1376
    %1632 = vmatpush1.bf16.msra.mxu0 %v1375
    %1633 = vmatprep.subr.bf16.mxu0 %v1378
    %1634 = vmatpush1.bf16.msra.mxu0 %v1377
    %1635 = vmatprep.subr.bf16.mxu0 %v1380
    %1636 = vmatpush1.bf16.msra.mxu0 %v1379
    %1637 = vmatprep.subr.bf16.mxu0 %v1382
    %1638 = vmatpush1.bf16.msra.mxu0 %v1381
    %1639 = vmatprep.subr.bf16.mxu0 %v1384
    %1640 = vmatpush1.bf16.msra.mxu0 %v1383
    %1641 = vmatprep.subr.bf16.mxu0 %v1386
    %1642 = vmatpush1.bf16.msra.mxu0 %v1385
    %1643 = vmatprep.subr.bf16.mxu0 %v1388
    %1644 = vmatpush1.bf16.msra.mxu0 %v1387
    %1645 = vmatprep.subr.bf16.mxu0 0
    %1646 = vmatpush1.bf16.msra.mxu0 0
    %1647 = vmatprep.subr.bf16.mxu0 0
    %1648 = vmatpush1.bf16.msra.mxu0 0
    %1649 = vmatprep.subr.bf16.mxu0 0
    %1650 = vmatpush1.bf16.msra.mxu0 0
    %1651 = vmatprep.subr.bf16.mxu0 0
    %1652 = vmatpush1.bf16.msra.mxu0 0
    %1653 = vmatprep.subr.bf16.mxu0 0
    %1654 = vmatpush1.bf16.msra.mxu0 0
    %1655 = vmatprep.subr.bf16.mxu0 0
    %1656 = vmatpush1.bf16.msra.mxu0 0
    %1657 = vmatprep.subr.bf16.mxu0 0
    %1658 = vmatpush1.bf16.msra.mxu0 0
    %1659 = vmatprep.subr.bf16.mxu0 0
    %1660 = vmatpush1.bf16.msra.mxu0 0
    %1661 = vmatprep.mubr.bf16.mxu0 0
    %1662 = vmatmul.mubr.bf16.gmra.mrb[0].mxu0 %v1628
    %v1663 = vpop.f32.mrb[0].mxu0
    %v1664 = vadd.f32 %v1318, %v1663
    %v1665 = vpop.f32.mrb[0].mxu0
    %v1666 = vadd.f32 %v1322, %v1665
    %v1667 = vpop.f32.mrb[0].mxu0
    %v1668 = vpop.f32.mrb[0].mxu0
    %1669 = vdwg.mxu0
    %v1670 = vmul.f32 %v1664, 0.5
    %v1671 = vtanh.pop %v1670
    %v1672 = vadd.f32 %v1671, 1.0
    %v1673 = vmul.f32 %v1672, 0.5
    %v1674 = vmul.f32 %v1666, 0.5
    %v1675 = vtanh.pop %v1674
    %v1676 = vadd.f32 %v1675, 1.0
    %v1677 = vmul.f32 %v1676, 0.5
    %v1678 = vtanh.pop %v1666
    %v1679 = vsel %vm765, %v1677, %v1678
    %v1680 = vmul.f32 %v1673, %v1466
    %1682 = vrot.lane.b32.xlu0 %v1679, 64
    %v1683 = vpop.permute.xlu0 %1682
    %v1685 = vmul.f32 %v1673, %v1683
    %1687 = vrot.lane.b32.xlu0 %v1685, 64
    %v1688 = vpop.permute.xlu0 %1687
    %v1690 = vadd.f32 %v1680, %v1688
    %v1691 = vtanh.pop %v1690
    %1693 = vrot.lane.b32.xlu0 %v1691, 64
    %v1694 = vpop.permute.xlu0 %1693
    %v1696 = vmul.f32 %v1679, %v1694
    %v1697 = vld [vmem:[#allocation2 + $0x40] sm:$0xff]
    %v1698 = vld [vmem:[#allocation2 + $0x48] sm:$0xff]
    %v1699 = vpack.c.bf16 %v1548, %v1548
    %v1701 = vsel %vm663, %v1699, 0
    %1703 = vmatprep.subr.bf16.mxu0 %v801
    %1704 = vmatpush1.bf16.msra.mxu0 %v800
    %1705 = vmatprep.subr.bf16.mxu0 %v803
    %1706 = vmatpush1.bf16.msra.mxu0 %v802
    %1707 = vmatprep.subr.bf16.mxu0 %v805
    %1708 = vmatpush1.bf16.msra.mxu0 %v804
    %1709 = vmatprep.subr.bf16.mxu0 %v807
    %1710 = vmatpush1.bf16.msra.mxu0 %v806
    %1711 = vmatprep.subr.bf16.mxu0 0
    %1712 = vmatpush1.bf16.msra.mxu0 0
    %1713 = vmatprep.subr.bf16.mxu0 0
    %1714 = vmatpush1.bf16.msra.mxu0 0
    %1715 = vmatprep.subr.bf16.mxu0 0
    %1716 = vmatpush1.bf16.msra.mxu0 0
    %1717 = vmatprep.subr.bf16.mxu0 0
    %1718 = vmatpush1.bf16.msra.mxu0 0
    %1719 = vmatprep.subr.bf16.mxu0 0
    %1720 = vmatpush1.bf16.msra.mxu0 0
    %1721 = vmatprep.subr.bf16.mxu0 0
    %1722 = vmatpush1.bf16.msra.mxu0 0
    %1723 = vmatprep.subr.bf16.mxu0 0
    %1724 = vmatpush1.bf16.msra.mxu0 0
    %1725 = vmatprep.subr.bf16.mxu0 0
    %1726 = vmatpush1.bf16.msra.mxu0 0
    %1727 = vmatprep.subr.bf16.mxu0 0
    %1728 = vmatpush1.bf16.msra.mxu0 0
    %1729 = vmatprep.subr.bf16.mxu0 0
    %1730 = vmatpush1.bf16.msra.mxu0 0
    %1731 = vmatprep.subr.bf16.mxu0 0
    %1732 = vmatpush1.bf16.msra.mxu0 0
    %1733 = vmatprep.subr.bf16.mxu0 0
    %1734 = vmatpush1.bf16.msra.mxu0 0
    %1735 = vmatprep.mubr.bf16.mxu0 0
    %1736 = vmatmul.mubr.bf16.gmra.mrb[0].mxu0 %v1701
    %v1737 = vpop.f32.mrb[0].mxu0
    %v1738 = vadd.f32 0.0, %v1737
    %v1739 = vpop.f32.mrb[0].mxu0
    %v1740 = vadd.f32 0.0, %v1739
    %v1741 = vpop.f32.mrb[0].mxu0
    %v1742 = vpop.f32.mrb[0].mxu0
    %1743 = vdwg.mxu0
    %v1744 = vadd.f32 %v1697, %v1738
    %v1745 = vadd.f32 %v1698, %v1740
    %v1746 = vmul.f32 %v1744, 0.5
    %v1747 = vtanh.pop %v1746
    %v1748 = vadd.f32 %v1747, 1.0
    %v1749 = vmul.f32 %v1748, 0.5
    %v1750 = vmul.f32 %v1745, 0.5
    %v1751 = vtanh.pop %v1750
    %v1752 = vadd.f32 %v1751, 1.0
    %v1753 = vmul.f32 %v1752, 0.5
    %v1754 = vtanh.pop %v1745
    %v1755 = vsel %vm765, %v1753, %v1754
    %v1756 = vmul.f32 %v1749, %v1542
    %1758 = vrot.lane.b32.xlu0 %v1755, 64
    %v1759 = vpop.permute.xlu0 %1758
    %v1761 = vmul.f32 %v1749, %v1759
    %1763 = vrot.lane.b32.xlu0 %v1761, 64
    %v1764 = vpop.permute.xlu0 %1763
    %v1766 = vadd.f32 %v1756, %v1764
    %v1767 = vtanh.pop %v1766
    %1769 = vrot.lane.b32.xlu0 %v1767, 64
    %v1770 = vpop.permute.xlu0 %1769
    %v1772 = vmul.f32 %v1755, %v1770
    %1774 = vrot.lane.b32.xlu0 %v1622, 64
    %v1775 = vpop.permute.xlu0 %1774
    %v1777 = vsel %vm663, %v1548, %v1775
    %v1778 = vpack.c.bf16 %v1777, %v1777
    %1779 = vmatprep.subr.bf16.mxu0 %v1044
    %1780 = vmatpush1.bf16.msra.mxu0 %v1043
    %1781 = vmatprep.subr.bf16.mxu0 %v1046
    %1782 = vmatpush1.bf16.msra.mxu0 %v1045
    %1783 = vmatprep.subr.bf16.mxu0 %v1048
    %1784 = vmatpush1.bf16.msra.mxu0 %v1047
    %1785 = vmatprep.subr.bf16.mxu0 %v1050
    %1786 = vmatpush1.bf16.msra.mxu0 %v1049
    %1787 = vmatprep.subr.bf16.mxu0 %v1052
    %1788 = vmatpush1.bf16.msra.mxu0 %v1051
    %1789 = vmatprep.subr.bf16.mxu0 %v1054
    %1790 = vmatpush1.bf16.msra.mxu0 %v1053
    %1791 = vmatprep.subr.bf16.mxu0 %v1056
    %1792 = vmatpush1.bf16.msra.mxu0 %v1055
    %1793 = vmatprep.subr.bf16.mxu0 %v1058
    %1794 = vmatpush1.bf16.msra.mxu0 %v1057
    %1795 = vmatprep.subr.bf16.mxu0 0
    %1796 = vmatpush1.bf16.msra.mxu0 0
    %1797 = vmatprep.subr.bf16.mxu0 0
    %1798 = vmatpush1.bf16.msra.mxu0 0
    %1799 = vmatprep.subr.bf16.mxu0 0
    %1800 = vmatpush1.bf16.msra.mxu0 0
    %1801 = vmatprep.subr.bf16.mxu0 0
    %1802 = vmatpush1.bf16.msra.mxu0 0
    %1803 = vmatprep.subr.bf16.mxu0 0
    %1804 = vmatpush1.bf16.msra.mxu0 0
    %1805 = vmatprep.subr.bf16.mxu0 0
    %1806 = vmatpush1.bf16.msra.mxu0 0
    %1807 = vmatprep.subr.bf16.mxu0 0
    %1808 = vmatpush1.bf16.msra.mxu0 0
    %1809 = vmatprep.subr.bf16.mxu0 0
    %1810 = vmatpush1.bf16.msra.mxu0 0
    %1811 = vmatprep.mubr.bf16.mxu0 0
    %1812 = vmatmul.mubr.bf16.gmra.mrb[0].mxu0 %v1778
    %v1813 = vpop.f32.mrb[0].mxu0
    %v1814 = vadd.f32 %v988, %v1813
    %v1815 = vpop.f32.mrb[0].mxu0
    %v1816 = vadd.f32 %v992, %v1815
    %v1817 = vpop.f32.mrb[0].mxu0
    %v1818 = vpop.f32.mrb[0].mxu0
    %1819 = vdwg.mxu0
    %v1820 = vmul.f32 %v1814, 0.5
    %v1821 = vtanh.pop %v1820
    %v1822 = vadd.f32 %v1821, 1.0
    %v1823 = vmul.f32 %v1822, 0.5
    %v1824 = vmul.f32 %v1816, 0.5
    %v1825 = vtanh.pop %v1824
    %v1826 = vadd.f32 %v1825, 1.0
    %v1827 = vmul.f32 %v1826, 0.5
    %v1828 = vtanh.pop %v1816
    %v1829 = vsel %vm765, %v1827, %v1828
    %v1830 = vmul.f32 %v1823, %v1616
    %1832 = vrot.lane.b32.xlu0 %v1829, 64
    %v1833 = vpop.permute.xlu0 %1832
    %v1835 = vmul.f32 %v1823, %v1833
    %1837 = vrot.lane.b32.xlu0 %v1835, 64
    %v1838 = vpop.permute.xlu0 %1837
    %v1840 = vadd.f32 %v1830, %v1838
    %v1841 = vtanh.pop %v1840
    %1843 = vrot.lane.b32.xlu0 %v1841, 64
    %v1844 = vpop.permute.xlu0 %1843
    %v1846 = vmul.f32 %v1829, %v1844
    %1848 = vrot.lane.b32.xlu0 %v1696, 64
    %v1849 = vpop.permute.xlu0 %1848
    %v1851 = vsel %vm663, %v1622, %v1849
    %v1852 = vpack.c.bf16 %v1851, %v1851
    %1853 = vmatprep.subr.bf16.mxu0 %v1374
    %1854 = vmatpush1.bf16.msra.mxu0 %v1373
    %1855 = vmatprep.subr.bf16.mxu0 %v1376
    %1856 = vmatpush1.bf16.msra.mxu0 %v1375
    %1857 = vmatprep.subr.bf16.mxu0 %v1378
    %1858 = vmatpush1.bf16.msra.mxu0 %v1377
    %1859 = vmatprep.subr.bf16.mxu0 %v1380
    %1860 = vmatpush1.bf16.msra.mxu0 %v1379
    %1861 = vmatprep.subr.bf16.mxu0 %v1382
    %1862 = vmatpush1.bf16.msra.mxu0 %v1381
    %1863 = vmatprep.subr.bf16.mxu0 %v1384
    %1864 = vmatpush1.bf16.msra.mxu0 %v1383
    %1865 = vmatprep.subr.bf16.mxu0 %v1386
    %1866 = vmatpush1.bf16.msra.mxu0 %v1385
    %1867 = vmatprep.subr.bf16.mxu0 %v1388
    %1868 = vmatpush1.bf16.msra.mxu0 %v1387
    %1869 = vmatprep.subr.bf16.mxu0 0
    %1870 = vmatpush1.bf16.msra.mxu0 0
    %1871 = vmatprep.subr.bf16.mxu0 0
    %1872 = vmatpush1.bf16.msra.mxu0 0
    %1873 = vmatprep.subr.bf16.mxu0 0
    %1874 = vmatpush1.bf16.msra.mxu0 0
    %1875 = vmatprep.subr.bf16.mxu0 0
    %1876 = vmatpush1.bf16.msra.mxu0 0
    %1877 = vmatprep.subr.bf16.mxu0 0
    %1878 = vmatpush1.bf16.msra.mxu0 0
    %1879 = vmatprep.subr.bf16.mxu0 0
    %1880 = vmatpush1.bf16.msra.mxu0 0
    %1881 = vmatprep.subr.bf16.mxu0 0
    %1882 = vmatpush1.bf16.msra.mxu0 0
    %1883 = vmatprep.subr.bf16.mxu0 0
    %1884 = vmatpush1.bf16.msra.mxu0 0
    %1885 = vmatprep.mubr.bf16.mxu0 0
    %1886 = vmatmul.mubr.bf16.gmra.mrb[0].mxu0 %v1852
    %v1887 = vpop.f32.mrb[0].mxu0
    %v1888 = vadd.f32 %v1318, %v1887
    %v1889 = vpop.f32.mrb[0].mxu0
    %v1890 = vadd.f32 %v1322, %v1889
    %v1891 = vpop.f32.mrb[0].mxu0
    %v1892 = vpop.f32.mrb[0].mxu0
    %1893 = vdwg.mxu0
    %v1894 = vmul.f32 %v1888, 0.5
    %v1895 = vtanh.pop %v1894
    %v1896 = vadd.f32 %v1895, 1.0
    %v1897 = vmul.f32 %v1896, 0.5
    %v1898 = vmul.f32 %v1890, 0.5
    %v1899 = vtanh.pop %v1898
    %v1900 = vadd.f32 %v1899, 1.0
    %v1901 = vmul.f32 %v1900, 0.5
    %v1902 = vtanh.pop %v1890
    %v1903 = vsel %vm765, %v1901, %v1902
    %v1904 = vmul.f32 %v1897, %v1690
    %1906 = vrot.lane.b32.xlu0 %v1903, 64
    %v1907 = vpop.permute.xlu0 %1906
    %v1909 = vmul.f32 %v1897, %v1907
    %1911 = vrot.lane.b32.xlu0 %v1909, 64
    %v1912 = vpop.permute.xlu0 %1911
    %v1914 = vadd.f32 %v1904, %v1912
    %v1915 = vtanh.pop %v1914
    %1917 = vrot.lane.b32.xlu0 %v1915, 64
    %v1918 = vpop.permute.xlu0 %1917
    %v1920 = vmul.f32 %v1903, %v1918
    %v1921 = vld [vmem:[#allocation2 + $0x50] sm:$0xff]
    %v1922 = vld [vmem:[#allocation2 + $0x58] sm:$0xff]
    %v1923 = vpack.c.bf16 %v1772, %v1772
    %v1925 = vsel %vm663, %v1923, 0
    %1927 = vmatprep.subr.bf16.mxu0 %v801
    %1928 = vmatpush1.bf16.msra.mxu0 %v800
    %1929 = vmatprep.subr.bf16.mxu0 %v803
    %1930 = vmatpush1.bf16.msra.mxu0 %v802
    %1931 = vmatprep.subr.bf16.mxu0 %v805
    %1932 = vmatpush1.bf16.msra.mxu0 %v804
    %1933 = vmatprep.subr.bf16.mxu0 %v807
    %1934 = vmatpush1.bf16.msra.mxu0 %v806
    %1935 = vmatprep.subr.bf16.mxu0 0
    %1936 = vmatpush1.bf16.msra.mxu0 0
    %1937 = vmatprep.subr.bf16.mxu0 0
    %1938 = vmatpush1.bf16.msra.mxu0 0
    %1939 = vmatprep.subr.bf16.mxu0 0
    %1940 = vmatpush1.bf16.msra.mxu0 0
    %1941 = vmatprep.subr.bf16.mxu0 0
    %1942 = vmatpush1.bf16.msra.mxu0 0
    %1943 = vmatprep.subr.bf16.mxu0 0
    %1944 = vmatpush1.bf16.msra.mxu0 0
    %1945 = vmatprep.subr.bf16.mxu0 0
    %1946 = vmatpush1.bf16.msra.mxu0 0
    %1947 = vmatprep.subr.bf16.mxu0 0
    %1948 = vmatpush1.bf16.msra.mxu0 0
    %1949 = vmatprep.subr.bf16.mxu0 0
    %1950 = vmatpush1.bf16.msra.mxu0 0
    %1951 = vmatprep.subr.bf16.mxu0 0
    %1952 = vmatpush1.bf16.msra.mxu0 0
    %1953 = vmatprep.subr.bf16.mxu0 0
    %1954 = vmatpush1.bf16.msra.mxu0 0
    %1955 = vmatprep.subr.bf16.mxu0 0
    %1956 = vmatpush1.bf16.msra.mxu0 0
    %1957 = vmatprep.subr.bf16.mxu0 0
    %1958 = vmatpush1.bf16.msra.mxu0 0
    %1959 = vmatprep.mubr.bf16.mxu0 0
    %1960 = vmatmul.mubr.bf16.gmra.mrb[0].mxu0 %v1925
    %v1961 = vpop.f32.mrb[0].mxu0
    %v1962 = vadd.f32 0.0, %v1961
    %v1963 = vpop.f32.mrb[0].mxu0
    %v1964 = vadd.f32 0.0, %v1963
    %v1965 = vpop.f32.mrb[0].mxu0
    %v1966 = vpop.f32.mrb[0].mxu0
    %1967 = vdwg.mxu0
    %v1968 = vadd.f32 %v1921, %v1962
    %v1969 = vadd.f32 %v1922, %v1964
    %v1970 = vmul.f32 %v1968, 0.5
    %v1971 = vtanh.pop %v1970
    %v1972 = vadd.f32 %v1971, 1.0
    %v1973 = vmul.f32 %v1972, 0.5
    %v1974 = vmul.f32 %v1969, 0.5
    %v1975 = vtanh.pop %v1974
    %v1976 = vadd.f32 %v1975, 1.0
    %v1977 = vmul.f32 %v1976, 0.5
    %v1978 = vtanh.pop %v1969
    %v1979 = vsel %vm765, %v1977, %v1978
    %v1980 = vmul.f32 %v1973, %v1766
    %1982 = vrot.lane.b32.xlu0 %v1979, 64
    %v1983 = vpop.permute.xlu0 %1982
    %v1985 = vmul.f32 %v1973, %v1983
    %1987 = vrot.lane.b32.xlu0 %v1985, 64
    %v1988 = vpop.permute.xlu0 %1987
    %v1990 = vadd.f32 %v1980, %v1988
    %v1991 = vtanh.pop %v1990
    %1993 = vrot.lane.b32.xlu0 %v1991, 64
    %v1994 = vpop.permute.xlu0 %1993
    %v1996 = vmul.f32 %v1979, %v1994
    %1998 = vrot.lane.b32.xlu0 %v1846, 64
    %v1999 = vpop.permute.xlu0 %1998
    %v2001 = vsel %vm663, %v1772, %v1999
    %v2002 = vpack.c.bf16 %v2001, %v2001
    %2003 = vmatprep.subr.bf16.mxu0 %v1044
    %2004 = vmatpush1.bf16.msra.mxu0 %v1043
    %2005 = vmatprep.subr.bf16.mxu0 %v1046
    %2006 = vmatpush1.bf16.msra.mxu0 %v1045
    %2007 = vmatprep.subr.bf16.mxu0 %v1048
    %2008 = vmatpush1.bf16.msra.mxu0 %v1047
    %2009 = vmatprep.subr.bf16.mxu0 %v1050
    %2010 = vmatpush1.bf16.msra.mxu0 %v1049
    %2011 = vmatprep.subr.bf16.mxu0 %v1052
    %2012 = vmatpush1.bf16.msra.mxu0 %v1051
    %2013 = vmatprep.subr.bf16.mxu0 %v1054
    %2014 = vmatpush1.bf16.msra.mxu0 %v1053
    %2015 = vmatprep.subr.bf16.mxu0 %v1056
    %2016 = vmatpush1.bf16.msra.mxu0 %v1055
    %2017 = vmatprep.subr.bf16.mxu0 %v1058
    %2018 = vmatpush1.bf16.msra.mxu0 %v1057
    %2019 = vmatprep.subr.bf16.mxu0 0
    %2020 = vmatpush1.bf16.msra.mxu0 0
    %2021 = vmatprep.subr.bf16.mxu0 0
    %2022 = vmatpush1.bf16.msra.mxu0 0
    %2023 = vmatprep.subr.bf16.mxu0 0
    %2024 = vmatpush1.bf16.msra.mxu0 0
    %2025 = vmatprep.subr.bf16.mxu0 0
    %2026 = vmatpush1.bf16.msra.mxu0 0
    %2027 = vmatprep.subr.bf16.mxu0 0
    %2028 = vmatpush1.bf16.msra.mxu0 0
    %2029 = vmatprep.subr.bf16.mxu0 0
    %2030 = vmatpush1.bf16.msra.mxu0 0
    %2031 = vmatprep.subr.bf16.mxu0 0
    %2032 = vmatpush1.bf16.msra.mxu0 0
    %2033 = vmatprep.subr.bf16.mxu0 0
    %2034 = vmatpush1.bf16.msra.mxu0 0
    %2035 = vmatprep.mubr.bf16.mxu0 0
    %2036 = vmatmul.mubr.bf16.gmra.mrb[0].mxu0 %v2002
    %v2037 = vpop.f32.mrb[0].mxu0
    %v2038 = vadd.f32 %v988, %v2037
    %v2039 = vpop.f32.mrb[0].mxu0
    %v2040 = vadd.f32 %v992, %v2039
    %v2041 = vpop.f32.mrb[0].mxu0
    %v2042 = vpop.f32.mrb[0].mxu0
    %2043 = vdwg.mxu0
    %v2044 = vmul.f32 %v2038, 0.5
    %v2045 = vtanh.pop %v2044
    %v2046 = vadd.f32 %v2045, 1.0
    %v2047 = vmul.f32 %v2046, 0.5
    %v2048 = vmul.f32 %v2040, 0.5
    %v2049 = vtanh.pop %v2048
    %v2050 = vadd.f32 %v2049, 1.0
    %v2051 = vmul.f32 %v2050, 0.5
    %v2052 = vtanh.pop %v2040
    %v2053 = vsel %vm765, %v2051, %v2052
    %v2054 = vmul.f32 %v2047, %v1840
    %2056 = vrot.lane.b32.xlu0 %v2053, 64
    %v2057 = vpop.permute.xlu0 %2056
    %v2059 = vmul.f32 %v2047, %v2057
    %2061 = vrot.lane.b32.xlu0 %v2059, 64
    %v2062 = vpop.permute.xlu0 %2061
    %v2064 = vadd.f32 %v2054, %v2062
    %v2065 = vtanh.pop %v2064
    %2067 = vrot.lane.b32.xlu0 %v2065, 64
    %v2068 = vpop.permute.xlu0 %2067
    %v2070 = vmul.f32 %v2053, %v2068
    %2072 = vrot.lane.b32.xlu0 %v1920, 64
    %v2073 = vpop.permute.xlu0 %2072
    %v2075 = vsel %vm663, %v1846, %v2073
    %v2076 = vpack.c.bf16 %v2075, %v2075
    %2077 = vmatprep.subr.bf16.mxu0 %v1374
    %2078 = vmatpush1.bf16.msra.mxu0 %v1373
    %2079 = vmatprep.subr.bf16.mxu0 %v1376
    %2080 = vmatpush1.bf16.msra.mxu0 %v1375
    %2081 = vmatprep.subr.bf16.mxu0 %v1378
    %2082 = vmatpush1.bf16.msra.mxu0 %v1377
    %2083 = vmatprep.subr.bf16.mxu0 %v1380
    %2084 = vmatpush1.bf16.msra.mxu0 %v1379
    %2085 = vmatprep.subr.bf16.mxu0 %v1382
    %2086 = vmatpush1.bf16.msra.mxu0 %v1381
    %2087 = vmatprep.subr.bf16.mxu0 %v1384
    %2088 = vmatpush1.bf16.msra.mxu0 %v1383
    %2089 = vmatprep.subr.bf16.mxu0 %v1386
    %2090 = vmatpush1.bf16.msra.mxu0 %v1385
    %2091 = vmatprep.subr.bf16.mxu0 %v1388
    %2092 = vmatpush1.bf16.msra.mxu0 %v1387
    %2093 = vmatprep.subr.bf16.mxu0 0
    %2094 = vmatpush1.bf16.msra.mxu0 0
    %2095 = vmatprep.subr.bf16.mxu0 0
    %2096 = vmatpush1.bf16.msra.mxu0 0
    %2097 = vmatprep.subr.bf16.mxu0 0
    %2098 = vmatpush1.bf16.msra.mxu0 0
    %2099 = vmatprep.subr.bf16.mxu0 0
    %2100 = vmatpush1.bf16.msra.mxu0 0
    %2101 = vmatprep.subr.bf16.mxu0 0
    %2102 = vmatpush1.bf16.msra.mxu0 0
    %2103 = vmatprep.subr.bf16.mxu0 0
    %2104 = vmatpush1.bf16.msra.mxu0 0
    %2105 = vmatprep.subr.bf16.mxu0 0
    %2106 = vmatpush1.bf16.msra.mxu0 0
    %2107 = vmatprep.subr.bf16.mxu0 0
    %2108 = vmatpush1.bf16.msra.mxu0 0
    %2109 = vmatprep.mubr.bf16.mxu0 0
    %2110 = vmatmul.mubr.bf16.gmra.mrb[0].mxu0 %v2076
    %v2111 = vpop.f32.mrb[0].mxu0
    %v2112 = vadd.f32 %v1318, %v2111
    %v2113 = vpop.f32.mrb[0].mxu0
    %v2114 = vadd.f32 %v1322, %v2113
    %v2115 = vpop.f32.mrb[0].mxu0
    %v2116 = vpop.f32.mrb[0].mxu0
    %2117 = vdwg.mxu0
    %v2118 = vmul.f32 %v2112, 0.5
    %v2119 = vtanh.pop %v2118
    %v2120 = vadd.f32 %v2119, 1.0
    %v2121 = vmul.f32 %v2120, 0.5
    %v2122 = vmul.f32 %v2114, 0.5
    %v2123 = vtanh.pop %v2122
    %v2124 = vadd.f32 %v2123, 1.0
    %v2125 = vmul.f32 %v2124, 0.5
    %v2126 = vtanh.pop %v2114
    %v2127 = vsel %vm765, %v2125, %v2126
    %v2128 = vmul.f32 %v2121, %v1914
    %2130 = vrot.lane.b32.xlu0 %v2127, 64
    %v2131 = vpop.permute.xlu0 %2130
    %v2133 = vmul.f32 %v2121, %v2131
    %2135 = vrot.lane.b32.xlu0 %v2133, 64
    %v2136 = vpop.permute.xlu0 %2135
    %v2138 = vadd.f32 %v2128, %v2136
    %v2139 = vtanh.pop %v2138
    %2141 = vrot.lane.b32.xlu0 %v2139, 64
    %v2142 = vpop.permute.xlu0 %2141
    %v2144 = vmul.f32 %v2127, %v2142
    %v2145 = vld [vmem:[#allocation2 + $0x60] sm:$0xff]
    %v2146 = vld [vmem:[#allocation2 + $0x68] sm:$0xff]
    %v2147 = vpack.c.bf16 %v1996, %v1996
    %v2149 = vsel %vm663, %v2147, 0
    %2151 = vmatprep.subr.bf16.mxu0 %v801
    %2152 = vmatpush1.bf16.msra.mxu0 %v800
    %2153 = vmatprep.subr.bf16.mxu0 %v803
    %2154 = vmatpush1.bf16.msra.mxu0 %v802
    %2155 = vmatprep.subr.bf16.mxu0 %v805
    %2156 = vmatpush1.bf16.msra.mxu0 %v804
    %2157 = vmatprep.subr.bf16.mxu0 %v807
    %2158 = vmatpush1.bf16.msra.mxu0 %v806
    %2159 = vmatprep.subr.bf16.mxu0 0
    %2160 = vmatpush1.bf16.msra.mxu0 0
    %2161 = vmatprep.subr.bf16.mxu0 0
    %2162 = vmatpush1.bf16.msra.mxu0 0
    %2163 = vmatprep.subr.bf16.mxu0 0
    %2164 = vmatpush1.bf16.msra.mxu0 0
    %2165 = vmatprep.subr.bf16.mxu0 0
    %2166 = vmatpush1.bf16.msra.mxu0 0
    %2167 = vmatprep.subr.bf16.mxu0 0
    %2168 = vmatpush1.bf16.msra.mxu0 0
    %2169 = vmatprep.subr.bf16.mxu0 0
    %2170 = vmatpush1.bf16.msra.mxu0 0
    %2171 = vmatprep.subr.bf16.mxu0 0
    %2172 = vmatpush1.bf16.msra.mxu0 0
    %2173 = vmatprep.subr.bf16.mxu0 0
    %2174 = vmatpush1.bf16.msra.mxu0 0
    %2175 = vmatprep.subr.bf16.mxu0 0
    %2176 = vmatpush1.bf16.msra.mxu0 0
    %2177 = vmatprep.subr.bf16.mxu0 0
    %2178 = vmatpush1.bf16.msra.mxu0 0
    %2179 = vmatprep.subr.bf16.mxu0 0
    %2180 = vmatpush1.bf16.msra.mxu0 0
    %2181 = vmatprep.subr.bf16.mxu0 0
    %2182 = vmatpush1.bf16.msra.mxu0 0
    %2183 = vmatprep.mubr.bf16.mxu0 0
    %2184 = vmatmul.mubr.bf16.gmra.mrb[0].mxu0 %v2149
    %v2185 = vpop.f32.mrb[0].mxu0
    %v2186 = vadd.f32 0.0, %v2185
    %v2187 = vpop.f32.mrb[0].mxu0
    %v2188 = vadd.f32 0.0, %v2187
    %v2189 = vpop.f32.mrb[0].mxu0
    %v2190 = vpop.f32.mrb[0].mxu0
    %2191 = vdwg.mxu0
    %v2192 = vadd.f32 %v2145, %v2186
    %v2193 = vadd.f32 %v2146, %v2188
    %v2194 = vmul.f32 %v2192, 0.5
    %v2195 = vtanh.pop %v2194
    %v2196 = vadd.f32 %v2195, 1.0
    %v2197 = vmul.f32 %v2196, 0.5
    %v2198 = vmul.f32 %v2193, 0.5
    %v2199 = vtanh.pop %v2198
    %v2200 = vadd.f32 %v2199, 1.0
    %v2201 = vmul.f32 %v2200, 0.5
    %v2202 = vtanh.pop %v2193
    %v2203 = vsel %vm765, %v2201, %v2202
    %v2204 = vmul.f32 %v2197, %v1990
    %2206 = vrot.lane.b32.xlu0 %v2203, 64
    %v2207 = vpop.permute.xlu0 %2206
    %v2209 = vmul.f32 %v2197, %v2207
    %2211 = vrot.lane.b32.xlu0 %v2209, 64
    %v2212 = vpop.permute.xlu0 %2211
    %v2214 = vadd.f32 %v2204, %v2212
    %v2215 = vtanh.pop %v2214
    %2217 = vrot.lane.b32.xlu0 %v2215, 64
    %v2218 = vpop.permute.xlu0 %2217
    %v2220 = vmul.f32 %v2203, %v2218
    %2222 = vrot.lane.b32.xlu0 %v2070, 64
    %v2223 = vpop.permute.xlu0 %2222
    %v2225 = vsel %vm663, %v1996, %v2223
    %v2226 = vpack.c.bf16 %v2225, %v2225
    %2227 = vmatprep.subr.bf16.mxu0 %v1044
    %2228 = vmatpush1.bf16.msra.mxu0 %v1043
    %2229 = vmatprep.subr.bf16.mxu0 %v1046
    %2230 = vmatpush1.bf16.msra.mxu0 %v1045
    %2231 = vmatprep.subr.bf16.mxu0 %v1048
    %2232 = vmatpush1.bf16.msra.mxu0 %v1047
    %2233 = vmatprep.subr.bf16.mxu0 %v1050
    %2234 = vmatpush1.bf16.msra.mxu0 %v1049
    %2235 = vmatprep.subr.bf16.mxu0 %v1052
    %2236 = vmatpush1.bf16.msra.mxu0 %v1051
    %2237 = vmatprep.subr.bf16.mxu0 %v1054
    %2238 = vmatpush1.bf16.msra.mxu0 %v1053
    %2239 = vmatprep.subr.bf16.mxu0 %v1056
    %2240 = vmatpush1.bf16.msra.mxu0 %v1055
    %2241 = vmatprep.subr.bf16.mxu0 %v1058
    %2242 = vmatpush1.bf16.msra.mxu0 %v1057
    %2243 = vmatprep.subr.bf16.mxu0 0
    %2244 = vmatpush1.bf16.msra.mxu0 0
    %2245 = vmatprep.subr.bf16.mxu0 0
    %2246 = vmatpush1.bf16.msra.mxu0 0
    %2247 = vmatprep.subr.bf16.mxu0 0
    %2248 = vmatpush1.bf16.msra.mxu0 0
    %2249 = vmatprep.subr.bf16.mxu0 0
    %2250 = vmatpush1.bf16.msra.mxu0 0
    %2251 = vmatprep.subr.bf16.mxu0 0
    %2252 = vmatpush1.bf16.msra.mxu0 0
    %2253 = vmatprep.subr.bf16.mxu0 0
    %2254 = vmatpush1.bf16.msra.mxu0 0
    %2255 = vmatprep.subr.bf16.mxu0 0
    %2256 = vmatpush1.bf16.msra.mxu0 0
    %2257 = vmatprep.subr.bf16.mxu0 0
    %2258 = vmatpush1.bf16.msra.mxu0 0
    %2259 = vmatprep.mubr.bf16.mxu0 0
    %2260 = vmatmul.mubr.bf16.gmra.mrb[0].mxu0 %v2226
    %v2261 = vpop.f32.mrb[0].mxu0
    %v2262 = vadd.f32 %v988, %v2261
    %v2263 = vpop.f32.mrb[0].mxu0
    %v2264 = vadd.f32 %v992, %v2263
    %v2265 = vpop.f32.mrb[0].mxu0
    %v2266 = vpop.f32.mrb[0].mxu0
    %2267 = vdwg.mxu0
    %v2268 = vmul.f32 %v2262, 0.5
    %v2269 = vtanh.pop %v2268
    %v2270 = vadd.f32 %v2269, 1.0
    %v2271 = vmul.f32 %v2270, 0.5
    %v2272 = vmul.f32 %v2264, 0.5
    %v2273 = vtanh.pop %v2272
    %v2274 = vadd.f32 %v2273, 1.0
    %v2275 = vmul.f32 %v2274, 0.5
    %v2276 = vtanh.pop %v2264
    %v2277 = vsel %vm765, %v2275, %v2276
    %v2278 = vmul.f32 %v2271, %v2064
    %2280 = vrot.lane.b32.xlu0 %v2277, 64
    %v2281 = vpop.permute.xlu0 %2280
    %v2283 = vmul.f32 %v2271, %v2281
    %2285 = vrot.lane.b32.xlu0 %v2283, 64
    %v2286 = vpop.permute.xlu0 %2285
    %v2288 = vadd.f32 %v2278, %v2286
    %v2289 = vtanh.pop %v2288
    %2291 = vrot.lane.b32.xlu0 %v2289, 64
    %v2292 = vpop.permute.xlu0 %2291
    %v2294 = vmul.f32 %v2277, %v2292
    %2296 = vrot.lane.b32.xlu0 %v2144, 64
    %v2297 = vpop.permute.xlu0 %2296
    %v2299 = vsel %vm663, %v2070, %v2297
    %v2300 = vpack.c.bf16 %v2299, %v2299
    %2301 = vmatprep.subr.bf16.mxu0 %v1374
    %2302 = vmatpush1.bf16.msra.mxu0 %v1373
    %2303 = vmatprep.subr.bf16.mxu0 %v1376
    %2304 = vmatpush1.bf16.msra.mxu0 %v1375
    %2305 = vmatprep.subr.bf16.mxu0 %v1378
    %2306 = vmatpush1.bf16.msra.mxu0 %v1377
    %2307 = vmatprep.subr.bf16.mxu0 %v1380
    %2308 = vmatpush1.bf16.msra.mxu0 %v1379
    %2309 = vmatprep.subr.bf16.mxu0 %v1382
    %2310 = vmatpush1.bf16.msra.mxu0 %v1381
    %2311 = vmatprep.subr.bf16.mxu0 %v1384
    %2312 = vmatpush1.bf16.msra.mxu0 %v1383
    %2313 = vmatprep.subr.bf16.mxu0 %v1386
    %2314 = vmatpush1.bf16.msra.mxu0 %v1385
    %2315 = vmatprep.subr.bf16.mxu0 %v1388
    %2316 = vmatpush1.bf16.msra.mxu0 %v1387
    %2317 = vmatprep.subr.bf16.mxu0 0
    %2318 = vmatpush1.bf16.msra.mxu0 0
    %2319 = vmatprep.subr.bf16.mxu0 0
    %2320 = vmatpush1.bf16.msra.mxu0 0
    %2321 = vmatprep.subr.bf16.mxu0 0
    %2322 = vmatpush1.bf16.msra.mxu0 0
    %2323 = vmatprep.subr.bf16.mxu0 0
    %2324 = vmatpush1.bf16.msra.mxu0 0
    %2325 = vmatprep.subr.bf16.mxu0 0
    %2326 = vmatpush1.bf16.msra.mxu0 0
    %2327 = vmatprep.subr.bf16.mxu0 0
    %2328 = vmatpush1.bf16.msra.mxu0 0
    %2329 = vmatprep.subr.bf16.mxu0 0
    %2330 = vmatpush1.bf16.msra.mxu0 0
    %2331 = vmatprep.subr.bf16.mxu0 0
    %2332 = vmatpush1.bf16.msra.mxu0 0
    %2333 = vmatprep.mubr.bf16.mxu0 0
    %2334 = vmatmul.mubr.bf16.gmra.mrb[0].mxu0 %v2300
    %v2335 = vpop.f32.mrb[0].mxu0
    %v2336 = vadd.f32 %v1318, %v2335
    %v2337 = vpop.f32.mrb[0].mxu0
    %v2338 = vadd.f32 %v1322, %v2337
    %v2339 = vpop.f32.mrb[0].mxu0
    %v2340 = vpop.f32.mrb[0].mxu0
    %2341 = vdwg.mxu0
    %v2342 = vmul.f32 %v2336, 0.5
    %v2343 = vtanh.pop %v2342
    %v2344 = vadd.f32 %v2343, 1.0
    %v2345 = vmul.f32 %v2344, 0.5
    %v2346 = vmul.f32 %v2338, 0.5
    %v2347 = vtanh.pop %v2346
    %v2348 = vadd.f32 %v2347, 1.0
    %v2349 = vmul.f32 %v2348, 0.5
    %v2350 = vtanh.pop %v2338
    %v2351 = vsel %vm765, %v2349, %v2350
    %v2352 = vmul.f32 %v2345, %v2138
    %2354 = vrot.lane.b32.xlu0 %v2351, 64
    %v2355 = vpop.permute.xlu0 %2354
    %v2357 = vmul.f32 %v2345, %v2355
    %2359 = vrot.lane.b32.xlu0 %v2357, 64
    %v2360 = vpop.permute.xlu0 %2359
    %v2362 = vadd.f32 %v2352, %v2360
    %v2363 = vtanh.pop %v2362
    %2365 = vrot.lane.b32.xlu0 %v2363, 64
    %v2366 = vpop.permute.xlu0 %2365
    %v2368 = vmul.f32 %v2351, %v2366
    %v2369 = vld [vmem:[#allocation2 + $0x70] sm:$0xff]
    %v2370 = vld [vmem:[#allocation2 + $0x78] sm:$0xff]
    %v2371 = vpack.c.bf16 %v2220, %v2220
    %v2373 = vsel %vm663, %v2371, 0
    %2375 = vmatprep.subr.bf16.mxu0 %v801
    %2376 = vmatpush1.bf16.msra.mxu0 %v800
    %2377 = vmatprep.subr.bf16.mxu0 %v803
    %2378 = vmatpush1.bf16.msra.mxu0 %v802
    %2379 = vmatprep.subr.bf16.mxu0 %v805
    %2380 = vmatpush1.bf16.msra.mxu0 %v804
    %2381 = vmatprep.subr.bf16.mxu0 %v807
    %2382 = vmatpush1.bf16.msra.mxu0 %v806
    %2383 = vmatprep.subr.bf16.mxu0 0
    %2384 = vmatpush1.bf16.msra.mxu0 0
    %2385 = vmatprep.subr.bf16.mxu0 0
    %2386 = vmatpush1.bf16.msra.mxu0 0
    %2387 = vmatprep.subr.bf16.mxu0 0
    %2388 = vmatpush1.bf16.msra.mxu0 0
    %2389 = vmatprep.subr.bf16.mxu0 0
    %2390 = vmatpush1.bf16.msra.mxu0 0
    %2391 = vmatprep.subr.bf16.mxu0 0
    %2392 = vmatpush1.bf16.msra.mxu0 0
    %2393 = vmatprep.subr.bf16.mxu0 0
    %2394 = vmatpush1.bf16.msra.mxu0 0
    %2395 = vmatprep.subr.bf16.mxu0 0
    %2396 = vmatpush1.bf16.msra.mxu0 0
    %2397 = vmatprep.subr.bf16.mxu0 0
    %2398 = vmatpush1.bf16.msra.mxu0 0
    %2399 = vmatprep.subr.bf16.mxu0 0
    %2400 = vmatpush1.bf16.msra.mxu0 0
    %2401 = vmatprep.subr.bf16.mxu0 0
    %2402 = vmatpush1.bf16.msra.mxu0 0
    %2403 = vmatprep.subr.bf16.mxu0 0
    %2404 = vmatpush1.bf16.msra.mxu0 0
    %2405 = vmatprep.subr.bf16.mxu0 0
    %2406 = vmatpush1.bf16.msra.mxu0 0
    %2407 = vmatprep.mubr.bf16.mxu0 0
    %2408 = vmatmul.mubr.bf16.gmra.mrb[0].mxu0 %v2373
    %v2409 = vpop.f32.mrb[0].mxu0
    %v2410 = vadd.f32 0.0, %v2409
    %v2411 = vpop.f32.mrb[0].mxu0
    %v2412 = vadd.f32 0.0, %v2411
    %v2413 = vpop.f32.mrb[0].mxu0
    %v2414 = vpop.f32.mrb[0].mxu0
    %2415 = vdwg.mxu0
    %v2416 = vadd.f32 %v2369, %v2410
    %v2417 = vadd.f32 %v2370, %v2412
    %v2418 = vmul.f32 %v2416, 0.5
    %v2419 = vtanh.pop %v2418
    %v2420 = vadd.f32 %v2419, 1.0
    %v2421 = vmul.f32 %v2420, 0.5
    %v2422 = vmul.f32 %v2417, 0.5
    %v2423 = vtanh.pop %v2422
    %v2424 = vadd.f32 %v2423, 1.0
    %v2425 = vmul.f32 %v2424, 0.5
    %v2426 = vtanh.pop %v2417
    %v2427 = vsel %vm765, %v2425, %v2426
    %v2428 = vmul.f32 %v2421, %v2214
    %2430 = vrot.lane.b32.xlu0 %v2427, 64
    %v2431 = vpop.permute.xlu0 %2430
    %v2433 = vmul.f32 %v2421, %v2431
    %2435 = vrot.lane.b32.xlu0 %v2433, 64
    %v2436 = vpop.permute.xlu0 %2435
    %v2438 = vadd.f32 %v2428, %v2436
    %v2439 = vtanh.pop %v2438
    %2441 = vrot.lane.b32.xlu0 %v2439, 64
    %v2442 = vpop.permute.xlu0 %2441
    %v2444 = vmul.f32 %v2427, %v2442
    %2446 = vrot.lane.b32.xlu0 %v2294, 64
    %v2447 = vpop.permute.xlu0 %2446
    %v2449 = vsel %vm663, %v2220, %v2447
    %v2450 = vpack.c.bf16 %v2449, %v2449
    %2451 = vmatprep.subr.bf16.mxu0 %v1044
    %2452 = vmatpush1.bf16.msra.mxu0 %v1043
    %2453 = vmatprep.subr.bf16.mxu0 %v1046
    %2454 = vmatpush1.bf16.msra.mxu0 %v1045
    %2455 = vmatprep.subr.bf16.mxu0 %v1048
    %2456 = vmatpush1.bf16.msra.mxu0 %v1047
    %2457 = vmatprep.subr.bf16.mxu0 %v1050
    %2458 = vmatpush1.bf16.msra.mxu0 %v1049
    %2459 = vmatprep.subr.bf16.mxu0 %v1052
    %2460 = vmatpush1.bf16.msra.mxu0 %v1051
    %2461 = vmatprep.subr.bf16.mxu0 %v1054
    %2462 = vmatpush1.bf16.msra.mxu0 %v1053
    %2463 = vmatprep.subr.bf16.mxu0 %v1056
    %2464 = vmatpush1.bf16.msra.mxu0 %v1055
    %2465 = vmatprep.subr.bf16.mxu0 %v1058
    %2466 = vmatpush1.bf16.msra.mxu0 %v1057
    %2467 = vmatprep.subr.bf16.mxu0 0
    %2468 = vmatpush1.bf16.msra.mxu0 0
    %2469 = vmatprep.subr.bf16.mxu0 0
    %2470 = vmatpush1.bf16.msra.mxu0 0
    %2471 = vmatprep.subr.bf16.mxu0 0
    %2472 = vmatpush1.bf16.msra.mxu0 0
    %2473 = vmatprep.subr.bf16.mxu0 0
    %2474 = vmatpush1.bf16.msra.mxu0 0
    %2475 = vmatprep.subr.bf16.mxu0 0
    %2476 = vmatpush1.bf16.msra.mxu0 0
    %2477 = vmatprep.subr.bf16.mxu0 0
    %2478 = vmatpush1.bf16.msra.mxu0 0
    %2479 = vmatprep.subr.bf16.mxu0 0
    %2480 = vmatpush1.bf16.msra.mxu0 0
    %2481 = vmatprep.subr.bf16.mxu0 0
    %2482 = vmatpush1.bf16.msra.mxu0 0
    %2483 = vmatprep.mubr.bf16.mxu0 0
    %2484 = vmatmul.mubr.bf16.gmra.mrb[0].mxu0 %v2450
    %v2485 = vpop.f32.mrb[0].mxu0
    %v2486 = vadd.f32 %v988, %v2485
    %v2487 = vpop.f32.mrb[0].mxu0
    %v2488 = vadd.f32 %v992, %v2487
    %v2489 = vpop.f32.mrb[0].mxu0
    %v2490 = vpop.f32.mrb[0].mxu0
    %2491 = vdwg.mxu0
    %v2492 = vmul.f32 %v2486, 0.5
    %v2493 = vtanh.pop %v2492
    %v2494 = vadd.f32 %v2493, 1.0
    %v2495 = vmul.f32 %v2494, 0.5
    %v2496 = vmul.f32 %v2488, 0.5
    %v2497 = vtanh.pop %v2496
    %v2498 = vadd.f32 %v2497, 1.0
    %v2499 = vmul.f32 %v2498, 0.5
    %v2500 = vtanh.pop %v2488
    %v2501 = vsel %vm765, %v2499, %v2500
    %v2502 = vmul.f32 %v2495, %v2288
    %2504 = vrot.lane.b32.xlu0 %v2501, 64
    %v2505 = vpop.permute.xlu0 %2504
    %v2507 = vmul.f32 %v2495, %v2505
    %2509 = vrot.lane.b32.xlu0 %v2507, 64
    %v2510 = vpop.permute.xlu0 %2509
    %v2512 = vadd.f32 %v2502, %v2510
    %v2513 = vtanh.pop %v2512
    %2515 = vrot.lane.b32.xlu0 %v2513, 64
    %v2516 = vpop.permute.xlu0 %2515
    %v2518 = vmul.f32 %v2501, %v2516
    %2520 = vrot.lane.b32.xlu0 %v2368, 64
    %v2521 = vpop.permute.xlu0 %2520
    %v2523 = vsel %vm663, %v2294, %v2521
    %v2524 = vpack.c.bf16 %v2523, %v2523
    %2525 = vmatprep.subr.bf16.mxu0 %v1374
    %2526 = vmatpush1.bf16.msra.mxu0 %v1373
    %2527 = vmatprep.subr.bf16.mxu0 %v1376
    %2528 = vmatpush1.bf16.msra.mxu0 %v1375
    %2529 = vmatprep.subr.bf16.mxu0 %v1378
    %2530 = vmatpush1.bf16.msra.mxu0 %v1377
    %2531 = vmatprep.subr.bf16.mxu0 %v1380
    %2532 = vmatpush1.bf16.msra.mxu0 %v1379
    %2533 = vmatprep.subr.bf16.mxu0 %v1382
    %2534 = vmatpush1.bf16.msra.mxu0 %v1381
    %2535 = vmatprep.subr.bf16.mxu0 %v1384
    %2536 = vmatpush1.bf16.msra.mxu0 %v1383
    %2537 = vmatprep.subr.bf16.mxu0 %v1386
    %2538 = vmatpush1.bf16.msra.mxu0 %v1385
    %2539 = vmatprep.subr.bf16.mxu0 %v1388
    %2540 = vmatpush1.bf16.msra.mxu0 %v1387
    %2541 = vmatprep.subr.bf16.mxu0 0
    %2542 = vmatpush1.bf16.msra.mxu0 0
    %2543 = vmatprep.subr.bf16.mxu0 0
    %2544 = vmatpush1.bf16.msra.mxu0 0
    %2545 = vmatprep.subr.bf16.mxu0 0
    %2546 = vmatpush1.bf16.msra.mxu0 0
    %2547 = vmatprep.subr.bf16.mxu0 0
    %2548 = vmatpush1.bf16.msra.mxu0 0
    %2549 = vmatprep.subr.bf16.mxu0 0
    %2550 = vmatpush1.bf16.msra.mxu0 0
    %2551 = vmatprep.subr.bf16.mxu0 0
    %2552 = vmatpush1.bf16.msra.mxu0 0
    %2553 = vmatprep.subr.bf16.mxu0 0
    %2554 = vmatpush1.bf16.msra.mxu0 0
    %2555 = vmatprep.subr.bf16.mxu0 0
    %2556 = vmatpush1.bf16.msra.mxu0 0
    %2557 = vmatprep.mubr.bf16.mxu0 0
    %2558 = vmatmul.mubr.bf16.gmra.mrb[0].mxu0 %v2524
    %v2559 = vpop.f32.mrb[0].mxu0
    %v2560 = vadd.f32 %v1318, %v2559
    %v2561 = vpop.f32.mrb[0].mxu0
    %v2562 = vadd.f32 %v1322, %v2561
    %v2563 = vpop.f32.mrb[0].mxu0
    %v2564 = vpop.f32.mrb[0].mxu0
    %2565 = vdwg.mxu0
    %v2566 = vmul.f32 %v2560, 0.5
    %v2567 = vtanh.pop %v2566
    %v2568 = vadd.f32 %v2567, 1.0
    %v2569 = vmul.f32 %v2568, 0.5
    %v2570 = vmul.f32 %v2562, 0.5
    %v2571 = vtanh.pop %v2570
    %v2572 = vadd.f32 %v2571, 1.0
    %v2573 = vmul.f32 %v2572, 0.5
    %v2574 = vtanh.pop %v2562
    %v2575 = vsel %vm765, %v2573, %v2574
    %v2576 = vmul.f32 %v2569, %v2362
    %2578 = vrot.lane.b32.xlu0 %v2575, 64
    %v2579 = vpop.permute.xlu0 %2578
    %v2581 = vmul.f32 %v2569, %v2579
    %2583 = vrot.lane.b32.xlu0 %v2581, 64
    %v2584 = vpop.permute.xlu0 %2583
    %v2586 = vadd.f32 %v2576, %v2584
    %v2587 = vtanh.pop %v2586
    %2589 = vrot.lane.b32.xlu0 %v2587, 64
    %v2590 = vpop.permute.xlu0 %2589
    %v2592 = vmul.f32 %v2575, %v2590
    %2594 = vrot.lane.b32.xlu0 %v2518, 64
    %v2595 = vpop.permute.xlu0 %2594
    %v2597 = vsel %vm663, %v2444, %v2595
    %v2598 = vpack.c.bf16 %v2597, %v2597
    %2599 = vmatprep.subr.bf16.mxu0 %v1044
    %2600 = vmatpush1.bf16.msra.mxu0 %v1043
    %2601 = vmatprep.subr.bf16.mxu0 %v1046
    %2602 = vmatpush1.bf16.msra.mxu0 %v1045
    %2603 = vmatprep.subr.bf16.mxu0 %v1048
    %2604 = vmatpush1.bf16.msra.mxu0 %v1047
    %2605 = vmatprep.subr.bf16.mxu0 %v1050
    %2606 = vmatpush1.bf16.msra.mxu0 %v1049
    %2607 = vmatprep.subr.bf16.mxu0 %v1052
    %2608 = vmatpush1.bf16.msra.mxu0 %v1051
    %2609 = vmatprep.subr.bf16.mxu0 %v1054
    %2610 = vmatpush1.bf16.msra.mxu0 %v1053
    %2611 = vmatprep.subr.bf16.mxu0 %v1056
    %2612 = vmatpush1.bf16.msra.mxu0 %v1055
    %2613 = vmatprep.subr.bf16.mxu0 %v1058
    %2614 = vmatpush1.bf16.msra.mxu0 %v1057
    %2615 = vmatprep.subr.bf16.mxu0 0
    %2616 = vmatpush1.bf16.msra.mxu0 0
    %2617 = vmatprep.subr.bf16.mxu0 0
    %2618 = vmatpush1.bf16.msra.mxu0 0
    %2619 = vmatprep.subr.bf16.mxu0 0
    %2620 = vmatpush1.bf16.msra.mxu0 0
    %2621 = vmatprep.subr.bf16.mxu0 0
    %2622 = vmatpush1.bf16.msra.mxu0 0
    %2623 = vmatprep.subr.bf16.mxu0 0
    %2624 = vmatpush1.bf16.msra.mxu0 0
    %2625 = vmatprep.subr.bf16.mxu0 0
    %2626 = vmatpush1.bf16.msra.mxu0 0
    %2627 = vmatprep.subr.bf16.mxu0 0
    %2628 = vmatpush1.bf16.msra.mxu0 0
    %2629 = vmatprep.subr.bf16.mxu0 0
    %2630 = vmatpush1.bf16.msra.mxu0 0
    %2631 = vmatprep.mubr.bf16.mxu0 0
    %2632 = vmatmul.mubr.bf16.gmra.mrb[0].mxu0 %v2598
    %v2633 = vpop.f32.mrb[0].mxu0
    %v2634 = vadd.f32 %v988, %v2633
    %v2635 = vpop.f32.mrb[0].mxu0
    %v2636 = vadd.f32 %v992, %v2635
    %v2637 = vpop.f32.mrb[0].mxu0
    %v2638 = vpop.f32.mrb[0].mxu0
    %2639 = vdwg.mxu0
    %v2640 = vmul.f32 %v2634, 0.5
    %v2641 = vtanh.pop %v2640
    %v2642 = vadd.f32 %v2641, 1.0
    %v2643 = vmul.f32 %v2642, 0.5
    %v2644 = vmul.f32 %v2636, 0.5
    %v2645 = vtanh.pop %v2644
    %v2646 = vadd.f32 %v2645, 1.0
    %v2647 = vmul.f32 %v2646, 0.5
    %v2648 = vtanh.pop %v2636
    %v2649 = vsel %vm765, %v2647, %v2648
    %v2650 = vmul.f32 %v2643, %v2512
    %2652 = vrot.lane.b32.xlu0 %v2649, 64
    %v2653 = vpop.permute.xlu0 %2652
    %v2655 = vmul.f32 %v2643, %v2653
    %2657 = vrot.lane.b32.xlu0 %v2655, 64
    %v2658 = vpop.permute.xlu0 %2657
    %v2660 = vadd.f32 %v2650, %v2658
    %v2661 = vtanh.pop %v2660
    %2663 = vrot.lane.b32.xlu0 %v2661, 64
    %v2664 = vpop.permute.xlu0 %2663
    %v2666 = vmul.f32 %v2649, %v2664
    %2668 = vrot.lane.b32.xlu0 %v2592, 64
    %v2669 = vpop.permute.xlu0 %2668
    %v2671 = vsel %vm663, %v2518, %v2669
    %v2672 = vpack.c.bf16 %v2671, %v2671
    %2673 = vmatprep.subr.bf16.mxu0 %v1374
    %2674 = vmatpush1.bf16.msra.mxu0 %v1373
    %2675 = vmatprep.subr.bf16.mxu0 %v1376
    %2676 = vmatpush1.bf16.msra.mxu0 %v1375
    %2677 = vmatprep.subr.bf16.mxu0 %v1378
    %2678 = vmatpush1.bf16.msra.mxu0 %v1377
    %2679 = vmatprep.subr.bf16.mxu0 %v1380
    %2680 = vmatpush1.bf16.msra.mxu0 %v1379
    %2681 = vmatprep.subr.bf16.mxu0 %v1382
    %2682 = vmatpush1.bf16.msra.mxu0 %v1381
    %2683 = vmatprep.subr.bf16.mxu0 %v1384
    %2684 = vmatpush1.bf16.msra.mxu0 %v1383
    %2685 = vmatprep.subr.bf16.mxu0 %v1386
    %2686 = vmatpush1.bf16.msra.mxu0 %v1385
    %2687 = vmatprep.subr.bf16.mxu0 %v1388
    %2688 = vmatpush1.bf16.msra.mxu0 %v1387
    %2689 = vmatprep.subr.bf16.mxu0 0
    %2690 = vmatpush1.bf16.msra.mxu0 0
    %2691 = vmatprep.subr.bf16.mxu0 0
    %2692 = vmatpush1.bf16.msra.mxu0 0
    %2693 = vmatprep.subr.bf16.mxu0 0
    %2694 = vmatpush1.bf16.msra.mxu0 0
    %2695 = vmatprep.subr.bf16.mxu0 0
    %2696 = vmatpush1.bf16.msra.mxu0 0
    %2697 = vmatprep.subr.bf16.mxu0 0
    %2698 = vmatpush1.bf16.msra.mxu0 0
    %2699 = vmatprep.subr.bf16.mxu0 0
    %2700 = vmatpush1.bf16.msra.mxu0 0
    %2701 = vmatprep.subr.bf16.mxu0 0
    %2702 = vmatpush1.bf16.msra.mxu0 0
    %2703 = vmatprep.subr.bf16.mxu0 0
    %2704 = vmatpush1.bf16.msra.mxu0 0
    %2705 = vmatprep.mubr.bf16.mxu0 0
    %2706 = vmatmul.mubr.bf16.gmra.mrb[0].mxu0 %v2672
    %v2707 = vpop.f32.mrb[0].mxu0
    %v2708 = vadd.f32 %v1318, %v2707
    %v2709 = vpop.f32.mrb[0].mxu0
    %v2710 = vadd.f32 %v1322, %v2709
    %v2711 = vpop.f32.mrb[0].mxu0
    %v2712 = vpop.f32.mrb[0].mxu0
    %2713 = vdwg.mxu0
    %v2714 = vmul.f32 %v2708, 0.5
    %v2715 = vtanh.pop %v2714
    %v2716 = vadd.f32 %v2715, 1.0
    %v2717 = vmul.f32 %v2716, 0.5
    %v2718 = vmul.f32 %v2710, 0.5
    %v2719 = vtanh.pop %v2718
    %v2720 = vadd.f32 %v2719, 1.0
    %v2721 = vmul.f32 %v2720, 0.5
    %v2722 = vtanh.pop %v2710
    %v2723 = vsel %vm765, %v2721, %v2722
    %v2724 = vmul.f32 %v2717, %v2586
    %2726 = vrot.lane.b32.xlu0 %v2723, 64
    %v2727 = vpop.permute.xlu0 %2726
    %v2729 = vmul.f32 %v2717, %v2727
    %2731 = vrot.lane.b32.xlu0 %v2729, 64
    %v2732 = vpop.permute.xlu0 %2731
    %v2734 = vadd.f32 %v2724, %v2732
    %v2735 = vtanh.pop %v2734
    %2737 = vrot.lane.b32.xlu0 %v2735, 64
    %v2738 = vpop.permute.xlu0 %2737
    %v2740 = vmul.f32 %v2723, %v2738
    %2742 = vrot.lane.b32.xlu0 %v2740, 64
    %v2743 = vpop.permute.xlu0 %2742
    %v2745 = vsel %vm663, %v2666, %v2743
    %v2746 = vpack.c.bf16 %v2745, %v2745
    %2747 = vmatprep.subr.bf16.mxu0 %v1374
    %2748 = vmatpush1.bf16.msra.mxu0 %v1373
    %2749 = vmatprep.subr.bf16.mxu0 %v1376
    %2750 = vmatpush1.bf16.msra.mxu0 %v1375
    %2751 = vmatprep.subr.bf16.mxu0 %v1378
    %2752 = vmatpush1.bf16.msra.mxu0 %v1377
    %2753 = vmatprep.subr.bf16.mxu0 %v1380
    %2754 = vmatpush1.bf16.msra.mxu0 %v1379
    %2755 = vmatprep.subr.bf16.mxu0 %v1382
    %2756 = vmatpush1.bf16.msra.mxu0 %v1381
    %2757 = vmatprep.subr.bf16.mxu0 %v1384
    %2758 = vmatpush1.bf16.msra.mxu0 %v1383
    %2759 = vmatprep.subr.bf16.mxu0 %v1386
    %2760 = vmatpush1.bf16.msra.mxu0 %v1385
    %2761 = vmatprep.subr.bf16.mxu0 %v1388
    %2762 = vmatpush1.bf16.msra.mxu0 %v1387
    %2763 = vmatprep.subr.bf16.mxu0 0
    %2764 = vmatpush1.bf16.msra.mxu0 0
    %2765 = vmatprep.subr.bf16.mxu0 0
    %2766 = vmatpush1.bf16.msra.mxu0 0
    %2767 = vmatprep.subr.bf16.mxu0 0
    %2768 = vmatpush1.bf16.msra.mxu0 0
    %2769 = vmatprep.subr.bf16.mxu0 0
    %2770 = vmatpush1.bf16.msra.mxu0 0
    %2771 = vmatprep.subr.bf16.mxu0 0
    %2772 = vmatpush1.bf16.msra.mxu0 0
    %2773 = vmatprep.subr.bf16.mxu0 0
    %2774 = vmatpush1.bf16.msra.mxu0 0
    %2775 = vmatprep.subr.bf16.mxu0 0
    %2776 = vmatpush1.bf16.msra.mxu0 0
    %2777 = vmatprep.subr.bf16.mxu0 0
    %2778 = vmatpush1.bf16.msra.mxu0 0
    %2779 = vmatprep.mubr.bf16.mxu0 0
    %2780 = vmatmul.mubr.bf16.gmra.mrb[0].mxu0 %v2746
    %v2781 = vpop.f32.mrb[0].mxu0
    %v2782 = vadd.f32 %v1318, %v2781
    %v2783 = vpop.f32.mrb[0].mxu0
    %v2784 = vadd.f32 %v1322, %v2783
    %v2785 = vpop.f32.mrb[0].mxu0
    %v2786 = vpop.f32.mrb[0].mxu0
    %2787 = vdwg.mxu0
    %v2788 = vmul.f32 %v2782, 0.5
    %v2789 = vtanh.pop %v2788
    %v2790 = vadd.f32 %v2789, 1.0
    %v2791 = vmul.f32 %v2790, 0.5
    %v2792 = vmul.f32 %v2784, 0.5
    %v2793 = vtanh.pop %v2792
    %v2794 = vadd.f32 %v2793, 1.0
    %v2795 = vmul.f32 %v2794, 0.5
    %v2796 = vtanh.pop %v2784
    %v2797 = vsel %vm765, %v2795, %v2796
    %v2798 = vmul.f32 %v2791, %v2734
    %2800 = vrot.lane.b32.xlu0 %v2797, 64
    %v2801 = vpop.permute.xlu0 %2800
    %v2803 = vmul.f32 %v2791, %v2801
    %2805 = vrot.lane.b32.xlu0 %v2803, 64
    %v2806 = vpop.permute.xlu0 %2805
    %v2808 = vadd.f32 %v2798, %v2806
    %v2809 = vtanh.pop %v2808
    %2811 = vrot.lane.b32.xlu0 %v2809, 64
    %v2812 = vpop.permute.xlu0 %2811
    %v2814 = vmul.f32 %v2797, %v2812
    %v2815 = vld [vmem:[%s10] sm:$0xff]
    %v2816 = vld [vmem:[%s10 + $0x8] sm:$0xff]
    %v2817 = vld [vmem:[%s10 + $0x10] sm:$0xff]
    %v2818 = vld [vmem:[%s10 + $0x18] sm:$0xff]
    %v2819 = vld [vmem:[%s10 + $0x20] sm:$0xff]
    %v2820 = vld [vmem:[%s10 + $0x28] sm:$0xff]
    %v2821 = vld [vmem:[%s10 + $0x30] sm:$0xff]
    %v2822 = vld [vmem:[%s10 + $0x38] sm:$0xff]
    %v2823 = vld [vmem:[#allocation3] sm:$0x1]
    %v2825 = vlaneseq
    %v2826 = vshrl.u32 %v2825, 7
    %v2827 = vsub.s32 0, %v2826
    %v2828 = vrot.slane %v2823, %v2827
    %v2831 = vsel %vm663, %v2814, 0
    %2833 = vmatprep.subr.mxu0 0.0
    %2834 = vmatpush1.msra.mxu0 %v2815
    %2835 = vmatprep.subr.mxu0 0.0
    %2836 = vmatpush1.msra.mxu0 %v2816
    %2837 = vmatprep.subr.mxu0 0.0
    %2838 = vmatpush1.msra.mxu0 %v2817
    %2839 = vmatprep.subr.mxu0 0.0
    %2840 = vmatpush1.msra.mxu0 %v2818
    %2841 = vmatprep.subr.mxu0 0.0
    %2842 = vmatpush1.msra.mxu0 %v2819
    %2843 = vmatprep.subr.mxu0 0.0
    %2844 = vmatpush1.msra.mxu0 %v2820
    %2845 = vmatprep.subr.mxu0 0.0
    %2846 = vmatpush1.msra.mxu0 %v2821
    %2847 = vmatprep.subr.mxu0 0.0
    %2848 = vmatpush1.msra.mxu0 %v2822
    %2849 = vmatprep.subr.mxu0 0.0
    %2850 = vmatpush1.msra.mxu0 0.0
    %2851 = vmatprep.subr.mxu0 0.0
    %2852 = vmatpush1.msra.mxu0 0.0
    %2853 = vmatprep.subr.mxu0 0.0
    %2854 = vmatpush1.msra.mxu0 0.0
    %2855 = vmatprep.subr.mxu0 0.0
    %2856 = vmatpush1.msra.mxu0 0.0
    %2857 = vmatprep.subr.mxu0 0.0
    %2858 = vmatpush1.msra.mxu0 0.0
    %2859 = vmatprep.subr.mxu0 0.0
    %2860 = vmatpush1.msra.mxu0 0.0
    %2861 = vmatprep.subr.mxu0 0.0
    %2862 = vmatpush1.msra.mxu0 0.0
    %2863 = vmatprep.subr.mxu0 0.0
    %2864 = vmatpush1.msra.mxu0 0.0
    %2865 = vmatprep.subr.mxu0 0.0
    %2866 = vmatpush1.msra.mxu0 0.0
    %2867 = vmatprep.subr.mxu0 0.0
    %2868 = vmatpush1.msra.mxu0 0.0
    %2869 = vmatprep.subr.mxu0 0.0
    %2870 = vmatpush1.msra.mxu0 0.0
    %2871 = vmatprep.subr.mxu0 0.0
    %2872 = vmatpush1.msra.mxu0 0.0
    %2873 = vmatprep.subr.mxu0 0.0
    %2874 = vmatpush1.msra.mxu0 0.0
    %2875 = vmatprep.subr.mxu0 0.0
    %2876 = vmatpush1.msra.mxu0 0.0
    %2877 = vmatprep.subr.mxu0 0.0
    %2878 = vmatpush1.msra.mxu0 0.0
    %2879 = vmatprep.subr.mxu0 0.0
    %2880 = vmatpush1.msra.mxu0 0.0
    %2881 = vmatprep.subr.mxu0 0.0
    %2882 = vmatpush1.msra.mxu0 0.0
    %2883 = vmatprep.subr.mxu0 0.0
    %2884 = vmatpush1.msra.mxu0 0.0
    %2885 = vmatprep.subr.mxu0 0.0
    %2886 = vmatpush1.msra.mxu0 0.0
    %2887 = vmatprep.subr.mxu0 0.0
    %2888 = vmatpush1.msra.mxu0 0.0
    %2889 = vmatprep.subr.mxu0 0.0
    %2890 = vmatpush1.msra.mxu0 0.0
    %2891 = vmatprep.subr.mxu0 0.0
    %2892 = vmatpush1.msra.mxu0 0.0
    %2893 = vmatprep.subr.mxu0 0.0
    %2894 = vmatpush1.msra.mxu0 0.0
    %2895 = vmatprep.subr.mxu0 0.0
    %2896 = vmatpush1.msra.mxu0 0.0
    %2897 = vmatprep.mubr.f32.mxu0 0.0
    %2898 = vmatmul.mubr.f32.gmra.mrb[0].mxu0 %v2831
    %v2899 = vpop.f32.mrb[0].mxu0
    %v2900 = vadd.f32 %v2828, %v2899
    %v2901 = vpop.f32.mrb[0].mxu0
    %2902 = vdwg.mxu0
    %v2903 = vmul.f32 %v2900, 0.5
    %v2904 = vtanh.pop %v2903
    %v2905 = vadd.f32 %v2904, 1.0
    %v2906 = vmul.f32 %v2905, 0.5
    %vm2907 = vcmask 7168
    %2908 = vst.msk [vmem:[%s12] sm:$0xff] %vm2907, %v2906
    // Predicated region
    $region70: #{forward.1} parent=1 // pred_check
      _
    $region71: #{forward.1} parent=1 // pred_check_branch
      %2910 = sbr.rel (0) target = $region73
    $region72: #{forward.1} parent=1 // pred_region
      _
    $region73: #{forward.1} parent=1 // pred_fallthru
      _
    // Predicated region
    $region74: #{forward.1} parent=1 // pred_check
      _
    $region75: #{forward.1} parent=1 // pred_check_branch
      %2912 = sbr.rel (0) target = $region77
    $region76: #{forward.1} parent=1 // pred_region
      _
    $region77: #{forward.1} parent=1 // pred_fallthru
      _
    %2913 = vsyncpa [#allocation5], 1
    %2914 = vsyncpa [#allocation7], 1
    %2915 = vsyncpa [#allocation10], 1

</llo_original>
